<compile_context>
chip_gen: v7x
topology: tpu7x:2x2x1
jax: 0.10.0
libtpu: 0.0.40
codegen_flags: <defaults>
</compile_context>

<pallas_src>
import math

import jax
import jax.numpy as jnp
from jax.experimental import pallas as pl
from jax.experimental.pallas import tpu as pltpu

LATENT_DIM = 512                               # hardcoded 512 in EqualLinear(512, 512)
LR_MUL = 0.01
NEG_SLOPE = 0.2
FLRELU_SCALE = 2.0 ** 0.5                      # fused_leaky_relu output scale
EQL_SCALE = (1.0 / math.sqrt(LATENT_DIM)) * LR_MUL   # EqualLinear runtime weight scale
NUM_SEGMENTS = 3                               # coarse / medium / fine


# ------------------------------ Pallas kernel ---------------------------------------

def _levels_mapper_kernel(counts_ref, x_ref, w0, b0, w1, b1, w2, b2, w3, b3, o_ref):
    """One segment (coarse, medium or fine): PixelNorm + 4x (EqualLinear + fused_lrelu).

    x_ref block:  (1, B, P, 512) f32, rows beyond the segment's true length are zero.
    w*_ref blocks: (1, 512, dout) bf16 with all constant scales pre-folded.
    b*_ref blocks: (1, 1, dout)  f32 with lr_mul pre-folded.
    """
    s = pl.program_id(0)
    n = counts_ref[s].astype(jnp.float32)          # true #style-layers in this segment

    x = x_ref[0]                                   # (B, P, 512) float32
    bsz, rows, dim = x.shape

    # PixelNorm over the style-layer axis (torch dim=1 of the (B, L, 512) slice).
    # Zero-padded rows add nothing to the sum; divide by the true count n.
    ssq = jnp.sum(x * x, axis=1, keepdims=True)    # (B, 1, 512)
    h = (x * jax.lax.rsqrt(ssq / n + 1e-8)).reshape(bsz * rows, dim)   # flatten B*L -> M

    def eq_linear_lrelu(h, w_ref, b_ref):
        # EqualLinear + fused_leaky_relu with every constant folded into the stored
        # params: one bf16 MXU dot (f32 accumulate) + f32 bias add + leaky select.
        y = jnp.dot(h.astype(w_ref.dtype), w_ref[0],
                    preferred_element_type=jnp.float32) + b_ref[0]
        return jnp.where(y >= 0.0, y, NEG_SLOPE * y)

    h = eq_linear_lrelu(h, w0, b0)
    h = eq_linear_lrelu(h, w1, b1)
    h = eq_linear_lrelu(h, w2, b2)
    h = eq_linear_lrelu(h, w3, b3) * FLRELU_SCALE  # last layer keeps its sqrt(2) gain

    o_ref[0] = h.reshape(bsz, rows, -1).astype(o_ref.dtype)


# ------------------------------ wrapper ----------------------------------------------

def levels_mapper_forward(x, stacked_w, stacked_b, out_dim, opts):
    """x: (B, L, 512) f32 with L > 8.  stacked_w[i]: (3, 512, dout_i) bf16,
    stacked_b[i]: (3, 1, dout_i) f32.  Returns (B, L, out_dim)."""
    B, L, D = x.shape
    assert D == LATENT_DIM and L > 8
    L_fine = L - 8
    P = max(4, L_fine)                             # common (padded) per-segment rows
    out_pad = stacked_w[-1].shape[-1]              # lane-dense padded output width

    x_c, x_m, x_f = x[:, 0:4], x[:, 4:8], x[:, 8:]
    pad_rows = lambda t: jnp.pad(t, ((0, 0), (0, P - t.shape[1]), (0, 0)))
    x_seg = jnp.stack([pad_rows(x_c), pad_rows(x_m), pad_rows(x_f)], axis=0)  # (3,B,P,512)
    counts = jnp.array([4, 4, L_fine], dtype=jnp.int32)

    in_specs = [pl.BlockSpec((1, B, P, D), lambda s, c: (s, 0, 0, 0))]
    args = [x_seg]
    for w, b in zip(stacked_w, stacked_b):
        in_specs.append(pl.BlockSpec((1,) + w.shape[1:], lambda s, c: (s, 0, 0)))
        in_specs.append(pl.BlockSpec((1,) + b.shape[1:], lambda s, c: (s, 0, 0)))
        args += [w, b]

    y = pl.pallas_call(
        _levels_mapper_kernel,
        out_shape=jax.ShapeDtypeStruct((NUM_SEGMENTS, B, P, out_pad), x.dtype),
        grid_spec=pltpu.PrefetchScalarGridSpec(
            num_scalar_prefetch=1,
            grid=(NUM_SEGMENTS,),
            in_specs=in_specs,
            out_specs=pl.BlockSpec((1, B, P, out_pad), lambda s, c: (s, 0, 0, 0)),
        ),
        compiler_params=pltpu.CompilerParams(dimension_semantics=("parallel",)),
    )(counts, *args)

    out_c = y[0, :, :4, :out_dim]
    out_m = y[1, :, :4, :out_dim]
    out_f = y[2, :, :L_fine, :out_dim]
    # Same semantics as the original module: a disabled mapper yields zeros of its
    # input segment (the original torch.cat likewise requires out_dim == 512 then).
    if opts["no_coarse_mapper"]:
        out_c = jnp.zeros_like(x_c)
    if opts["no_medium_mapper"]:
        out_m = jnp.zeros_like(x_m)
    if opts["no_fine_mapper"]:
        out_f = jnp.zeros_like(x_f)
    return jnp.concatenate([out_c, out_m, out_f], axis=1)


# ------------------------------ parameter setup (glue) ------------------------------

def init_levels_mapper_params(key, style_dim, n_ctx):
    """Mirror Mapper.__init__ for all three sub-mappers, with constants pre-folded.

    Returns (stacked_w, stacked_b, out_dim, key):
      stacked_w[i]: (3, 512, dout_i) bf16   stacked_b[i]: (3, 1, dout_i) f32
    """
    out_final = style_dim * n_ctx
    out_pad = ((out_final + 127) // 128) * 128          # lane-dense output width
    layer_dims = [(LATENT_DIM, LATENT_DIM)] * 3 + [(LATENT_DIM, out_final)]

    stacked_w, stacked_b = [], []
    for i, (din, dout) in enumerate(layer_dims):
        dout_store = out_pad if i == len(layer_dims) - 1 else dout
        w_list, b_list = [], []
        for _ in range(NUM_SEGMENTS):                   # coarse / medium / fine
            key, k = jax.random.split(key)
            # torch init: weight = randn(out, in) / lr_mul ; bias = zeros(out)
            w_raw = jax.random.normal(k, (dout, din), jnp.float32) / LR_MUL
            b_raw = jnp.zeros((dout,), jnp.float32)
            # Fold: y = h @ (W^T * EQL_SCALE) + b * LR_MUL ; next input = leaky(y)*sqrt(2).
            # The sqrt(2) of the previous layer commutes through this layer's matmul,
            # so absorb it into this layer's weight (layers 1..3); only the final
            # layer's sqrt(2) remains as one output multiply in the kernel.
            gain = EQL_SCALE * (FLRELU_SCALE if i > 0 else 1.0)
            w_eff = w_raw.T * gain                      # (din, dout)
            b_eff = b_raw * LR_MUL
            if dout_store != dout:
                w_eff = jnp.pad(w_eff, ((0, 0), (0, dout_store - dout)))
                b_eff = jnp.pad(b_eff, (0, dout_store - dout))
            w_list.append(w_eff.astype(jnp.bfloat16))   # bf16 weights (MXU-native)
            b_list.append(b_eff.reshape(1, dout_store))
        stacked_w.append(jnp.stack(w_list, axis=0))
        stacked_b.append(jnp.stack(b_list, axis=0))
    return stacked_w, stacked_b, out_final, key


# ------------------------------ pure-JAX reference ----------------------------------

def _ref_forward(x, stacked_w, stacked_b, out_dim):
    """Pure-JAX reference using the same stored params and the same precision choice
    as the kernel (bf16 matmul inputs, f32 accumulation / elementwise).  The folding
    of EQL_SCALE / LR_MUL / sqrt(2) into the stored params is an exact algebraic
    refactor of the PyTorch EqualLinear + fused_leaky_relu formulation."""
    segs = [x[:, :4], x[:, 4:8], x[:, 8:]]
    outs = []
    for s, xs in enumerate(segs):
        h = xs * jax.lax.rsqrt(jnp.mean(xs * xs, axis=1, keepdims=True) + 1e-8)
        bsz, rows, dim = h.shape
        h = h.reshape(bsz * rows, dim)
        for i in range(4):
            w = stacked_w[i][s]
            b = stacked_b[i][s]
            y = jnp.dot(h.astype(jnp.bfloat16), w,
                        preferred_element_type=jnp.float32) + b
            h = jnp.where(y >= 0.0, y, NEG_SLOPE * y)
        h = h * FLRELU_SCALE
        outs.append(h.reshape(bsz, rows, -1)[:, :, :out_dim])
    return jnp.concatenate(outs, axis=1)


# ------------------------------ main -------------------------------------------------

if __name__ == "__main__":
    B, L_TOTAL = 2, 10                         # coarse 0:4, medium 4:8, fine 8:10
    STYLE_DIM, N_CTX = 64, 2                   # final EqualLinear out = 128

    opts = dict(no_coarse_mapper=False, no_medium_mapper=False, no_fine_mapper=False,
                n_ctx=N_CTX)

    key = jax.random.PRNGKey(0)
    key, kx = jax.random.split(key)
    x = jax.random.normal(kx, (B, L_TOTAL, LATENT_DIM), jnp.float32)

    stacked_w, stacked_b, out_dim, key = init_levels_mapper_params(key, STYLE_DIM, N_CTX)

    out = levels_mapper_forward(x, stacked_w, stacked_b, out_dim, opts)
    out = jax.block_until_ready(out)

    ref = _ref_forward(x, stacked_w, stacked_b, out_dim)
    assert out.shape == (B, L_TOTAL, STYLE_DIM * N_CTX), out.shape
    max_err = float(jnp.max(jnp.abs(out - ref)))
    assert jnp.allclose(out, ref, atol=1e-2, rtol=1e-2), max_err

    print("KERNEL_OK")
</pallas_src>

<mosaic_0001>
module attributes {stable_mosaic.version = 11 : i64} {
  func.func @_levels_mapper_kernel(%arg0: i32, %arg1: memref<3xi32, #tpu.memory_space<smem>>, %arg2: memref<1x2x4x512xf32, #tpu.memory_space<vmem>>, %arg3: memref<1x512x512xbf16, #tpu.memory_space<vmem>>, %arg4: memref<1x1x512xf32, #tpu.memory_space<vmem>>, %arg5: memref<1x512x512xbf16, #tpu.memory_space<vmem>>, %arg6: memref<1x1x512xf32, #tpu.memory_space<vmem>>, %arg7: memref<1x512x512xbf16, #tpu.memory_space<vmem>>, %arg8: memref<1x1x512xf32, #tpu.memory_space<vmem>>, %arg9: memref<1x512x128xbf16, #tpu.memory_space<vmem>>, %arg10: memref<1x1x128xf32, #tpu.memory_space<vmem>>, %arg11: memref<1x2x4x128xf32, #tpu.memory_space<vmem>>) attributes {dimension_semantics = [#tpu.dimension_semantics<parallel>], iteration_bounds = array<i64: 3>, scalar_prefetch = 1 : i64, scratch_operands = 0 : i64, tpu.core_type = #tpu.core_type<tc>, window_params = [{transform_indices = @transform_0, window_bounds = array<i64: 1, 2, 4, 512>}, {transform_indices = @transform_1, window_bounds = array<i64: 1, 512, 512>}, {transform_indices = @transform_2, window_bounds = array<i64: 1, 1, 512>}, {transform_indices = @transform_3, window_bounds = array<i64: 1, 512, 512>}, {transform_indices = @transform_4, window_bounds = array<i64: 1, 1, 512>}, {transform_indices = @transform_5, window_bounds = array<i64: 1, 512, 512>}, {transform_indices = @transform_6, window_bounds = array<i64: 1, 1, 512>}, {transform_indices = @transform_7, window_bounds = array<i64: 1, 512, 128>}, {transform_indices = @transform_8, window_bounds = array<i64: 1, 1, 128>}, {transform_indices = @transform_9, window_bounds = array<i64: 1, 2, 4, 128>}]} {
    %0 = arith.index_cast %arg0 : i32 to index
    %1 = memref.load %arg1[%0] : memref<3xi32, #tpu.memory_space<smem>>
    %2 = arith.sitofp %1 : i32 to f32
    %c0 = arith.constant 0 : index
    %c0_0 = arith.constant 0 : index
    %c0_1 = arith.constant 0 : index
    %c0_2 = arith.constant 0 : index
    %3 = vector.load %arg2[%c0, %c0_0, %c0_1, %c0_2] : memref<1x2x4x512xf32, #tpu.memory_space<vmem>>, vector<1x2x4x512xf32>
    %4 = vector.shape_cast %3 : vector<1x2x4x512xf32> to vector<2x4x512xf32>
    %5 = arith.mulf %4, %4 : vector<2x4x512xf32>
    %cst = arith.constant dense<0.000000e+00> : vector<2x512xf32>
    %6 = vector.multi_reduction <add>, %5, %cst [1] : vector<2x4x512xf32> to vector<2x512xf32>
    %7 = vector.shape_cast %6 : vector<2x512xf32> to vector<2x1x512xf32>
    %8 = vector.broadcast %2 : f32 to vector<2x1x512xf32>
    %9 = arith.divf %7, %8 : vector<2x1x512xf32>
    %cst_3 = arith.constant 9.99999993E-9 : f32
    %10 = vector.broadcast %cst_3 : f32 to vector<2x1x512xf32>
    %11 = arith.addf %9, %10 : vector<2x1x512xf32>
    %12 = math.rsqrt %11 : vector<2x1x512xf32>
    %13 = vector.broadcast %12 : vector<2x1x512xf32> to vector<2x4x512xf32>
    %14 = arith.mulf %4, %13 : vector<2x4x512xf32>
    %15 = vector.shape_cast %14 : vector<2x4x512xf32> to vector<8x512xf32>
    %16 = arith.truncf %15 : vector<8x512xf32> to vector<8x512xbf16>
    %c0_4 = arith.constant 0 : index
    %c0_5 = arith.constant 0 : index
    %c0_6 = arith.constant 0 : index
    %17 = vector.load %arg3[%c0_4, %c0_5, %c0_6] : memref<1x512x512xbf16, #tpu.memory_space<vmem>>, vector<1x512x512xbf16>
    %18 = vector.shape_cast %17 : vector<1x512x512xbf16> to vector<512x512xbf16>
    %cst_7 = arith.constant dense<0.000000e+00> : vector<8x512xf32>
    %19 = tpu.matmul %16, %18, %cst_7 {dimension_numbers = #tpu.dot_dimension_numbers<[1], [0], [0], [1], [0, 0, 1, 1], [], []>} : vector<8x512xbf16>, vector<512x512xbf16>, vector<8x512xf32> -> vector<8x512xf32>
    %c0_8 = arith.constant 0 : index
    %c0_9 = arith.constant 0 : index
    %c0_10 = arith.constant 0 : index
    %20 = vector.load %arg4[%c0_8, %c0_9, %c0_10] : memref<1x1x512xf32, #tpu.memory_space<vmem>>, vector<1x1x512xf32>
    %21 = vector.shape_cast %20 : vector<1x1x512xf32> to vector<1x512xf32>
    %22 = vector.broadcast %21 : vector<1x512xf32> to vector<8x512xf32>
    %23 = arith.addf %19, %22 : vector<8x512xf32>
    %cst_11 = arith.constant 0.000000e+00 : f32
    %24 = vector.broadcast %cst_11 : f32 to vector<8x512xf32>
    %25 = arith.cmpf oge, %23, %24 : vector<8x512xf32>
    %cst_12 = arith.constant 2.000000e-01 : f32
    %26 = vector.broadcast %cst_12 : f32 to vector<8x512xf32>
    %27 = arith.mulf %26, %23 : vector<8x512xf32>
    %28 = arith.select %25, %23, %27 : vector<8x512xi1>, vector<8x512xf32>
    %29 = arith.truncf %28 : vector<8x512xf32> to vector<8x512xbf16>
    %c0_13 = arith.constant 0 : index
    %c0_14 = arith.constant 0 : index
    %c0_15 = arith.constant 0 : index
    %30 = vector.load %arg5[%c0_13, %c0_14, %c0_15] : memref<1x512x512xbf16, #tpu.memory_space<vmem>>, vector<1x512x512xbf16>
    %31 = vector.shape_cast %30 : vector<1x512x512xbf16> to vector<512x512xbf16>
    %cst_16 = arith.constant dense<0.000000e+00> : vector<8x512xf32>
    %32 = tpu.matmul %29, %31, %cst_16 {dimension_numbers = #tpu.dot_dimension_numbers<[1], [0], [0], [1], [0, 0, 1, 1], [], []>} : vector<8x512xbf16>, vector<512x512xbf16>, vector<8x512xf32> -> vector<8x512xf32>
    %c0_17 = arith.constant 0 : index
    %c0_18 = arith.constant 0 : index
    %c0_19 = arith.constant 0 : index
    %33 = vector.load %arg6[%c0_17, %c0_18, %c0_19] : memref<1x1x512xf32, #tpu.memory_space<vmem>>, vector<1x1x512xf32>
    %34 = vector.shape_cast %33 : vector<1x1x512xf32> to vector<1x512xf32>
    %35 = vector.broadcast %34 : vector<1x512xf32> to vector<8x512xf32>
    %36 = arith.addf %32, %35 : vector<8x512xf32>
    %cst_20 = arith.constant 0.000000e+00 : f32
    %37 = vector.broadcast %cst_20 : f32 to vector<8x512xf32>
    %38 = arith.cmpf oge, %36, %37 : vector<8x512xf32>
    %cst_21 = arith.constant 2.000000e-01 : f32
    %39 = vector.broadcast %cst_21 : f32 to vector<8x512xf32>
    %40 = arith.mulf %39, %36 : vector<8x512xf32>
    %41 = arith.select %38, %36, %40 : vector<8x512xi1>, vector<8x512xf32>
    %42 = arith.truncf %41 : vector<8x512xf32> to vector<8x512xbf16>
    %c0_22 = arith.constant 0 : index
    %c0_23 = arith.constant 0 : index
    %c0_24 = arith.constant 0 : index
    %43 = vector.load %arg7[%c0_22, %c0_23, %c0_24] : memref<1x512x512xbf16, #tpu.memory_space<vmem>>, vector<1x512x512xbf16>
    %44 = vector.shape_cast %43 : vector<1x512x512xbf16> to vector<512x512xbf16>
    %cst_25 = arith.constant dense<0.000000e+00> : vector<8x512xf32>
    %45 = tpu.matmul %42, %44, %cst_25 {dimension_numbers = #tpu.dot_dimension_numbers<[1], [0], [0], [1], [0, 0, 1, 1], [], []>} : vector<8x512xbf16>, vector<512x512xbf16>, vector<8x512xf32> -> vector<8x512xf32>
    %c0_26 = arith.constant 0 : index
    %c0_27 = arith.constant 0 : index
    %c0_28 = arith.constant 0 : index
    %46 = vector.load %arg8[%c0_26, %c0_27, %c0_28] : memref<1x1x512xf32, #tpu.memory_space<vmem>>, vector<1x1x512xf32>
    %47 = vector.shape_cast %46 : vector<1x1x512xf32> to vector<1x512xf32>
    %48 = vector.broadcast %47 : vector<1x512xf32> to vector<8x512xf32>
    %49 = arith.addf %45, %48 : vector<8x512xf32>
    %cst_29 = arith.constant 0.000000e+00 : f32
    %50 = vector.broadcast %cst_29 : f32 to vector<8x512xf32>
    %51 = arith.cmpf oge, %49, %50 : vector<8x512xf32>
    %cst_30 = arith.constant 2.000000e-01 : f32
    %52 = vector.broadcast %cst_30 : f32 to vector<8x512xf32>
    %53 = arith.mulf %52, %49 : vector<8x512xf32>
    %54 = arith.select %51, %49, %53 : vector<8x512xi1>, vector<8x512xf32>
    %55 = arith.truncf %54 : vector<8x512xf32> to vector<8x512xbf16>
    %c0_31 = arith.constant 0 : index
    %c0_32 = arith.constant 0 : index
    %c0_33 = arith.constant 0 : index
    %56 = vector.load %arg9[%c0_31, %c0_32, %c0_33] : memref<1x512x128xbf16, #tpu.memory_space<vmem>>, vector<1x512x128xbf16>
    %57 = vector.shape_cast %56 : vector<1x512x128xbf16> to vector<512x128xbf16>
    %cst_34 = arith.constant dense<0.000000e+00> : vector<8x128xf32>
    %58 = tpu.matmul %55, %57, %cst_34 {dimension_numbers = #tpu.dot_dimension_numbers<[1], [0], [0], [1], [0, 0, 1, 1], [], []>} : vector<8x512xbf16>, vector<512x128xbf16>, vector<8x128xf32> -> vector<8x128xf32>
    %c0_35 = arith.constant 0 : index
    %c0_36 = arith.constant 0 : index
    %c0_37 = arith.constant 0 : index
    %59 = vector.load %arg10[%c0_35, %c0_36, %c0_37] : memref<1x1x128xf32, #tpu.memory_space<vmem>>, vector<1x1x128xf32>
    %60 = vector.shape_cast %59 : vector<1x1x128xf32> to vector<1x128xf32>
    %61 = vector.broadcast %60 : vector<1x128xf32> to vector<8x128xf32>
    %62 = arith.addf %58, %61 : vector<8x128xf32>
    %cst_38 = arith.constant 0.000000e+00 : f32
    %63 = vector.broadcast %cst_38 : f32 to vector<8x128xf32>
    %64 = arith.cmpf oge, %62, %63 : vector<8x128xf32>
    %cst_39 = arith.constant 2.000000e-01 : f32
    %65 = vector.broadcast %cst_39 : f32 to vector<8x128xf32>
    %66 = arith.mulf %65, %62 : vector<8x128xf32>
    %67 = arith.select %64, %62, %66 : vector<8x128xi1>, vector<8x128xf32>
    %cst_40 = arith.constant 1.41421354 : f32
    %68 = vector.broadcast %cst_40 : f32 to vector<8x128xf32>
    %69 = arith.mulf %67, %68 : vector<8x128xf32>
    %70 = vector.shape_cast %69 : vector<8x128xf32> to vector<2x4x128xf32>
    %c0_41 = arith.constant 0 : index
    %c0_42 = arith.constant 0 : index
    %c0_43 = arith.constant 0 : index
    %c0_44 = arith.constant 0 : index
    %71 = vector.load %arg11[%c0_41, %c0_42, %c0_43, %c0_44] : memref<1x2x4x128xf32, #tpu.memory_space<vmem>>, vector<1x2x4x128xf32>
    %72 = vector.shape_cast %71 : vector<1x2x4x128xf32> to vector<2x4x128xf32>
    %73 = vector.shape_cast %70 : vector<2x4x128xf32> to vector<1x2x4x128xf32>
    tpu.vector_store %arg11[%c0_41, %c0_42, %c0_43, %c0_44], %73 {strides = array<i32>} : memref<1x2x4x128xf32, #tpu.memory_space<vmem>>, vector<1x2x4x128xf32>,
    return
  }
  func.func @transform_0(%arg0: i32, %arg1: memref<3xi32, #tpu.memory_space<smem>>) -> (i32, i32, i32, i32) {
    %c0_i32 = arith.constant 0 : i32
    %c0_i32_0 = arith.constant 0 : i32
    %c0_i32_1 = arith.constant 0 : i32
    %c0_i32_2 = arith.constant 0 : i32
    return %arg0, %c0_i32, %c0_i32_0, %c0_i32_1 : i32, i32, i32, i32
  }
  func.func @transform_1(%arg0: i32, %arg1: memref<3xi32, #tpu.memory_space<smem>>) -> (i32, i32, i32) {
    %c0_i32 = arith.constant 0 : i32
    %c0_i32_0 = arith.constant 0 : i32
    %c0_i32_1 = arith.constant 0 : i32
    return %arg0, %c0_i32, %c0_i32_0 : i32, i32, i32
  }
  func.func @transform_2(%arg0: i32, %arg1: memref<3xi32, #tpu.memory_space<smem>>) -> (i32, i32, i32) {
    %c0_i32 = arith.constant 0 : i32
    %c0_i32_0 = arith.constant 0 : i32
    %c0_i32_1 = arith.constant 0 : i32
    return %arg0, %c0_i32, %c0_i32_0 : i32, i32, i32
  }
  func.func @transform_3(%arg0: i32, %arg1: memref<3xi32, #tpu.memory_space<smem>>) -> (i32, i32, i32) {
    %c0_i32 = arith.constant 0 : i32
    %c0_i32_0 = arith.constant 0 : i32
    %c0_i32_1 = arith.constant 0 : i32
    return %arg0, %c0_i32, %c0_i32_0 : i32, i32, i32
  }
  func.func @transform_4(%arg0: i32, %arg1: memref<3xi32, #tpu.memory_space<smem>>) -> (i32, i32, i32) {
    %c0_i32 = arith.constant 0 : i32
    %c0_i32_0 = arith.constant 0 : i32
    %c0_i32_1 = arith.constant 0 : i32
    return %arg0, %c0_i32, %c0_i32_0 : i32, i32, i32
  }
  func.func @transform_5(%arg0: i32, %arg1: memref<3xi32, #tpu.memory_space<smem>>) -> (i32, i32, i32) {
    %c0_i32 = arith.constant 0 : i32
    %c0_i32_0 = arith.constant 0 : i32
    %c0_i32_1 = arith.constant 0 : i32
    return %arg0, %c0_i32, %c0_i32_0 : i32, i32, i32
  }
  func.func @transform_6(%arg0: i32, %arg1: memref<3xi32, #tpu.memory_space<smem>>) -> (i32, i32, i32) {
    %c0_i32 = arith.constant 0 : i32
    %c0_i32_0 = arith.constant 0 : i32
    %c0_i32_1 = arith.constant 0 : i32
    return %arg0, %c0_i32, %c0_i32_0 : i32, i32, i32
  }
  func.func @transform_7(%arg0: i32, %arg1: memref<3xi32, #tpu.memory_space<smem>>) -> (i32, i32, i32) {
    %c0_i32 = arith.constant 0 : i32
    %c0_i32_0 = arith.constant 0 : i32
    %c0_i32_1 = arith.constant 0 : i32
    return %arg0, %c0_i32, %c0_i32_0 : i32, i32, i32
  }
  func.func @transform_8(%arg0: i32, %arg1: memref<3xi32, #tpu.memory_space<smem>>) -> (i32, i32, i32) {
    %c0_i32 = arith.constant 0 : i32
    %c0_i32_0 = arith.constant 0 : i32
    %c0_i32_1 = arith.constant 0 : i32
    return %arg0, %c0_i32, %c0_i32_0 : i32, i32, i32
  }
  func.func @transform_9(%arg0: i32, %arg1: memref<3xi32, #tpu.memory_space<smem>>) -> (i32, i32, i32, i32) {
    %c0_i32 = arith.constant 0 : i32
    %c0_i32_0 = arith.constant 0 : i32
    %c0_i32_1 = arith.constant 0 : i32
    %c0_i32_2 = arith.constant 0 : i32
    return %arg0, %c0_i32, %c0_i32_0, %c0_i32_1 : i32, i32, i32, i32
  }
}

</mosaic_0001>

<llo_original>
// kernel: tpu_custom_call.1
$region0: #{tpu_custom_call.1}
  #allocation0 [shape = 'u32[]', space=smem, size = 0x4, offset = 0x4, fixed_abs, tag = 'smem constant byte address 0x4 - core index']
  #allocation1 [shape = 'u32[144,128]{1,0:T(1,128)}', space=vmem, size = 0x12000, scoped, tag = 'internal scratch']
  #allocation2 [shape = 's32[1]{0}', space=sflag, size = 0x4, scoped, tag = 'scoped memory for tpu_custom_call.1']
  #allocation3 [shape = 'u8[512]{0}', space=smem, size = 0x200, scoped, tag = 'prefetched SMEM operand 0']
  %s0 = inlined_call_operand.hbm [shape: s32[3], index: 0, kind: input, shape index: {}]
  %s1 = inlined_call_operand.hbm [shape: f32[3,2,4,512], index: 1, kind: input, shape index: {}]
  %s2 = inlined_call_operand.hbm [shape: bf16[3,512,512], index: 2, kind: input, shape index: {}]
  %s3 = inlined_call_operand.hbm [shape: f32[3,1,512], index: 3, kind: input, shape index: {}]
  %s4 = inlined_call_operand.hbm [shape: bf16[3,512,512], index: 4, kind: input, shape index: {}]
  %s5 = inlined_call_operand.hbm [shape: f32[3,1,512], index: 5, kind: input, shape index: {}]
  %s6 = inlined_call_operand.hbm [shape: bf16[3,512,512], index: 6, kind: input, shape index: {}]
  %s7 = inlined_call_operand.hbm [shape: f32[3,1,512], index: 7, kind: input, shape index: {}]
  %s8 = inlined_call_operand.hbm [shape: bf16[3,512,128], index: 8, kind: input, shape index: {}]
  %s9 = inlined_call_operand.hbm [shape: f32[3,1,128], index: 9, kind: input, shape index: {}]
  %s10 = inlined_call_operand.hbm [shape: f32[3,2,4,128], index: 10, kind: output, shape index: {}]
  %s11 = sld [smem:[#allocation0]]
  $region105: #{tpu_custom_call.1} parent=0
    _
  %s13 = ssub.s32 1, %s11
  %s14 = scalar_select 0, %s13, %s11
  %16 = dma.hbm_to_smem %s0, 16, [#allocation3], [#allocation2]
  %17 = dma.done [#allocation2], 16
  %18 = sfence
  $region1: #{tpu_custom_call.1} parent=0
    #allocation4 [shape = 'u8[32768]{0}', space=vmem, size = 0x8000, scoped, tag = 'input window, operand 1']
    #allocation5 [shape = 's32[2]{0}', space=sflag, size = 0x8, scoped, tag = 'scoped memory for tpu_custom_call.1']
    #allocation6 [shape = 's32[2]{0}', space=sflag, size = 0x8, scoped, tag = 'scoped memory for tpu_custom_call.1']
    #allocation7 [shape = 'u8[1048576]{0}', space=vmem, size = 0x100000, scoped, tag = 'input window, operand 2']
    #allocation8 [shape = 's32[2]{0}', space=sflag, size = 0x8, scoped, tag = 'scoped memory for tpu_custom_call.1']
    #allocation9 [shape = 'u8[4096]{0}', space=vmem, size = 0x1000, scoped, tag = 'input window, operand 3']
    #allocation10 [shape = 'u8[1048576]{0}', space=vmem, size = 0x100000, scoped, tag = 'input window, operand 4']
    #allocation11 [shape = 's32[2]{0}', space=sflag, size = 0x8, scoped, tag = 'scoped memory for tpu_custom_call.1']
    #allocation12 [shape = 'u8[4096]{0}', space=vmem, size = 0x1000, scoped, tag = 'input window, operand 5']
    #allocation13 [shape = 'u8[1048576]{0}', space=vmem, size = 0x100000, scoped, tag = 'input window, operand 6']
    #allocation14 [shape = 's32[2]{0}', space=sflag, size = 0x8, scoped, tag = 'scoped memory for tpu_custom_call.1']
    #allocation15 [shape = 'u8[4096]{0}', space=vmem, size = 0x1000, scoped, tag = 'input window, operand 7']
    #allocation16 [shape = 'u8[262144]{0}', space=vmem, size = 0x40000, scoped, tag = 'input window, operand 8']
    #allocation17 [shape = 's32[2]{0}', space=sflag, size = 0x8, scoped, tag = 'scoped memory for tpu_custom_call.1']
    #allocation18 [shape = 'u8[1024]{0}', space=vmem, size = 0x400, scoped, tag = 'input window, operand 9']
    #allocation19 [shape = 'u8[8192]{0}', space=vmem, size = 0x2000, scoped, tag = 'output window, operand 0']
    %19 = vsyncpa [#allocation5], 0
    %s20 = scalar_lea.sflag [#allocation5], 1
    %21 = vsyncpa %s20, 0
    %22 = vsyncpa [#allocation8], 0
    %s23 = scalar_lea.sflag [#allocation8], 1
    %24 = vsyncpa %s23, 0
    %25 = vsyncpa [#allocation11], 0
    %s26 = scalar_lea.sflag [#allocation11], 1
    %27 = vsyncpa %s26, 0
    %28 = vsyncpa [#allocation14], 0
    %s29 = scalar_lea.sflag [#allocation14], 1
    %30 = vsyncpa %s29, 0
    %31 = vsyncpa [#allocation17], 0
    %s32 = scalar_lea.sflag [#allocation17], 1
    %33 = vsyncpa %s32, 0
    %34 = vsyncpa [#allocation6], 0
    %s35 = scalar_lea.sflag [#allocation6], 1
    %36 = vsyncpa %s35, 0
    loop: start=0, step=1, limit=5
    $region2: #{tpu_custom_call.1} parent=1 // loop_pre_header
      _
    $region3: #{tpu_custom_call.1} parent=1 // loop_header
      %s38 = sphi 0, %s42
      %p39 = scmp.ge.s32.totalorder %s38, 5
      %s48 = sphi 0, %s50
      %s51 = sphi 0, %s48
      %s52 = sphi 0, %s51
      %s68 = sphi 0, %s52
      %s74 = sphi 0, %s76
      %s77 = sphi 0, %s74
      %s78 = sphi 0, %s77
      %s94 = sphi 0, %s78
      %s100 = sphi 0, %s102
      %s103 = sphi 0, %s100
      %s104 = sphi 0, %s103
      %s120 = sphi 0, %s104
      %s126 = sphi 0, %s128
      %s129 = sphi 0, %s126
      %s130 = sphi 0, %s129
      %s146 = sphi 0, %s130
      %s152 = sphi 0, %s154
      %s155 = sphi 0, %s152
      %s156 = sphi 0, %s155
      %s172 = sphi 0, %s156
      %s178 = sphi 0, %s180
      %s181 = sphi 0, %s178
      %s182 = sphi 0, %s181
      %s198 = sphi 0, %s182
      %s204 = sphi 0, %s206
      %s207 = sphi 0, %s204
      %s208 = sphi 0, %s207
      %s224 = sphi 0, %s208
      %s230 = sphi 0, %s232
      %s233 = sphi 0, %s230
      %s234 = sphi 0, %s233
      %s250 = sphi 0, %s234
      %s256 = sphi 0, %s258
      %s259 = sphi 0, %s256
      %s260 = sphi 0, %s259
      %s276 = sphi 0, %s260
      %s282 = sphi 0, %s284
      %s285 = sphi 0, %s282
      %s286 = sphi 0, %s285
      %s302 = sphi 0, %s286
    $region4: #{tpu_custom_call.1} parent=1 // loop_header_branch
      %41 = sbr.rel (%p39) target = $region8
    $region5: #{tpu_custom_call.1} parent=1 // loop_body
      %s43 = ssub.s32 %s38, 1
      %s44 = ssub.s32 %s38, 2
      %s45 = sadd.s32 %s38, 1
      %s46 = ssub.s32 %s38, %s45
      %p47 = scmp.eq.s32.totalorder %s46, 0
      %s49 = sadd.s32 %s48, 1
      %s50 = scalar_select %p47, %s48, %s49
      %p53 = pneg %p47
      %p54 = scmp.eq.s32.totalorder %s38, 2
      %p55 = por %p53, %p54
      %p56 = scmp.ne.s32.totalorder %s48, %s51
      %p57 = scmp.eq.s32.totalorder %s38, 0
      %p58 = por %p56, %p57
      %p59 = scmp.ne.s32.totalorder %s48, %s51
      %p60 = scmp.eq.s32.totalorder %s43, 2
      %p61 = por %p59, %p60
      %p62 = scmp.ne.s32.totalorder %s51, %s52
      %p63 = scmp.eq.s32.totalorder %s43, 0
      %p64 = por %p62, %p63
      %p65 = scmp.ne.s32.totalorder %s51, %s52
      %p66 = scmp.eq.s32.totalorder %s44, 2
      %p67 = por %p65, %p66
      %p69 = scmp.ne.s32.totalorder %s52, %s68
      %p70 = scmp.eq.s32.totalorder %s44, 0
      %p71 = por %p69, %p70
      %s72 = ssub.s32 %s38, %s45
      %p73 = scmp.eq.s32.totalorder %s72, 0
      %s75 = sadd.s32 %s74, 1
      %s76 = scalar_select %p73, %s74, %s75
      %p79 = pneg %p73
      %p80 = scmp.eq.s32.totalorder %s38, 2
      %p81 = por %p79, %p80
      %p82 = scmp.ne.s32.totalorder %s74, %s77
      %p83 = scmp.eq.s32.totalorder %s38, 0
      %p84 = por %p82, %p83
      %p85 = scmp.ne.s32.totalorder %s74, %s77
      %p86 = scmp.eq.s32.totalorder %s43, 2
      %p87 = por %p85, %p86
      %p88 = scmp.ne.s32.totalorder %s77, %s78
      %p89 = scmp.eq.s32.totalorder %s43, 0
      %p90 = por %p88, %p89
      %p91 = scmp.ne.s32.totalorder %s77, %s78
      %p92 = scmp.eq.s32.totalorder %s44, 2
      %p93 = por %p91, %p92
      %p95 = scmp.ne.s32.totalorder %s78, %s94
      %p96 = scmp.eq.s32.totalorder %s44, 0
      %p97 = por %p95, %p96
      %s98 = ssub.s32 %s38, %s45
      %p99 = scmp.eq.s32.totalorder %s98, 0
      %s101 = sadd.s32 %s100, 1
      %s102 = scalar_select %p99, %s100, %s101
      %p105 = pneg %p99
      %p106 = scmp.eq.s32.totalorder %s38, 2
      %p107 = por %p105, %p106
      %p108 = scmp.ne.s32.totalorder %s100, %s103
      %p109 = scmp.eq.s32.totalorder %s38, 0
      %p110 = por %p108, %p109
      %p111 = scmp.ne.s32.totalorder %s100, %s103
      %p112 = scmp.eq.s32.totalorder %s43, 2
      %p113 = por %p111, %p112
      %p114 = scmp.ne.s32.totalorder %s103, %s104
      %p115 = scmp.eq.s32.totalorder %s43, 0
      %p116 = por %p114, %p115
      %p117 = scmp.ne.s32.totalorder %s103, %s104
      %p118 = scmp.eq.s32.totalorder %s44, 2
      %p119 = por %p117, %p118
      %p121 = scmp.ne.s32.totalorder %s104, %s120
      %p122 = scmp.eq.s32.totalorder %s44, 0
      %p123 = por %p121, %p122
      %s124 = ssub.s32 %s38, %s45
      %p125 = scmp.eq.s32.totalorder %s124, 0
      %s127 = sadd.s32 %s126, 1
      %s128 = scalar_select %p125, %s126, %s127
      %p131 = pneg %p125
      %p132 = scmp.eq.s32.totalorder %s38, 2
      %p133 = por %p131, %p132
      %p134 = scmp.ne.s32.totalorder %s126, %s129
      %p135 = scmp.eq.s32.totalorder %s38, 0
      %p136 = por %p134, %p135
      %p137 = scmp.ne.s32.totalorder %s126, %s129
      %p138 = scmp.eq.s32.totalorder %s43, 2
      %p139 = por %p137, %p138
      %p140 = scmp.ne.s32.totalorder %s129, %s130
      %p141 = scmp.eq.s32.totalorder %s43, 0
      %p142 = por %p140, %p141
      %p143 = scmp.ne.s32.totalorder %s129, %s130
      %p144 = scmp.eq.s32.totalorder %s44, 2
      %p145 = por %p143, %p144
      %p147 = scmp.ne.s32.totalorder %s130, %s146
      %p148 = scmp.eq.s32.totalorder %s44, 0
      %p149 = por %p147, %p148
      %s150 = ssub.s32 %s38, %s45
      %p151 = scmp.eq.s32.totalorder %s150, 0
      %s153 = sadd.s32 %s152, 1
      %s154 = scalar_select %p151, %s152, %s153
      %p157 = pneg %p151
      %p158 = scmp.eq.s32.totalorder %s38, 2
      %p159 = por %p157, %p158
      %p160 = scmp.ne.s32.totalorder %s152, %s155
      %p161 = scmp.eq.s32.totalorder %s38, 0
      %p162 = por %p160, %p161
      %p163 = scmp.ne.s32.totalorder %s152, %s155
      %p164 = scmp.eq.s32.totalorder %s43, 2
      %p165 = por %p163, %p164
      %p166 = scmp.ne.s32.totalorder %s155, %s156
      %p167 = scmp.eq.s32.totalorder %s43, 0
      %p168 = por %p166, %p167
      %p169 = scmp.ne.s32.totalorder %s155, %s156
      %p170 = scmp.eq.s32.totalorder %s44, 2
      %p171 = por %p169, %p170
      %p173 = scmp.ne.s32.totalorder %s156, %s172
      %p174 = scmp.eq.s32.totalorder %s44, 0
      %p175 = por %p173, %p174
      %s176 = ssub.s32 %s38, %s45
      %p177 = scmp.eq.s32.totalorder %s176, 0
      %s179 = sadd.s32 %s178, 1
      %s180 = scalar_select %p177, %s178, %s179
      %p183 = pneg %p177
      %p184 = scmp.eq.s32.totalorder %s38, 2
      %p185 = por %p183, %p184
      %p186 = scmp.ne.s32.totalorder %s178, %s181
      %p187 = scmp.eq.s32.totalorder %s38, 0
      %p188 = por %p186, %p187
      %p189 = scmp.ne.s32.totalorder %s178, %s181
      %p190 = scmp.eq.s32.totalorder %s43, 2
      %p191 = por %p189, %p190
      %p192 = scmp.ne.s32.totalorder %s181, %s182
      %p193 = scmp.eq.s32.totalorder %s43, 0
      %p194 = por %p192, %p193
      %p195 = scmp.ne.s32.totalorder %s181, %s182
      %p196 = scmp.eq.s32.totalorder %s44, 2
      %p197 = por %p195, %p196
      %p199 = scmp.ne.s32.totalorder %s182, %s198
      %p200 = scmp.eq.s32.totalorder %s44, 0
      %p201 = por %p199, %p200
      %s202 = ssub.s32 %s38, %s45
      %p203 = scmp.eq.s32.totalorder %s202, 0
      %s205 = sadd.s32 %s204, 1
      %s206 = scalar_select %p203, %s204, %s205
      %p209 = pneg %p203
      %p210 = scmp.eq.s32.totalorder %s38, 2
      %p211 = por %p209, %p210
      %p212 = scmp.ne.s32.totalorder %s204, %s207
      %p213 = scmp.eq.s32.totalorder %s38, 0
      %p214 = por %p212, %p213
      %p215 = scmp.ne.s32.totalorder %s204, %s207
      %p216 = scmp.eq.s32.totalorder %s43, 2
      %p217 = por %p215, %p216
      %p218 = scmp.ne.s32.totalorder %s207, %s208
      %p219 = scmp.eq.s32.totalorder %s43, 0
      %p220 = por %p218, %p219
      %p221 = scmp.ne.s32.totalorder %s207, %s208
      %p222 = scmp.eq.s32.totalorder %s44, 2
      %p223 = por %p221, %p222
      %p225 = scmp.ne.s32.totalorder %s208, %s224
      %p226 = scmp.eq.s32.totalorder %s44, 0
      %p227 = por %p225, %p226
      %s228 = ssub.s32 %s38, %s45
      %p229 = scmp.eq.s32.totalorder %s228, 0
      %s231 = sadd.s32 %s230, 1
      %s232 = scalar_select %p229, %s230, %s231
      %p235 = pneg %p229
      %p236 = scmp.eq.s32.totalorder %s38, 2
      %p237 = por %p235, %p236
      %p238 = scmp.ne.s32.totalorder %s230, %s233
      %p239 = scmp.eq.s32.totalorder %s38, 0
      %p240 = por %p238, %p239
      %p241 = scmp.ne.s32.totalorder %s230, %s233
      %p242 = scmp.eq.s32.totalorder %s43, 2
      %p243 = por %p241, %p242
      %p244 = scmp.ne.s32.totalorder %s233, %s234
      %p245 = scmp.eq.s32.totalorder %s43, 0
      %p246 = por %p244, %p245
      %p247 = scmp.ne.s32.totalorder %s233, %s234
      %p248 = scmp.eq.s32.totalorder %s44, 2
      %p249 = por %p247, %p248
      %p251 = scmp.ne.s32.totalorder %s234, %s250
      %p252 = scmp.eq.s32.totalorder %s44, 0
      %p253 = por %p251, %p252
      %s254 = ssub.s32 %s38, %s45
      %p255 = scmp.eq.s32.totalorder %s254, 0
      %s257 = sadd.s32 %s256, 1
      %s258 = scalar_select %p255, %s256, %s257
      %p261 = pneg %p255
      %p262 = scmp.eq.s32.totalorder %s38, 2
      %p263 = por %p261, %p262
      %p264 = scmp.ne.s32.totalorder %s256, %s259
      %p265 = scmp.eq.s32.totalorder %s38, 0
      %p266 = por %p264, %p265
      %p267 = scmp.ne.s32.totalorder %s256, %s259
      %p268 = scmp.eq.s32.totalorder %s43, 2
      %p269 = por %p267, %p268
      %p270 = scmp.ne.s32.totalorder %s259, %s260
      %p271 = scmp.eq.s32.totalorder %s43, 0
      %p272 = por %p270, %p271
      %p273 = scmp.ne.s32.totalorder %s259, %s260
      %p274 = scmp.eq.s32.totalorder %s44, 2
      %p275 = por %p273, %p274
      %p277 = scmp.ne.s32.totalorder %s260, %s276
      %p278 = scmp.eq.s32.totalorder %s44, 0
      %p279 = por %p277, %p278
      %s280 = ssub.s32 %s38, %s45
      %p281 = scmp.eq.s32.totalorder %s280, 0
      %s283 = sadd.s32 %s282, 1
      %s284 = scalar_select %p281, %s282, %s283
      %p287 = pneg %p281
      %p288 = scmp.eq.s32.totalorder %s38, 2
      %p289 = por %p287, %p288
      %p290 = scmp.ne.s32.totalorder %s282, %s285
      %p291 = scmp.eq.s32.totalorder %s38, 0
      %p292 = por %p290, %p291
      %p293 = scmp.ne.s32.totalorder %s282, %s285
      %p294 = scmp.eq.s32.totalorder %s43, 2
      %p295 = por %p293, %p294
      %p296 = scmp.ne.s32.totalorder %s285, %s286
      %p297 = scmp.eq.s32.totalorder %s43, 0
      %p298 = por %p296, %p297
      %p299 = scmp.ne.s32.totalorder %s285, %s286
      %p300 = scmp.eq.s32.totalorder %s44, 2
      %p301 = por %p299, %p300
      %p303 = scmp.ne.s32.totalorder %s286, %s302
      %p304 = scmp.eq.s32.totalorder %s44, 0
      %p305 = por %p303, %p304
      %p306 = scmp.le.s32.totalorder 1, %s38
      %p307 = scmp.lt.s32.totalorder %s38, 4
      %p308 = pnand %p306, %p307
      %p309 = pneg %p308
      // Predicated region
      $region9: #{tpu_custom_call.1} parent=5 // pred_check
        _
      $region10: #{tpu_custom_call.1} parent=5 // pred_check_branch
        %311 = sbr.rel (%p308) target = $region12
      $region11: #{tpu_custom_call.1} parent=5 // pred_region
        %s312 = ssub.s32 %s38, 1
      $region12: #{tpu_custom_call.1} parent=5 // pred_fallthru
        _
      %p313 = scmp.lt.s32.totalorder %s38, 3
      // Predicated region
      $region13: #{tpu_custom_call.1} parent=5 // pred_check
        %p314 = pneg %p313
      $region14: #{tpu_custom_call.1} parent=5 // pred_check_branch
        %316 = sbr.rel (%p314) target = $region16
      $region15: #{tpu_custom_call.1} parent=5 // pred_region
        // Predicated region
        $region17: #{tpu_custom_call.1} parent=15 // pred_check
          %p317 = pneg %p58
        $region18: #{tpu_custom_call.1} parent=15 // pred_check_branch
          %319 = sbr.rel (%p317) target = $region20
        $region19: #{tpu_custom_call.1} parent=15 // pred_region
          %s320 = sand.u32 %s48, 1
          %s321 = scalar_lea.sflag [#allocation5], %s320
          %s322 = sand.u32 %s48, 1
          %s323 = smul.addr %s322, 32
          %s324 = scalar_lea.vmem [#allocation4], %s323
          %s326 = ssub.s32 512, 512
          %327 = vsyncadd %s321, %s326
          %s328 = smul.addr %s38, 8
          %s329 = smul.addr %s328, 64
          %s330 = scalar_lea.hbm %s1, %s329
          %s331 = sshll.u32 %s324, 4
          %s332 = int_to_ptr.vmem [resolvable:$true] %s331
          %337 = dma.hbm_to_vmem [thread:$0]  %s330, 512, %s332, %s321, 256, 256, 16
        $region20: #{tpu_custom_call.1} parent=15 // pred_fallthru
          _
        // Predicated region
        $region21: #{tpu_custom_call.1} parent=15 // pred_check
          %p338 = pneg %p84
        $region22: #{tpu_custom_call.1} parent=15 // pred_check_branch
          %340 = sbr.rel (%p338) target = $region24
        $region23: #{tpu_custom_call.1} parent=15 // pred_region
          %s341 = sand.u32 %s38, 1
          %s342 = scalar_lea.sflag [#allocation8], %s341
          %s343 = sand.u32 %s74, 1
          %s344 = smul.addr %s343, 1024
          %s345 = scalar_lea.vmem [#allocation7], %s344
          %s347 = ssub.s32 16384, 16384
          %348 = vsyncadd %s342, %s347
          %s349 = smul.addr %s38, 256
          %s350 = smul.addr %s349, 64
          %s351 = scalar_lea.hbm %s2, %s350
          %s352 = sshll.u32 %s345, 4
          %s353 = int_to_ptr.vmem [resolvable:$true] %s352
          %358 = dma.hbm_to_vmem [thread:$0]  %s351, 16384, %s353, %s342, 256, 256, 16
        $region24: #{tpu_custom_call.1} parent=15 // pred_fallthru
          _
        // Predicated region
        $region25: #{tpu_custom_call.1} parent=15 // pred_check
          %p359 = pneg %p110
        $region26: #{tpu_custom_call.1} parent=15 // pred_check_branch
          %361 = sbr.rel (%p359) target = $region28
        $region27: #{tpu_custom_call.1} parent=15 // pred_region
          %s362 = sand.u32 %s38, 1
          %s363 = scalar_lea.sflag [#allocation8], %s362
          %s364 = sand.u32 %s100, 1
          %s365 = smul.addr %s364, 4
          %s366 = scalar_lea.vmem [#allocation9], %s365
          %s368 = ssub.s32 64, 64
          %369 = vsyncadd %s363, %s368
          %s370 = smul.addr %s38, 4
          %s371 = smul.addr %s370, 16
          %s372 = scalar_lea.hbm %s3, %s371
          %s374 = sshll.u32 %s366, 4
          %s375 = int_to_ptr.vmem [resolvable:$true] %s374
          %377 = dma.hbm_to_vmem [thread:$0]  %s372, 64, %s375, %s363
        $region28: #{tpu_custom_call.1} parent=15 // pred_fallthru
          _
        // Predicated region
        $region29: #{tpu_custom_call.1} parent=15 // pred_check
          %p378 = pneg %p136
        $region30: #{tpu_custom_call.1} parent=15 // pred_check_branch
          %380 = sbr.rel (%p378) target = $region32
        $region31: #{tpu_custom_call.1} parent=15 // pred_region
          %s381 = sand.u32 %s38, 1
          %s382 = scalar_lea.sflag [#allocation11], %s381
          %s383 = sand.u32 %s126, 1
          %s384 = smul.addr %s383, 1024
          %s385 = scalar_lea.vmem [#allocation10], %s384
          %s387 = ssub.s32 16384, 16384
          %388 = vsyncadd %s382, %s387
          %s389 = smul.addr %s38, 256
          %s390 = smul.addr %s389, 64
          %s391 = scalar_lea.hbm %s4, %s390
          %s392 = sshll.u32 %s385, 4
          %s393 = int_to_ptr.vmem [resolvable:$true] %s392
          %398 = dma.hbm_to_vmem [thread:$0]  %s391, 16384, %s393, %s382, 256, 256, 16
        $region32: #{tpu_custom_call.1} parent=15 // pred_fallthru
          _
        // Predicated region
        $region33: #{tpu_custom_call.1} parent=15 // pred_check
          %p399 = pneg %p162
        $region34: #{tpu_custom_call.1} parent=15 // pred_check_branch
          %401 = sbr.rel (%p399) target = $region36
        $region35: #{tpu_custom_call.1} parent=15 // pred_region
          %s402 = sand.u32 %s38, 1
          %s403 = scalar_lea.sflag [#allocation11], %s402
          %s404 = sand.u32 %s152, 1
          %s405 = smul.addr %s404, 4
          %s406 = scalar_lea.vmem [#allocation12], %s405
          %s408 = ssub.s32 64, 64
          %409 = vsyncadd %s403, %s408
          %s410 = smul.addr %s38, 4
          %s411 = smul.addr %s410, 16
          %s412 = scalar_lea.hbm %s5, %s411
          %s414 = sshll.u32 %s406, 4
          %s415 = int_to_ptr.vmem [resolvable:$true] %s414
          %417 = dma.hbm_to_vmem [thread:$0]  %s412, 64, %s415, %s403
        $region36: #{tpu_custom_call.1} parent=15 // pred_fallthru
          _
        // Predicated region
        $region37: #{tpu_custom_call.1} parent=15 // pred_check
          %p418 = pneg %p188
        $region38: #{tpu_custom_call.1} parent=15 // pred_check_branch
          %420 = sbr.rel (%p418) target = $region40
        $region39: #{tpu_custom_call.1} parent=15 // pred_region
          %s421 = sand.u32 %s38, 1
          %s422 = scalar_lea.sflag [#allocation14], %s421
          %s423 = sand.u32 %s178, 1
          %s424 = smul.addr %s423, 1024
          %s425 = scalar_lea.vmem [#allocation13], %s424
          %s427 = ssub.s32 16384, 16384
          %428 = vsyncadd %s422, %s427
          %s429 = smul.addr %s38, 256
          %s430 = smul.addr %s429, 64
          %s431 = scalar_lea.hbm %s6, %s430
          %s432 = sshll.u32 %s425, 4
          %s433 = int_to_ptr.vmem [resolvable:$true] %s432
          %438 = dma.hbm_to_vmem [thread:$0]  %s431, 16384, %s433, %s422, 256, 256, 16
        $region40: #{tpu_custom_call.1} parent=15 // pred_fallthru
          _
        // Predicated region
        $region41: #{tpu_custom_call.1} parent=15 // pred_check
          %p439 = pneg %p214
        $region42: #{tpu_custom_call.1} parent=15 // pred_check_branch
          %441 = sbr.rel (%p439) target = $region44
        $region43: #{tpu_custom_call.1} parent=15 // pred_region
          %s442 = sand.u32 %s38, 1
          %s443 = scalar_lea.sflag [#allocation14], %s442
          %s444 = sand.u32 %s204, 1
          %s445 = smul.addr %s444, 4
          %s446 = scalar_lea.vmem [#allocation15], %s445
          %s448 = ssub.s32 64, 64
          %449 = vsyncadd %s443, %s448
          %s450 = smul.addr %s38, 4
          %s451 = smul.addr %s450, 16
          %s452 = scalar_lea.hbm %s7, %s451
          %s454 = sshll.u32 %s446, 4
          %s455 = int_to_ptr.vmem [resolvable:$true] %s454
          %457 = dma.hbm_to_vmem [thread:$0]  %s452, 64, %s455, %s443
        $region44: #{tpu_custom_call.1} parent=15 // pred_fallthru
          _
        // Predicated region
        $region45: #{tpu_custom_call.1} parent=15 // pred_check
          %p458 = pneg %p240
        $region46: #{tpu_custom_call.1} parent=15 // pred_check_branch
          %460 = sbr.rel (%p458) target = $region48
        $region47: #{tpu_custom_call.1} parent=15 // pred_region
          %s461 = sand.u32 %s38, 1
          %s462 = scalar_lea.sflag [#allocation17], %s461
          %s463 = sand.u32 %s230, 1
          %s464 = smul.addr %s463, 256
          %s465 = scalar_lea.vmem [#allocation16], %s464
          %s467 = ssub.s32 4096, 4096
          %468 = vsyncadd %s462, %s467
          %s469 = smul.addr %s38, 64
          %s470 = smul.addr %s469, 64
          %s471 = scalar_lea.hbm %s8, %s470
          %s472 = sshll.u32 %s465, 4
          %s473 = int_to_ptr.vmem [resolvable:$true] %s472
          %478 = dma.hbm_to_vmem [thread:$0]  %s471, 4096, %s473, %s462, 64, 64, 4
        $region48: #{tpu_custom_call.1} parent=15 // pred_fallthru
          _
        // Predicated region
        $region49: #{tpu_custom_call.1} parent=15 // pred_check
          %p479 = pneg %p266
        $region50: #{tpu_custom_call.1} parent=15 // pred_check_branch
          %481 = sbr.rel (%p479) target = $region52
        $region51: #{tpu_custom_call.1} parent=15 // pred_region
          %s482 = sand.u32 %s38, 1
          %s483 = scalar_lea.sflag [#allocation17], %s482
          %s484 = sand.u32 %s256, 1
          %s485 = scalar_lea.vmem [#allocation18], %s484
          %s487 = ssub.s32 16, 16
          %488 = vsyncadd %s483, %s487
          %s489 = smul.addr %s38, 16
          %s490 = scalar_lea.hbm %s9, %s489
          %s492 = sshll.u32 %s485, 4
          %s493 = int_to_ptr.vmem [resolvable:$true] %s492
          %495 = dma.hbm_to_vmem [thread:$0]  %s490, 16, %s493, %s483
        $region52: #{tpu_custom_call.1} parent=15 // pred_fallthru
          _
      $region16: #{tpu_custom_call.1} parent=5 // pred_fallthru
        _
      %p496 = scmp.le.s32.totalorder 1, %s38
      %p497 = scmp.lt.s32.totalorder %s38, 4
      %p498 = pnand %p496, %p497
      %p499 = pneg %p498
      // Predicated region
      $region53: #{tpu_custom_call.1} parent=5 // pred_check
        _
      $region54: #{tpu_custom_call.1} parent=5 // pred_check_branch
        %501 = sbr.rel (%p498) target = $region56
      $region55: #{tpu_custom_call.1} parent=5 // pred_region
        %s502 = ssub.s32 %s38, 1
        %s503 = sand.u32 %s51, 1
        %s504 = scalar_lea.sflag [#allocation5], %s503
        %s505 = sand.u32 %s51, 1
        %s506 = smul.addr %s505, 32
        %s507 = scalar_lea.vmem [#allocation4], %s506
        // Predicated region
        $region57: #{tpu_custom_call.1} parent=55 // pred_check
          %p508 = pneg %p64
        $region58: #{tpu_custom_call.1} parent=55 // pred_check_branch
          %510 = sbr.rel (%p508) target = $region60
        $region59: #{tpu_custom_call.1} parent=55 // pred_region
          %511 = dma.done %s504, 512
        $region60: #{tpu_custom_call.1} parent=55 // pred_fallthru
          _
        %s512 = sand.u32 %s43, 1
        %s513 = scalar_lea.sflag [#allocation8], %s512
        %s514 = sand.u32 %s77, 1
        %s515 = smul.addr %s514, 1024
        %s516 = scalar_lea.vmem [#allocation7], %s515
        // Predicated region
        $region61: #{tpu_custom_call.1} parent=55 // pred_check
          %p517 = pneg %p90
        $region62: #{tpu_custom_call.1} parent=55 // pred_check_branch
          %519 = sbr.rel (%p517) target = $region64
        $region63: #{tpu_custom_call.1} parent=55 // pred_region
          %520 = dma.done %s513, 16384
        $region64: #{tpu_custom_call.1} parent=55 // pred_fallthru
          _
        %s521 = sand.u32 %s43, 1
        %s522 = scalar_lea.sflag [#allocation8], %s521
        %s523 = sand.u32 %s103, 1
        %s524 = smul.addr %s523, 4
        %s525 = scalar_lea.vmem [#allocation9], %s524
        // Predicated region
        $region65: #{tpu_custom_call.1} parent=55 // pred_check
          %p526 = pneg %p116
        $region66: #{tpu_custom_call.1} parent=55 // pred_check_branch
          %528 = sbr.rel (%p526) target = $region68
        $region67: #{tpu_custom_call.1} parent=55 // pred_region
          %529 = dma.done %s522, 64
        $region68: #{tpu_custom_call.1} parent=55 // pred_fallthru
          _
        %s530 = sand.u32 %s43, 1
        %s531 = scalar_lea.sflag [#allocation11], %s530
        %s532 = sand.u32 %s129, 1
        %s533 = smul.addr %s532, 1024
        %s534 = scalar_lea.vmem [#allocation10], %s533
        // Predicated region
        $region69: #{tpu_custom_call.1} parent=55 // pred_check
          %p535 = pneg %p142
        $region70: #{tpu_custom_call.1} parent=55 // pred_check_branch
          %537 = sbr.rel (%p535) target = $region72
        $region71: #{tpu_custom_call.1} parent=55 // pred_region
          %538 = dma.done %s531, 16384
        $region72: #{tpu_custom_call.1} parent=55 // pred_fallthru
          _
        %s539 = sand.u32 %s43, 1
        %s540 = scalar_lea.sflag [#allocation11], %s539
        %s541 = sand.u32 %s155, 1
        %s542 = smul.addr %s541, 4
        %s543 = scalar_lea.vmem [#allocation12], %s542
        // Predicated region
        $region73: #{tpu_custom_call.1} parent=55 // pred_check
          %p544 = pneg %p168
        $region74: #{tpu_custom_call.1} parent=55 // pred_check_branch
          %546 = sbr.rel (%p544) target = $region76
        $region75: #{tpu_custom_call.1} parent=55 // pred_region
          %547 = dma.done %s540, 64
        $region76: #{tpu_custom_call.1} parent=55 // pred_fallthru
          _
        %s548 = sand.u32 %s43, 1
        %s549 = scalar_lea.sflag [#allocation14], %s548
        %s550 = sand.u32 %s181, 1
        %s551 = smul.addr %s550, 1024
        %s552 = scalar_lea.vmem [#allocation13], %s551
        // Predicated region
        $region77: #{tpu_custom_call.1} parent=55 // pred_check
          %p553 = pneg %p194
        $region78: #{tpu_custom_call.1} parent=55 // pred_check_branch
          %555 = sbr.rel (%p553) target = $region80
        $region79: #{tpu_custom_call.1} parent=55 // pred_region
          %556 = dma.done %s549, 16384
        $region80: #{tpu_custom_call.1} parent=55 // pred_fallthru
          _
        %s557 = sand.u32 %s43, 1
        %s558 = scalar_lea.sflag [#allocation14], %s557
        %s559 = sand.u32 %s207, 1
        %s560 = smul.addr %s559, 4
        %s561 = scalar_lea.vmem [#allocation15], %s560
        // Predicated region
        $region81: #{tpu_custom_call.1} parent=55 // pred_check
          %p562 = pneg %p220
        $region82: #{tpu_custom_call.1} parent=55 // pred_check_branch
          %564 = sbr.rel (%p562) target = $region84
        $region83: #{tpu_custom_call.1} parent=55 // pred_region
          %565 = dma.done %s558, 64
        $region84: #{tpu_custom_call.1} parent=55 // pred_fallthru
          _
        %s566 = sand.u32 %s43, 1
        %s567 = scalar_lea.sflag [#allocation17], %s566
        %s568 = sand.u32 %s233, 1
        %s569 = smul.addr %s568, 256
        %s570 = scalar_lea.vmem [#allocation16], %s569
        // Predicated region
        $region85: #{tpu_custom_call.1} parent=55 // pred_check
          %p571 = pneg %p246
        $region86: #{tpu_custom_call.1} parent=55 // pred_check_branch
          %573 = sbr.rel (%p571) target = $region88
        $region87: #{tpu_custom_call.1} parent=55 // pred_region
          %574 = dma.done %s567, 4096
        $region88: #{tpu_custom_call.1} parent=55 // pred_fallthru
          _
        %s575 = sand.u32 %s43, 1
        %s576 = scalar_lea.sflag [#allocation17], %s575
        %s577 = sand.u32 %s259, 1
        %s578 = scalar_lea.vmem [#allocation18], %s577
        // Predicated region
        $region89: #{tpu_custom_call.1} parent=55 // pred_check
          %p579 = pneg %p272
        $region90: #{tpu_custom_call.1} parent=55 // pred_check_branch
          %581 = sbr.rel (%p579) target = $region92
        $region91: #{tpu_custom_call.1} parent=55 // pred_region
          %582 = dma.done %s576, 16
        $region92: #{tpu_custom_call.1} parent=55 // pred_fallthru
          _
        %s583 = sand.u32 %s51, 1
        %s584 = scalar_lea.sflag [#allocation5], %s583
        %s585 = sand.u32 %s51, 1
        %s586 = smul.addr %s585, 32
        %s587 = scalar_lea.vmem [#allocation4], %s586
        %p588 = pneg %p64
        %p589 = pneg %p61
        %s590 = sand.u32 %s43, 1
        %s591 = scalar_lea.sflag [#allocation8], %s590
        %s592 = sand.u32 %s77, 1
        %s593 = smul.addr %s592, 1024
        %s594 = scalar_lea.vmem [#allocation7], %s593
        %p595 = pneg %p90
        %p596 = pneg %p87
        %s597 = sand.u32 %s43, 1
        %s598 = scalar_lea.sflag [#allocation8], %s597
        %s599 = sand.u32 %s103, 1
        %s600 = smul.addr %s599, 4
        %s601 = scalar_lea.vmem [#allocation9], %s600
        %p602 = pneg %p116
        %p603 = pneg %p113
        %s604 = sand.u32 %s43, 1
        %s605 = scalar_lea.sflag [#allocation11], %s604
        %s606 = sand.u32 %s129, 1
        %s607 = smul.addr %s606, 1024
        %s608 = scalar_lea.vmem [#allocation10], %s607
        %p609 = pneg %p142
        %p610 = pneg %p139
        %s611 = sand.u32 %s43, 1
        %s612 = scalar_lea.sflag [#allocation11], %s611
        %s613 = sand.u32 %s155, 1
        %s614 = smul.addr %s613, 4
        %s615 = scalar_lea.vmem [#allocation12], %s614
        %p616 = pneg %p168
        %p617 = pneg %p165
        %s618 = sand.u32 %s43, 1
        %s619 = scalar_lea.sflag [#allocation14], %s618
        %s620 = sand.u32 %s181, 1
        %s621 = smul.addr %s620, 1024
        %s622 = scalar_lea.vmem [#allocation13], %s621
        %p623 = pneg %p194
        %p624 = pneg %p191
        %s625 = sand.u32 %s43, 1
        %s626 = scalar_lea.sflag [#allocation14], %s625
        %s627 = sand.u32 %s207, 1
        %s628 = smul.addr %s627, 4
        %s629 = scalar_lea.vmem [#allocation15], %s628
        %p630 = pneg %p220
        %p631 = pneg %p217
        %s632 = sand.u32 %s43, 1
        %s633 = scalar_lea.sflag [#allocation17], %s632
        %s634 = sand.u32 %s233, 1
        %s635 = smul.addr %s634, 256
        %s636 = scalar_lea.vmem [#allocation16], %s635
        %p637 = pneg %p246
        %p638 = pneg %p243
        %s639 = sand.u32 %s43, 1
        %s640 = scalar_lea.sflag [#allocation17], %s639
        %s641 = sand.u32 %s259, 1
        %s642 = scalar_lea.vmem [#allocation18], %s641
        %p643 = pneg %p272
        %p644 = pneg %p269
        %p645 = pneg %p298
        %p646 = pneg %p295
        %s647 = sand.u32 %s285, 1
        %s648 = scalar_lea.sflag [#allocation6], %s647
        %s649 = sand.u32 %s285, 1
        %s650 = smul.addr %s649, 8
        %s651 = scalar_lea.vmem [#allocation19], %s650
        %s653 = sld [smem:[#allocation3 + %s43]]
        %s654 = scvt.s32.f32 %s653
        %v655 = vld [vmem:[%s507] sm:$0xff]
        %v656 = vld [vmem:[%s507 + $0x8] sm:$0xff]
        %v657 = vld [vmem:[%s507 + $0x10] sm:$0xff]
        %v658 = vld [vmem:[%s507 + $0x18] sm:$0xff]
        %v659 = vmul.f32 %v655, %v655
        %v660 = vmul.f32 %v656, %v656
        %v661 = vmul.f32 %v657, %v657
        %v662 = vmul.f32 %v658, %v658
        %v667 = vcombine.high %v659, %v659
        %v668 = vcombine.high %v660, %v660
        %v669 = vcombine.high %v661, %v661
        %v670 = vcombine.high %v662, %v662
        %vm675 = vcmask 1043456
        %v676 = vsel %vm675, %v659, 0.0
        %v677 = vrot.slane %v676, 4
        %v678 = vadd.f32 %v676, %v677
        %v679 = vrot.slane %v678, 2
        %v680 = vadd.f32 %v678, %v679
        %v681 = vrot.slane %v680, 1
        %v682 = vadd.f32 %v680, %v681
        %v683 = vsel %vm675, %v667, 0.0
        %v684 = vrot.slane %v683, 4
        %v685 = vadd.f32 %v683, %v684
        %v686 = vrot.slane %v685, 2
        %v687 = vadd.f32 %v685, %v686
        %v688 = vrot.slane %v687, 1
        %v689 = vadd.f32 %v687, %v688
        %v690 = vsel %vm675, %v660, 0.0
        %v691 = vrot.slane %v690, 4
        %v692 = vadd.f32 %v690, %v691
        %v693 = vrot.slane %v692, 2
        %v694 = vadd.f32 %v692, %v693
        %v695 = vrot.slane %v694, 1
        %v696 = vadd.f32 %v694, %v695
        %v697 = vsel %vm675, %v668, 0.0
        %v698 = vrot.slane %v697, 4
        %v699 = vadd.f32 %v697, %v698
        %v700 = vrot.slane %v699, 2
        %v701 = vadd.f32 %v699, %v700
        %v702 = vrot.slane %v701, 1
        %v703 = vadd.f32 %v701, %v702
        %v704 = vsel %vm675, %v661, 0.0
        %v705 = vrot.slane %v704, 4
        %v706 = vadd.f32 %v704, %v705
        %v707 = vrot.slane %v706, 2
        %v708 = vadd.f32 %v706, %v707
        %v709 = vrot.slane %v708, 1
        %v710 = vadd.f32 %v708, %v709
        %v711 = vsel %vm675, %v669, 0.0
        %v712 = vrot.slane %v711, 4
        %v713 = vadd.f32 %v711, %v712
        %v714 = vrot.slane %v713, 2
        %v715 = vadd.f32 %v713, %v714
        %v716 = vrot.slane %v715, 1
        %v717 = vadd.f32 %v715, %v716
        %v718 = vsel %vm675, %v662, 0.0
        %v719 = vrot.slane %v718, 4
        %v720 = vadd.f32 %v718, %v719
        %v721 = vrot.slane %v720, 2
        %v722 = vadd.f32 %v720, %v721
        %v723 = vrot.slane %v722, 1
        %v724 = vadd.f32 %v722, %v723
        %v725 = vsel %vm675, %v670, 0.0
        %v726 = vrot.slane %v725, 4
        %v727 = vadd.f32 %v725, %v726
        %v728 = vrot.slane %v727, 2
        %v729 = vadd.f32 %v727, %v728
        %v730 = vrot.slane %v729, 1
        %v731 = vadd.f32 %v729, %v730
        %v732 = vstv %s654
        %v733 = vrcp.pop %v732
        %v734 = vmul.f32 %v682, %v733
        %v735 = vmul.f32 %v689, %v733
        %v736 = vmul.f32 %v696, %v733
        %v737 = vmul.f32 %v703, %v733
        %v738 = vmul.f32 %v710, %v733
        %v739 = vmul.f32 %v717, %v733
        %v740 = vmul.f32 %v724, %v733
        %v741 = vmul.f32 %v731, %v733
        %v742 = vadd.f32 %v734, 1e-08
        %v743 = vadd.f32 %v735, 1e-08
        %v744 = vadd.f32 %v736, 1e-08
        %v745 = vadd.f32 %v737, 1e-08
        %v746 = vadd.f32 %v738, 1e-08
        %v747 = vadd.f32 %v739, 1e-08
        %v748 = vadd.f32 %v740, 1e-08
        %v749 = vadd.f32 %v741, 1e-08
        %v750 = vrsqrt.pop %v742
        %v751 = vrsqrt.pop %v743
        %v752 = vrsqrt.pop %v744
        %v753 = vrsqrt.pop %v745
        %v754 = vrsqrt.pop %v746
        %v755 = vrsqrt.pop %v747
        %v756 = vrsqrt.pop %v748
        %v757 = vrsqrt.pop %v749
        %v766 = vcombine.low %v750, %v751
        %v767 = vcombine.low %v752, %v753
        %v768 = vcombine.low %v754, %v755
        %v769 = vcombine.low %v756, %v757
        %v774 = vmul.f32 %v655, %v766
        %v775 = vmul.f32 %v656, %v767
        %v776 = vmul.f32 %v657, %v768
        %v777 = vmul.f32 %v658, %v769
        %v782 = vcombine.low %v774, %v776
        %v783 = vcombine.high %v774, %v776
        %v784 = vcombine.low %v775, %v777
        %v785 = vcombine.high %v775, %v777
        %v790 = vpack.c.bf16 %v782, %v782
        %v791 = vpack.c.bf16 %v783, %v783
        %v792 = vpack.c.bf16 %v784, %v784
        %v793 = vpack.c.bf16 %v785, %v785
        %v794 = vld [vmem:[%s516] sm:$0xff]
        %v795 = vld [vmem:[%s516 + $0x8] sm:$0xff]
        %v796 = vld [vmem:[%s516 + $0x10] sm:$0xff]
        %v797 = vld [vmem:[%s516 + $0x18] sm:$0xff]
        %v798 = vld [vmem:[%s516 + $0x20] sm:$0xff]
        %v799 = vld [vmem:[%s516 + $0x28] sm:$0xff]
        %v800 = vld [vmem:[%s516 + $0x30] sm:$0xff]
        %v801 = vld [vmem:[%s516 + $0x38] sm:$0xff]
        %v802 = vld [vmem:[%s516 + $0x40] sm:$0xff]
        %v803 = vld [vmem:[%s516 + $0x48] sm:$0xff]
        %v804 = vld [vmem:[%s516 + $0x50] sm:$0xff]
        %v805 = vld [vmem:[%s516 + $0x58] sm:$0xff]
        %v806 = vld [vmem:[%s516 + $0x60] sm:$0xff]
        %v807 = vld [vmem:[%s516 + $0x68] sm:$0xff]
        %v808 = vld [vmem:[%s516 + $0x70] sm:$0xff]
        %v809 = vld [vmem:[%s516 + $0x78] sm:$0xff]
        %v810 = vld [vmem:[%s516 + $0x80] sm:$0xff]
        %v811 = vld [vmem:[%s516 + $0x88] sm:$0xff]
        %v812 = vld [vmem:[%s516 + $0x90] sm:$0xff]
        %v813 = vld [vmem:[%s516 + $0x98] sm:$0xff]
        %v814 = vld [vmem:[%s516 + $0xa0] sm:$0xff]
        %v815 = vld [vmem:[%s516 + $0xa8] sm:$0xff]
        %v816 = vld [vmem:[%s516 + $0xb0] sm:$0xff]
        %v817 = vld [vmem:[%s516 + $0xb8] sm:$0xff]
        %v818 = vld [vmem:[%s516 + $0xc0] sm:$0xff]
        %v819 = vld [vmem:[%s516 + $0xc8] sm:$0xff]
        %v820 = vld [vmem:[%s516 + $0xd0] sm:$0xff]
        %v821 = vld [vmem:[%s516 + $0xd8] sm:$0xff]
        %v822 = vld [vmem:[%s516 + $0xe0] sm:$0xff]
        %v823 = vld [vmem:[%s516 + $0xe8] sm:$0xff]
        %v824 = vld [vmem:[%s516 + $0xf0] sm:$0xff]
        %v825 = vld [vmem:[%s516 + $0xf8] sm:$0xff]
        %v826 = vld [vmem:[%s516 + $0x100] sm:$0xff]
        %v827 = vld [vmem:[%s516 + $0x108] sm:$0xff]
        %v828 = vld [vmem:[%s516 + $0x110] sm:$0xff]
        %v829 = vld [vmem:[%s516 + $0x118] sm:$0xff]
        %v830 = vld [vmem:[%s516 + $0x120] sm:$0xff]
        %v831 = vld [vmem:[%s516 + $0x128] sm:$0xff]
        %v832 = vld [vmem:[%s516 + $0x130] sm:$0xff]
        %v833 = vld [vmem:[%s516 + $0x138] sm:$0xff]
        %v834 = vld [vmem:[%s516 + $0x140] sm:$0xff]
        %v835 = vld [vmem:[%s516 + $0x148] sm:$0xff]
        %v836 = vld [vmem:[%s516 + $0x150] sm:$0xff]
        %v837 = vld [vmem:[%s516 + $0x158] sm:$0xff]
        %v838 = vld [vmem:[%s516 + $0x160] sm:$0xff]
        %v839 = vld [vmem:[%s516 + $0x168] sm:$0xff]
        %v840 = vld [vmem:[%s516 + $0x170] sm:$0xff]
        %v841 = vld [vmem:[%s516 + $0x178] sm:$0xff]
        %v842 = vld [vmem:[%s516 + $0x180] sm:$0xff]
        %v843 = vld [vmem:[%s516 + $0x188] sm:$0xff]
        %v844 = vld [vmem:[%s516 + $0x190] sm:$0xff]
        %v845 = vld [vmem:[%s516 + $0x198] sm:$0xff]
        %v846 = vld [vmem:[%s516 + $0x1a0] sm:$0xff]
        %v847 = vld [vmem:[%s516 + $0x1a8] sm:$0xff]
        %v848 = vld [vmem:[%s516 + $0x1b0] sm:$0xff]
        %v849 = vld [vmem:[%s516 + $0x1b8] sm:$0xff]
        %v850 = vld [vmem:[%s516 + $0x1c0] sm:$0xff]
        %v851 = vld [vmem:[%s516 + $0x1c8] sm:$0xff]
        %v852 = vld [vmem:[%s516 + $0x1d0] sm:$0xff]
        %v853 = vld [vmem:[%s516 + $0x1d8] sm:$0xff]
        %v854 = vld [vmem:[%s516 + $0x1e0] sm:$0xff]
        %v855 = vld [vmem:[%s516 + $0x1e8] sm:$0xff]
        %v856 = vld [vmem:[%s516 + $0x1f0] sm:$0xff]
        %v857 = vld [vmem:[%s516 + $0x1f8] sm:$0xff]
        %v858 = vld [vmem:[%s516 + $0x200] sm:$0xff]
        %v859 = vld [vmem:[%s516 + $0x208] sm:$0xff]
        %v860 = vld [vmem:[%s516 + $0x210] sm:$0xff]
        %v861 = vld [vmem:[%s516 + $0x218] sm:$0xff]
        %v862 = vld [vmem:[%s516 + $0x220] sm:$0xff]
        %v863 = vld [vmem:[%s516 + $0x228] sm:$0xff]
        %v864 = vld [vmem:[%s516 + $0x230] sm:$0xff]
        %v865 = vld [vmem:[%s516 + $0x238] sm:$0xff]
        %v866 = vld [vmem:[%s516 + $0x240] sm:$0xff]
        %v867 = vld [vmem:[%s516 + $0x248] sm:$0xff]
        %v868 = vld [vmem:[%s516 + $0x250] sm:$0xff]
        %v869 = vld [vmem:[%s516 + $0x258] sm:$0xff]
        %v870 = vld [vmem:[%s516 + $0x260] sm:$0xff]
        %v871 = vld [vmem:[%s516 + $0x268] sm:$0xff]
        %v872 = vld [vmem:[%s516 + $0x270] sm:$0xff]
        %v873 = vld [vmem:[%s516 + $0x278] sm:$0xff]
        %v874 = vld [vmem:[%s516 + $0x280] sm:$0xff]
        %v875 = vld [vmem:[%s516 + $0x288] sm:$0xff]
        %v876 = vld [vmem:[%s516 + $0x290] sm:$0xff]
        %v877 = vld [vmem:[%s516 + $0x298] sm:$0xff]
        %v878 = vld [vmem:[%s516 + $0x2a0] sm:$0xff]
        %v879 = vld [vmem:[%s516 + $0x2a8] sm:$0xff]
        %v880 = vld [vmem:[%s516 + $0x2b0] sm:$0xff]
        %v881 = vld [vmem:[%s516 + $0x2b8] sm:$0xff]
        %v882 = vld [vmem:[%s516 + $0x2c0] sm:$0xff]
        %v883 = vld [vmem:[%s516 + $0x2c8] sm:$0xff]
        %v884 = vld [vmem:[%s516 + $0x2d0] sm:$0xff]
        %v885 = vld [vmem:[%s516 + $0x2d8] sm:$0xff]
        %v886 = vld [vmem:[%s516 + $0x2e0] sm:$0xff]
        %v887 = vld [vmem:[%s516 + $0x2e8] sm:$0xff]
        %v888 = vld [vmem:[%s516 + $0x2f0] sm:$0xff]
        %v889 = vld [vmem:[%s516 + $0x2f8] sm:$0xff]
        %v890 = vld [vmem:[%s516 + $0x300] sm:$0xff]
        %v891 = vld [vmem:[%s516 + $0x308] sm:$0xff]
        %v892 = vld [vmem:[%s516 + $0x310] sm:$0xff]
        %v893 = vld [vmem:[%s516 + $0x318] sm:$0xff]
        %v894 = vld [vmem:[%s516 + $0x320] sm:$0xff]
        %v895 = vld [vmem:[%s516 + $0x328] sm:$0xff]
        %v896 = vld [vmem:[%s516 + $0x330] sm:$0xff]
        %v897 = vld [vmem:[%s516 + $0x338] sm:$0xff]
        %v898 = vld [vmem:[%s516 + $0x340] sm:$0xff]
        %v899 = vld [vmem:[%s516 + $0x348] sm:$0xff]
        %v900 = vld [vmem:[%s516 + $0x350] sm:$0xff]
        %v901 = vld [vmem:[%s516 + $0x358] sm:$0xff]
        %v902 = vld [vmem:[%s516 + $0x360] sm:$0xff]
        %v903 = vld [vmem:[%s516 + $0x368] sm:$0xff]
        %v904 = vld [vmem:[%s516 + $0x370] sm:$0xff]
        %v905 = vld [vmem:[%s516 + $0x378] sm:$0xff]
        %v906 = vld [vmem:[%s516 + $0x380] sm:$0xff]
        %v907 = vld [vmem:[%s516 + $0x388] sm:$0xff]
        %v908 = vld [vmem:[%s516 + $0x390] sm:$0xff]
        %v909 = vld [vmem:[%s516 + $0x398] sm:$0xff]
        %v910 = vld [vmem:[%s516 + $0x3a0] sm:$0xff]
        %v911 = vld [vmem:[%s516 + $0x3a8] sm:$0xff]
        %v912 = vld [vmem:[%s516 + $0x3b0] sm:$0xff]
        %v913 = vld [vmem:[%s516 + $0x3b8] sm:$0xff]
        %v914 = vld [vmem:[%s516 + $0x3c0] sm:$0xff]
        %v915 = vld [vmem:[%s516 + $0x3c8] sm:$0xff]
        %v916 = vld [vmem:[%s516 + $0x3d0] sm:$0xff]
        %v917 = vld [vmem:[%s516 + $0x3d8] sm:$0xff]
        %v918 = vld [vmem:[%s516 + $0x3e0] sm:$0xff]
        %v919 = vld [vmem:[%s516 + $0x3e8] sm:$0xff]
        %v920 = vld [vmem:[%s516 + $0x3f0] sm:$0xff]
        %v921 = vld [vmem:[%s516 + $0x3f8] sm:$0xff]
        %v922 = vld [vmem:[%s525] sm:$0xf]
        %v924 = vlaneseq
        %v925 = vshrl.u32 %v924, 7
        %v926 = vsub.s32 0, %v925
        %v927 = vrot.slane %v922, %v926
        %v928 = vlaneseq
        %v929 = vshrl.u32 %v928, 7
        %v930 = vsub.s32 1, %v929
        %v931 = vrot.slane %v922, %v930
        %v932 = vlaneseq
        %v933 = vshrl.u32 %v932, 7
        %v934 = vsub.s32 2, %v933
        %v935 = vrot.slane %v922, %v934
        %v936 = vlaneseq
        %v937 = vshrl.u32 %v936, 7
        %v938 = vsub.s32 3, %v937
        %v939 = vrot.slane %v922, %v938
        %v1072 = vunpack.c.l.b16 %v794
        %v1073 = vunpack.c.h.b16 %v794
        %v1074 = vunpack.c.l.b16 %v795
        %v1075 = vunpack.c.h.b16 %v795
        %v1076 = vunpack.c.l.b16 %v796
        %v1077 = vunpack.c.h.b16 %v796
        %v1078 = vunpack.c.l.b16 %v797
        %v1079 = vunpack.c.h.b16 %v797
        %v1080 = vunpack.c.l.b16 %v798
        %v1081 = vunpack.c.h.b16 %v798
        %v1082 = vunpack.c.l.b16 %v799
        %v1083 = vunpack.c.h.b16 %v799
        %v1084 = vunpack.c.l.b16 %v800
        %v1085 = vunpack.c.h.b16 %v800
        %v1086 = vunpack.c.l.b16 %v801
        %v1087 = vunpack.c.h.b16 %v801
        %v1088 = vunpack.c.l.b16 %v802
        %v1089 = vunpack.c.h.b16 %v802
        %v1090 = vunpack.c.l.b16 %v803
        %v1091 = vunpack.c.h.b16 %v803
        %v1092 = vunpack.c.l.b16 %v804
        %v1093 = vunpack.c.h.b16 %v804
        %v1094 = vunpack.c.l.b16 %v805
        %v1095 = vunpack.c.h.b16 %v805
        %v1096 = vunpack.c.l.b16 %v806
        %v1097 = vunpack.c.h.b16 %v806
        %v1098 = vunpack.c.l.b16 %v807
        %v1099 = vunpack.c.h.b16 %v807
        %v1100 = vunpack.c.l.b16 %v808
        %v1101 = vunpack.c.h.b16 %v808
        %v1102 = vunpack.c.l.b16 %v809
        %v1103 = vunpack.c.h.b16 %v809
        %v1104 = vunpack.c.l.b16 %v810
        %v1105 = vunpack.c.h.b16 %v810
        %v1106 = vunpack.c.l.b16 %v811
        %v1107 = vunpack.c.h.b16 %v811
        %v1108 = vunpack.c.l.b16 %v812
        %v1109 = vunpack.c.h.b16 %v812
        %v1110 = vunpack.c.l.b16 %v813
        %v1111 = vunpack.c.h.b16 %v813
        %v1112 = vunpack.c.l.b16 %v814
        %v1113 = vunpack.c.h.b16 %v814
        %v1114 = vunpack.c.l.b16 %v815
        %v1115 = vunpack.c.h.b16 %v815
        %v1116 = vunpack.c.l.b16 %v816
        %v1117 = vunpack.c.h.b16 %v816
        %v1118 = vunpack.c.l.b16 %v817
        %v1119 = vunpack.c.h.b16 %v817
        %v1120 = vunpack.c.l.b16 %v818
        %v1121 = vunpack.c.h.b16 %v818
        %v1122 = vunpack.c.l.b16 %v819
        %v1123 = vunpack.c.h.b16 %v819
        %v1124 = vunpack.c.l.b16 %v820
        %v1125 = vunpack.c.h.b16 %v820
        %v1126 = vunpack.c.l.b16 %v821
        %v1127 = vunpack.c.h.b16 %v821
        %v1128 = vunpack.c.l.b16 %v822
        %v1129 = vunpack.c.h.b16 %v822
        %v1130 = vunpack.c.l.b16 %v823
        %v1131 = vunpack.c.h.b16 %v823
        %v1132 = vunpack.c.l.b16 %v824
        %v1133 = vunpack.c.h.b16 %v824
        %v1134 = vunpack.c.l.b16 %v825
        %v1135 = vunpack.c.h.b16 %v825
        %v1136 = vunpack.c.l.b16 %v826
        %v1137 = vunpack.c.h.b16 %v826
        %v1138 = vunpack.c.l.b16 %v827
        %v1139 = vunpack.c.h.b16 %v827
        %v1140 = vunpack.c.l.b16 %v828
        %v1141 = vunpack.c.h.b16 %v828
        %v1142 = vunpack.c.l.b16 %v829
        %v1143 = vunpack.c.h.b16 %v829
        %v1144 = vunpack.c.l.b16 %v830
        %v1145 = vunpack.c.h.b16 %v830
        %v1146 = vunpack.c.l.b16 %v831
        %v1147 = vunpack.c.h.b16 %v831
        %v1148 = vunpack.c.l.b16 %v832
        %v1149 = vunpack.c.h.b16 %v832
        %v1150 = vunpack.c.l.b16 %v833
        %v1151 = vunpack.c.h.b16 %v833
        %v1152 = vunpack.c.l.b16 %v834
        %v1153 = vunpack.c.h.b16 %v834
        %v1154 = vunpack.c.l.b16 %v835
        %v1155 = vunpack.c.h.b16 %v835
        %v1156 = vunpack.c.l.b16 %v836
        %v1157 = vunpack.c.h.b16 %v836
        %v1158 = vunpack.c.l.b16 %v837
        %v1159 = vunpack.c.h.b16 %v837
        %v1160 = vunpack.c.l.b16 %v838
        %v1161 = vunpack.c.h.b16 %v838
        %v1162 = vunpack.c.l.b16 %v839
        %v1163 = vunpack.c.h.b16 %v839
        %v1164 = vunpack.c.l.b16 %v840
        %v1165 = vunpack.c.h.b16 %v840
        %v1166 = vunpack.c.l.b16 %v841
        %v1167 = vunpack.c.h.b16 %v841
        %v1168 = vunpack.c.l.b16 %v842
        %v1169 = vunpack.c.h.b16 %v842
        %v1170 = vunpack.c.l.b16 %v843
        %v1171 = vunpack.c.h.b16 %v843
        %v1172 = vunpack.c.l.b16 %v844
        %v1173 = vunpack.c.h.b16 %v844
        %v1174 = vunpack.c.l.b16 %v845
        %v1175 = vunpack.c.h.b16 %v845
        %v1176 = vunpack.c.l.b16 %v846
        %v1177 = vunpack.c.h.b16 %v846
        %v1178 = vunpack.c.l.b16 %v847
        %v1179 = vunpack.c.h.b16 %v847
        %v1180 = vunpack.c.l.b16 %v848
        %v1181 = vunpack.c.h.b16 %v848
        %v1182 = vunpack.c.l.b16 %v849
        %v1183 = vunpack.c.h.b16 %v849
        %v1184 = vunpack.c.l.b16 %v850
        %v1185 = vunpack.c.h.b16 %v850
        %v1186 = vunpack.c.l.b16 %v851
        %v1187 = vunpack.c.h.b16 %v851
        %v1188 = vunpack.c.l.b16 %v852
        %v1189 = vunpack.c.h.b16 %v852
        %v1190 = vunpack.c.l.b16 %v853
        %v1191 = vunpack.c.h.b16 %v853
        %v1192 = vunpack.c.l.b16 %v854
        %v1193 = vunpack.c.h.b16 %v854
        %v1194 = vunpack.c.l.b16 %v855
        %v1195 = vunpack.c.h.b16 %v855
        %v1196 = vunpack.c.l.b16 %v856
        %v1197 = vunpack.c.h.b16 %v856
        %v1198 = vunpack.c.l.b16 %v857
        %v1199 = vunpack.c.h.b16 %v857
        %v1200 = vunpack.c.l.b16 %v858
        %v1201 = vunpack.c.h.b16 %v858
        %v1202 = vunpack.c.l.b16 %v859
        %v1203 = vunpack.c.h.b16 %v859
        %v1204 = vunpack.c.l.b16 %v860
        %v1205 = vunpack.c.h.b16 %v860
        %v1206 = vunpack.c.l.b16 %v861
        %v1207 = vunpack.c.h.b16 %v861
        %v1208 = vunpack.c.l.b16 %v862
        %v1209 = vunpack.c.h.b16 %v862
        %v1210 = vunpack.c.l.b16 %v863
        %v1211 = vunpack.c.h.b16 %v863
        %v1212 = vunpack.c.l.b16 %v864
        %v1213 = vunpack.c.h.b16 %v864
        %v1214 = vunpack.c.l.b16 %v865
        %v1215 = vunpack.c.h.b16 %v865
        %v1216 = vunpack.c.l.b16 %v866
        %v1217 = vunpack.c.h.b16 %v866
        %v1218 = vunpack.c.l.b16 %v867
        %v1219 = vunpack.c.h.b16 %v867
        %v1220 = vunpack.c.l.b16 %v868
        %v1221 = vunpack.c.h.b16 %v868
        %v1222 = vunpack.c.l.b16 %v869
        %v1223 = vunpack.c.h.b16 %v869
        %v1224 = vunpack.c.l.b16 %v870
        %v1225 = vunpack.c.h.b16 %v870
        %v1226 = vunpack.c.l.b16 %v871
        %v1227 = vunpack.c.h.b16 %v871
        %v1228 = vunpack.c.l.b16 %v872
        %v1229 = vunpack.c.h.b16 %v872
        %v1230 = vunpack.c.l.b16 %v873
        %v1231 = vunpack.c.h.b16 %v873
        %v1232 = vunpack.c.l.b16 %v874
        %v1233 = vunpack.c.h.b16 %v874
        %v1234 = vunpack.c.l.b16 %v875
        %v1235 = vunpack.c.h.b16 %v875
        %v1236 = vunpack.c.l.b16 %v876
        %v1237 = vunpack.c.h.b16 %v876
        %v1238 = vunpack.c.l.b16 %v877
        %v1239 = vunpack.c.h.b16 %v877
        %v1240 = vunpack.c.l.b16 %v878
        %v1241 = vunpack.c.h.b16 %v878
        %v1242 = vunpack.c.l.b16 %v879
        %v1243 = vunpack.c.h.b16 %v879
        %v1244 = vunpack.c.l.b16 %v880
        %v1245 = vunpack.c.h.b16 %v880
        %v1246 = vunpack.c.l.b16 %v881
        %v1247 = vunpack.c.h.b16 %v881
        %v1248 = vunpack.c.l.b16 %v882
        %v1249 = vunpack.c.h.b16 %v882
        %v1250 = vunpack.c.l.b16 %v883
        %v1251 = vunpack.c.h.b16 %v883
        %v1252 = vunpack.c.l.b16 %v884
        %v1253 = vunpack.c.h.b16 %v884
        %v1254 = vunpack.c.l.b16 %v885
        %v1255 = vunpack.c.h.b16 %v885
        %v1256 = vunpack.c.l.b16 %v886
        %v1257 = vunpack.c.h.b16 %v886
        %v1258 = vunpack.c.l.b16 %v887
        %v1259 = vunpack.c.h.b16 %v887
        %v1260 = vunpack.c.l.b16 %v888
        %v1261 = vunpack.c.h.b16 %v888
        %v1262 = vunpack.c.l.b16 %v889
        %v1263 = vunpack.c.h.b16 %v889
        %v1264 = vunpack.c.l.b16 %v890
        %v1265 = vunpack.c.h.b16 %v890
        %v1266 = vunpack.c.l.b16 %v891
        %v1267 = vunpack.c.h.b16 %v891
        %v1268 = vunpack.c.l.b16 %v892
        %v1269 = vunpack.c.h.b16 %v892
        %v1270 = vunpack.c.l.b16 %v893
        %v1271 = vunpack.c.h.b16 %v893
        %v1272 = vunpack.c.l.b16 %v894
        %v1273 = vunpack.c.h.b16 %v894
        %v1274 = vunpack.c.l.b16 %v895
        %v1275 = vunpack.c.h.b16 %v895
        %v1276 = vunpack.c.l.b16 %v896
        %v1277 = vunpack.c.h.b16 %v896
        %v1278 = vunpack.c.l.b16 %v897
        %v1279 = vunpack.c.h.b16 %v897
        %v1280 = vunpack.c.l.b16 %v898
        %v1281 = vunpack.c.h.b16 %v898
        %v1282 = vunpack.c.l.b16 %v899
        %v1283 = vunpack.c.h.b16 %v899
        %v1284 = vunpack.c.l.b16 %v900
        %v1285 = vunpack.c.h.b16 %v900
        %v1286 = vunpack.c.l.b16 %v901
        %v1287 = vunpack.c.h.b16 %v901
        %v1288 = vunpack.c.l.b16 %v902
        %v1289 = vunpack.c.h.b16 %v902
        %v1290 = vunpack.c.l.b16 %v903
        %v1291 = vunpack.c.h.b16 %v903
        %v1292 = vunpack.c.l.b16 %v904
        %v1293 = vunpack.c.h.b16 %v904
        %v1294 = vunpack.c.l.b16 %v905
        %v1295 = vunpack.c.h.b16 %v905
        %v1296 = vunpack.c.l.b16 %v906
        %v1297 = vunpack.c.h.b16 %v906
        %v1298 = vunpack.c.l.b16 %v907
        %v1299 = vunpack.c.h.b16 %v907
        %v1300 = vunpack.c.l.b16 %v908
        %v1301 = vunpack.c.h.b16 %v908
        %v1302 = vunpack.c.l.b16 %v909
        %v1303 = vunpack.c.h.b16 %v909
        %v1304 = vunpack.c.l.b16 %v910
        %v1305 = vunpack.c.h.b16 %v910
        %v1306 = vunpack.c.l.b16 %v911
        %v1307 = vunpack.c.h.b16 %v911
        %v1308 = vunpack.c.l.b16 %v912
        %v1309 = vunpack.c.h.b16 %v912
        %v1310 = vunpack.c.l.b16 %v913
        %v1311 = vunpack.c.h.b16 %v913
        %v1312 = vunpack.c.l.b16 %v914
        %v1313 = vunpack.c.h.b16 %v914
        %v1314 = vunpack.c.l.b16 %v915
        %v1315 = vunpack.c.h.b16 %v915
        %v1316 = vunpack.c.l.b16 %v916
        %v1317 = vunpack.c.h.b16 %v916
        %v1318 = vunpack.c.l.b16 %v917
        %v1319 = vunpack.c.h.b16 %v917
        %v1320 = vunpack.c.l.b16 %v918
        %v1321 = vunpack.c.h.b16 %v918
        %v1322 = vunpack.c.l.b16 %v919
        %v1323 = vunpack.c.h.b16 %v919
        %v1324 = vunpack.c.l.b16 %v920
        %v1325 = vunpack.c.h.b16 %v920
        %v1326 = vunpack.c.l.b16 %v921
        %v1327 = vunpack.c.h.b16 %v921
        %v1328 = vpack.c.b16 %v1076, %v1072
        %v1329 = vpack.c.b16 %v1077, %v1073
        %v1330 = vpack.c.b16 %v1078, %v1074
        %v1331 = vpack.c.b16 %v1079, %v1075
        %v1332 = vpack.c.b16 %v1084, %v1080
        %v1333 = vpack.c.b16 %v1085, %v1081
        %v1334 = vpack.c.b16 %v1086, %v1082
        %v1335 = vpack.c.b16 %v1087, %v1083
        %v1336 = vpack.c.b16 %v1092, %v1088
        %v1337 = vpack.c.b16 %v1093, %v1089
        %v1338 = vpack.c.b16 %v1094, %v1090
        %v1339 = vpack.c.b16 %v1095, %v1091
        %v1340 = vpack.c.b16 %v1100, %v1096
        %v1341 = vpack.c.b16 %v1101, %v1097
        %v1342 = vpack.c.b16 %v1102, %v1098
        %v1343 = vpack.c.b16 %v1103, %v1099
        %v1344 = vpack.c.b16 %v1108, %v1104
        %v1345 = vpack.c.b16 %v1109, %v1105
        %v1346 = vpack.c.b16 %v1110, %v1106
        %v1347 = vpack.c.b16 %v1111, %v1107
        %v1348 = vpack.c.b16 %v1116, %v1112
        %v1349 = vpack.c.b16 %v1117, %v1113
        %v1350 = vpack.c.b16 %v1118, %v1114
        %v1351 = vpack.c.b16 %v1119, %v1115
        %v1352 = vpack.c.b16 %v1124, %v1120
        %v1353 = vpack.c.b16 %v1125, %v1121
        %v1354 = vpack.c.b16 %v1126, %v1122
        %v1355 = vpack.c.b16 %v1127, %v1123
        %v1356 = vpack.c.b16 %v1132, %v1128
        %v1357 = vpack.c.b16 %v1133, %v1129
        %v1358 = vpack.c.b16 %v1134, %v1130
        %v1359 = vpack.c.b16 %v1135, %v1131
        %v1360 = vpack.c.b16 %v1140, %v1136
        %v1361 = vpack.c.b16 %v1141, %v1137
        %v1362 = vpack.c.b16 %v1142, %v1138
        %v1363 = vpack.c.b16 %v1143, %v1139
        %v1364 = vpack.c.b16 %v1148, %v1144
        %v1365 = vpack.c.b16 %v1149, %v1145
        %v1366 = vpack.c.b16 %v1150, %v1146
        %v1367 = vpack.c.b16 %v1151, %v1147
        %v1368 = vpack.c.b16 %v1156, %v1152
        %v1369 = vpack.c.b16 %v1157, %v1153
        %v1370 = vpack.c.b16 %v1158, %v1154
        %v1371 = vpack.c.b16 %v1159, %v1155
        %v1372 = vpack.c.b16 %v1164, %v1160
        %v1373 = vpack.c.b16 %v1165, %v1161
        %v1374 = vpack.c.b16 %v1166, %v1162
        %v1375 = vpack.c.b16 %v1167, %v1163
        %v1376 = vpack.c.b16 %v1172, %v1168
        %v1377 = vpack.c.b16 %v1173, %v1169
        %v1378 = vpack.c.b16 %v1174, %v1170
        %v1379 = vpack.c.b16 %v1175, %v1171
        %v1380 = vpack.c.b16 %v1180, %v1176
        %v1381 = vpack.c.b16 %v1181, %v1177
        %v1382 = vpack.c.b16 %v1182, %v1178
        %v1383 = vpack.c.b16 %v1183, %v1179
        %v1384 = vpack.c.b16 %v1188, %v1184
        %v1385 = vpack.c.b16 %v1189, %v1185
        %v1386 = vpack.c.b16 %v1190, %v1186
        %v1387 = vpack.c.b16 %v1191, %v1187
        %v1388 = vpack.c.b16 %v1196, %v1192
        %v1389 = vpack.c.b16 %v1197, %v1193
        %v1390 = vpack.c.b16 %v1198, %v1194
        %v1391 = vpack.c.b16 %v1199, %v1195
        %v1392 = vpack.c.b16 %v1204, %v1200
        %v1393 = vpack.c.b16 %v1205, %v1201
        %v1394 = vpack.c.b16 %v1206, %v1202
        %v1395 = vpack.c.b16 %v1207, %v1203
        %v1396 = vpack.c.b16 %v1212, %v1208
        %v1397 = vpack.c.b16 %v1213, %v1209
        %v1398 = vpack.c.b16 %v1214, %v1210
        %v1399 = vpack.c.b16 %v1215, %v1211
        %v1400 = vpack.c.b16 %v1220, %v1216
        %v1401 = vpack.c.b16 %v1221, %v1217
        %v1402 = vpack.c.b16 %v1222, %v1218
        %v1403 = vpack.c.b16 %v1223, %v1219
        %v1404 = vpack.c.b16 %v1228, %v1224
        %v1405 = vpack.c.b16 %v1229, %v1225
        %v1406 = vpack.c.b16 %v1230, %v1226
        %v1407 = vpack.c.b16 %v1231, %v1227
        %v1408 = vpack.c.b16 %v1236, %v1232
        %v1409 = vpack.c.b16 %v1237, %v1233
        %v1410 = vpack.c.b16 %v1238, %v1234
        %v1411 = vpack.c.b16 %v1239, %v1235
        %v1412 = vpack.c.b16 %v1244, %v1240
        %v1413 = vpack.c.b16 %v1245, %v1241
        %v1414 = vpack.c.b16 %v1246, %v1242
        %v1415 = vpack.c.b16 %v1247, %v1243
        %v1416 = vpack.c.b16 %v1252, %v1248
        %v1417 = vpack.c.b16 %v1253, %v1249
        %v1418 = vpack.c.b16 %v1254, %v1250
        %v1419 = vpack.c.b16 %v1255, %v1251
        %v1420 = vpack.c.b16 %v1260, %v1256
        %v1421 = vpack.c.b16 %v1261, %v1257
        %v1422 = vpack.c.b16 %v1262, %v1258
        %v1423 = vpack.c.b16 %v1263, %v1259
        %v1424 = vpack.c.b16 %v1268, %v1264
        %v1425 = vpack.c.b16 %v1269, %v1265
        %v1426 = vpack.c.b16 %v1270, %v1266
        %v1427 = vpack.c.b16 %v1271, %v1267
        %v1428 = vpack.c.b16 %v1276, %v1272
        %v1429 = vpack.c.b16 %v1277, %v1273
        %v1430 = vpack.c.b16 %v1278, %v1274
        %v1431 = vpack.c.b16 %v1279, %v1275
        %v1432 = vpack.c.b16 %v1284, %v1280
        %v1433 = vpack.c.b16 %v1285, %v1281
        %v1434 = vpack.c.b16 %v1286, %v1282
        %v1435 = vpack.c.b16 %v1287, %v1283
        %v1436 = vpack.c.b16 %v1292, %v1288
        %v1437 = vpack.c.b16 %v1293, %v1289
        %v1438 = vpack.c.b16 %v1294, %v1290
        %v1439 = vpack.c.b16 %v1295, %v1291
        %v1440 = vpack.c.b16 %v1300, %v1296
        %v1441 = vpack.c.b16 %v1301, %v1297
        %v1442 = vpack.c.b16 %v1302, %v1298
        %v1443 = vpack.c.b16 %v1303, %v1299
        %v1444 = vpack.c.b16 %v1308, %v1304
        %v1445 = vpack.c.b16 %v1309, %v1305
        %v1446 = vpack.c.b16 %v1310, %v1306
        %v1447 = vpack.c.b16 %v1311, %v1307
        %v1448 = vpack.c.b16 %v1316, %v1312
        %v1449 = vpack.c.b16 %v1317, %v1313
        %v1450 = vpack.c.b16 %v1318, %v1314
        %v1451 = vpack.c.b16 %v1319, %v1315
        %v1452 = vpack.c.b16 %v1324, %v1320
        %v1453 = vpack.c.b16 %v1325, %v1321
        %v1454 = vpack.c.b16 %v1326, %v1322
        %v1455 = vpack.c.b16 %v1327, %v1323
        %1584 = vmatprep.subr.bf16.mxu0 %v1329
        %1585 = vmatpush1.bf16.msra.mxu0 %v1328
        %1586 = vmatprep.subr.bf16.mxu0 %v1333
        %1587 = vmatpush1.bf16.msra.mxu0 %v1332
        %1588 = vmatprep.subr.bf16.mxu0 %v1337
        %1589 = vmatpush1.bf16.msra.mxu0 %v1336
        %1590 = vmatprep.subr.bf16.mxu0 %v1341
        %1591 = vmatpush1.bf16.msra.mxu0 %v1340
        %1592 = vmatprep.subr.bf16.mxu0 %v1345
        %1593 = vmatpush1.bf16.msra.mxu0 %v1344
        %1594 = vmatprep.subr.bf16.mxu0 %v1349
        %1595 = vmatpush1.bf16.msra.mxu0 %v1348
        %1596 = vmatprep.subr.bf16.mxu0 %v1353
        %1597 = vmatpush1.bf16.msra.mxu0 %v1352
        %1598 = vmatprep.subr.bf16.mxu0 %v1357
        %1599 = vmatpush1.bf16.msra.mxu0 %v1356
        %1600 = vmatprep.subr.bf16.mxu0 %v1361
        %1601 = vmatpush1.bf16.msra.mxu0 %v1360
        %1602 = vmatprep.subr.bf16.mxu0 %v1365
        %1603 = vmatpush1.bf16.msra.mxu0 %v1364
        %1604 = vmatprep.subr.bf16.mxu0 %v1369
        %1605 = vmatpush1.bf16.msra.mxu0 %v1368
        %1606 = vmatprep.subr.bf16.mxu0 %v1373
        %1607 = vmatpush1.bf16.msra.mxu0 %v1372
        %1608 = vmatprep.subr.bf16.mxu0 %v1377
        %1609 = vmatpush1.bf16.msra.mxu0 %v1376
        %1610 = vmatprep.subr.bf16.mxu0 %v1381
        %1611 = vmatpush1.bf16.msra.mxu0 %v1380
        %1612 = vmatprep.subr.bf16.mxu0 %v1385
        %1613 = vmatpush1.bf16.msra.mxu0 %v1384
        %1614 = vmatprep.subr.bf16.mxu0 %v1389
        %1615 = vmatpush1.bf16.msra.mxu0 %v1388
        %1616 = vmatprep.mubr.bf16.mxu0 %v791
        %1617 = vmatmul.mubr.bf16.gmra.mrb[0].mxu0 %v790
        %v1618 = vpop.f32.mrb[0].mxu0
        %v1619 = vadd.f32 %v927, %v1618
        %v1620 = vpop.f32.mrb[0].mxu0
        %v1621 = vadd.f32 %v931, %v1620
        %v1622 = vpop.f32.mrb[0].mxu0
        %v1623 = vpop.f32.mrb[0].mxu0
        %1624 = vdwg.mxu0
        %1625 = vmatprep.subr.bf16.mxu0 %v1393
        %1626 = vmatpush1.bf16.msra.mxu0 %v1392
        %1627 = vmatprep.subr.bf16.mxu0 %v1397
        %1628 = vmatpush1.bf16.msra.mxu0 %v1396
        %1629 = vmatprep.subr.bf16.mxu0 %v1401
        %1630 = vmatpush1.bf16.msra.mxu0 %v1400
        %1631 = vmatprep.subr.bf16.mxu0 %v1405
        %1632 = vmatpush1.bf16.msra.mxu0 %v1404
        %1633 = vmatprep.subr.bf16.mxu0 %v1409
        %1634 = vmatpush1.bf16.msra.mxu0 %v1408
        %1635 = vmatprep.subr.bf16.mxu0 %v1413
        %1636 = vmatpush1.bf16.msra.mxu0 %v1412
        %1637 = vmatprep.subr.bf16.mxu0 %v1417
        %1638 = vmatpush1.bf16.msra.mxu0 %v1416
        %1639 = vmatprep.subr.bf16.mxu0 %v1421
        %1640 = vmatpush1.bf16.msra.mxu0 %v1420
        %1641 = vmatprep.subr.bf16.mxu0 %v1425
        %1642 = vmatpush1.bf16.msra.mxu0 %v1424
        %1643 = vmatprep.subr.bf16.mxu0 %v1429
        %1644 = vmatpush1.bf16.msra.mxu0 %v1428
        %1645 = vmatprep.subr.bf16.mxu0 %v1433
        %1646 = vmatpush1.bf16.msra.mxu0 %v1432
        %1647 = vmatprep.subr.bf16.mxu0 %v1437
        %1648 = vmatpush1.bf16.msra.mxu0 %v1436
        %1649 = vmatprep.subr.bf16.mxu0 %v1441
        %1650 = vmatpush1.bf16.msra.mxu0 %v1440
        %1651 = vmatprep.subr.bf16.mxu0 %v1445
        %1652 = vmatpush1.bf16.msra.mxu0 %v1444
        %1653 = vmatprep.subr.bf16.mxu0 %v1449
        %1654 = vmatpush1.bf16.msra.mxu0 %v1448
        %1655 = vmatprep.subr.bf16.mxu0 %v1453
        %1656 = vmatpush1.bf16.msra.mxu0 %v1452
        %1657 = vmatprep.mubr.bf16.mxu0 %v793
        %1658 = vmatmul.mubr.bf16.gmra.mrb[0].mxu0 %v792
        %v1659 = vpop.f32.mrb[0].mxu0
        %v1660 = vadd.f32 %v1619, %v1659
        %v1661 = vpop.f32.mrb[0].mxu0
        %v1662 = vadd.f32 %v1621, %v1661
        %v1663 = vpop.f32.mrb[0].mxu0
        %v1664 = vpop.f32.mrb[0].mxu0
        %1665 = vdwg.mxu0
        %1666 = vmatprep.subr.bf16.mxu0 %v1331
        %1667 = vmatpush1.bf16.msra.mxu0 %v1330
        %1668 = vmatprep.subr.bf16.mxu0 %v1335
        %1669 = vmatpush1.bf16.msra.mxu0 %v1334
        %1670 = vmatprep.subr.bf16.mxu0 %v1339
        %1671 = vmatpush1.bf16.msra.mxu0 %v1338
        %1672 = vmatprep.subr.bf16.mxu0 %v1343
        %1673 = vmatpush1.bf16.msra.mxu0 %v1342
        %1674 = vmatprep.subr.bf16.mxu0 %v1347
        %1675 = vmatpush1.bf16.msra.mxu0 %v1346
        %1676 = vmatprep.subr.bf16.mxu0 %v1351
        %1677 = vmatpush1.bf16.msra.mxu0 %v1350
        %1678 = vmatprep.subr.bf16.mxu0 %v1355
        %1679 = vmatpush1.bf16.msra.mxu0 %v1354
        %1680 = vmatprep.subr.bf16.mxu0 %v1359
        %1681 = vmatpush1.bf16.msra.mxu0 %v1358
        %1682 = vmatprep.subr.bf16.mxu0 %v1363
        %1683 = vmatpush1.bf16.msra.mxu0 %v1362
        %1684 = vmatprep.subr.bf16.mxu0 %v1367
        %1685 = vmatpush1.bf16.msra.mxu0 %v1366
        %1686 = vmatprep.subr.bf16.mxu0 %v1371
        %1687 = vmatpush1.bf16.msra.mxu0 %v1370
        %1688 = vmatprep.subr.bf16.mxu0 %v1375
        %1689 = vmatpush1.bf16.msra.mxu0 %v1374
        %1690 = vmatprep.subr.bf16.mxu0 %v1379
        %1691 = vmatpush1.bf16.msra.mxu0 %v1378
        %1692 = vmatprep.subr.bf16.mxu0 %v1383
        %1693 = vmatpush1.bf16.msra.mxu0 %v1382
        %1694 = vmatprep.subr.bf16.mxu0 %v1387
        %1695 = vmatpush1.bf16.msra.mxu0 %v1386
        %1696 = vmatprep.subr.bf16.mxu0 %v1391
        %1697 = vmatpush1.bf16.msra.mxu0 %v1390
        %1698 = vmatprep.mubr.bf16.mxu0 %v791
        %1699 = vmatmul.mubr.bf16.gmra.mrb[0].mxu0 %v790
        %v1700 = vpop.f32.mrb[0].mxu0
        %v1701 = vadd.f32 %v935, %v1700
        %v1702 = vpop.f32.mrb[0].mxu0
        %v1703 = vadd.f32 %v939, %v1702
        %v1704 = vpop.f32.mrb[0].mxu0
        %v1705 = vpop.f32.mrb[0].mxu0
        %1706 = vdwg.mxu0
        %1707 = vmatprep.subr.bf16.mxu0 %v1395
        %1708 = vmatpush1.bf16.msra.mxu0 %v1394
        %1709 = vmatprep.subr.bf16.mxu0 %v1399
        %1710 = vmatpush1.bf16.msra.mxu0 %v1398
        %1711 = vmatprep.subr.bf16.mxu0 %v1403
        %1712 = vmatpush1.bf16.msra.mxu0 %v1402
        %1713 = vmatprep.subr.bf16.mxu0 %v1407
        %1714 = vmatpush1.bf16.msra.mxu0 %v1406
        %1715 = vmatprep.subr.bf16.mxu0 %v1411
        %1716 = vmatpush1.bf16.msra.mxu0 %v1410
        %1717 = vmatprep.subr.bf16.mxu0 %v1415
        %1718 = vmatpush1.bf16.msra.mxu0 %v1414
        %1719 = vmatprep.subr.bf16.mxu0 %v1419
        %1720 = vmatpush1.bf16.msra.mxu0 %v1418
        %1721 = vmatprep.subr.bf16.mxu0 %v1423
        %1722 = vmatpush1.bf16.msra.mxu0 %v1422
        %1723 = vmatprep.subr.bf16.mxu0 %v1427
        %1724 = vmatpush1.bf16.msra.mxu0 %v1426
        %1725 = vmatprep.subr.bf16.mxu0 %v1431
        %1726 = vmatpush1.bf16.msra.mxu0 %v1430
        %1727 = vmatprep.subr.bf16.mxu0 %v1435
        %1728 = vmatpush1.bf16.msra.mxu0 %v1434
        %1729 = vmatprep.subr.bf16.mxu0 %v1439
        %1730 = vmatpush1.bf16.msra.mxu0 %v1438
        %1731 = vmatprep.subr.bf16.mxu0 %v1443
        %1732 = vmatpush1.bf16.msra.mxu0 %v1442
        %1733 = vmatprep.subr.bf16.mxu0 %v1447
        %1734 = vmatpush1.bf16.msra.mxu0 %v1446
        %1735 = vmatprep.subr.bf16.mxu0 %v1451
        %1736 = vmatpush1.bf16.msra.mxu0 %v1450
        %1737 = vmatprep.subr.bf16.mxu0 %v1455
        %1738 = vmatpush1.bf16.msra.mxu0 %v1454
        %1739 = vmatprep.mubr.bf16.mxu0 %v793
        %1740 = vmatmul.mubr.bf16.gmra.mrb[0].mxu0 %v792
        %v1741 = vpop.f32.mrb[0].mxu0
        %v1742 = vadd.f32 %v1701, %v1741
        %v1743 = vpop.f32.mrb[0].mxu0
        %v1744 = vadd.f32 %v1703, %v1743
        %v1745 = vpop.f32.mrb[0].mxu0
        %v1746 = vpop.f32.mrb[0].mxu0
        %1747 = vdwg.mxu0
        %vm1748 = vcmp.ge.f32.partialorder %v1660, 0.0
        %vm1749 = vcmp.ge.f32.partialorder %v1662, 0.0
        %vm1750 = vcmp.ge.f32.partialorder %v1742, 0.0
        %vm1751 = vcmp.ge.f32.partialorder %v1744, 0.0
        %v1752 = vmul.f32 %v1660, 0.2
        %v1753 = vmul.f32 %v1662, 0.2
        %v1754 = vmul.f32 %v1742, 0.2
        %v1755 = vmul.f32 %v1744, 0.2
        %v1756 = vsel %vm1748, %v1660, %v1752
        %v1757 = vsel %vm1749, %v1662, %v1753
        %v1758 = vsel %vm1750, %v1742, %v1754
        %v1759 = vsel %vm1751, %v1744, %v1755
        %v1760 = vpack.c.bf16 %v1756, %v1756
        %v1761 = vpack.c.bf16 %v1757, %v1757
        %v1762 = vpack.c.bf16 %v1758, %v1758
        %v1763 = vpack.c.bf16 %v1759, %v1759
        %v1764 = vld [vmem:[%s534] sm:$0xff]
        %v1765 = vld [vmem:[%s534 + $0x8] sm:$0xff]
        %v1766 = vld [vmem:[%s534 + $0x10] sm:$0xff]
        %v1767 = vld [vmem:[%s534 + $0x18] sm:$0xff]
        %v1768 = vld [vmem:[%s534 + $0x20] sm:$0xff]
        %v1769 = vld [vmem:[%s534 + $0x28] sm:$0xff]
        %v1770 = vld [vmem:[%s534 + $0x30] sm:$0xff]
        %v1771 = vld [vmem:[%s534 + $0x38] sm:$0xff]
        %v1772 = vld [vmem:[%s534 + $0x40] sm:$0xff]
        %v1773 = vld [vmem:[%s534 + $0x48] sm:$0xff]
        %v1774 = vld [vmem:[%s534 + $0x50] sm:$0xff]
        %v1775 = vld [vmem:[%s534 + $0x58] sm:$0xff]
        %v1776 = vld [vmem:[%s534 + $0x60] sm:$0xff]
        %v1777 = vld [vmem:[%s534 + $0x68] sm:$0xff]
        %v1778 = vld [vmem:[%s534 + $0x70] sm:$0xff]
        %v1779 = vld [vmem:[%s534 + $0x78] sm:$0xff]
        %v1780 = vld [vmem:[%s534 + $0x80] sm:$0xff]
        %v1781 = vld [vmem:[%s534 + $0x88] sm:$0xff]
        %v1782 = vld [vmem:[%s534 + $0x90] sm:$0xff]
        %v1783 = vld [vmem:[%s534 + $0x98] sm:$0xff]
        %v1784 = vld [vmem:[%s534 + $0xa0] sm:$0xff]
        %v1785 = vld [vmem:[%s534 + $0xa8] sm:$0xff]
        %v1786 = vld [vmem:[%s534 + $0xb0] sm:$0xff]
        %v1787 = vld [vmem:[%s534 + $0xb8] sm:$0xff]
        %v1788 = vld [vmem:[%s534 + $0xc0] sm:$0xff]
        %v1789 = vld [vmem:[%s534 + $0xc8] sm:$0xff]
        %v1790 = vld [vmem:[%s534 + $0xd0] sm:$0xff]
        %v1791 = vld [vmem:[%s534 + $0xd8] sm:$0xff]
        %v1792 = vld [vmem:[%s534 + $0xe0] sm:$0xff]
        %v1793 = vld [vmem:[%s534 + $0xe8] sm:$0xff]
        %v1794 = vld [vmem:[%s534 + $0xf0] sm:$0xff]
        %v1795 = vld [vmem:[%s534 + $0xf8] sm:$0xff]
        %v1796 = vld [vmem:[%s534 + $0x100] sm:$0xff]
        %v1797 = vld [vmem:[%s534 + $0x108] sm:$0xff]
        %v1798 = vld [vmem:[%s534 + $0x110] sm:$0xff]
        %v1799 = vld [vmem:[%s534 + $0x118] sm:$0xff]
        %v1800 = vld [vmem:[%s534 + $0x120] sm:$0xff]
        %v1801 = vld [vmem:[%s534 + $0x128] sm:$0xff]
        %v1802 = vld [vmem:[%s534 + $0x130] sm:$0xff]
        %v1803 = vld [vmem:[%s534 + $0x138] sm:$0xff]
        %v1804 = vld [vmem:[%s534 + $0x140] sm:$0xff]
        %v1805 = vld [vmem:[%s534 + $0x148] sm:$0xff]
        %v1806 = vld [vmem:[%s534 + $0x150] sm:$0xff]
        %v1807 = vld [vmem:[%s534 + $0x158] sm:$0xff]
        %v1808 = vld [vmem:[%s534 + $0x160] sm:$0xff]
        %v1809 = vld [vmem:[%s534 + $0x168] sm:$0xff]
        %v1810 = vld [vmem:[%s534 + $0x170] sm:$0xff]
        %v1811 = vld [vmem:[%s534 + $0x178] sm:$0xff]
        %v1812 = vld [vmem:[%s534 + $0x180] sm:$0xff]
        %v1813 = vld [vmem:[%s534 + $0x188] sm:$0xff]
        %v1814 = vld [vmem:[%s534 + $0x190] sm:$0xff]
        %v1815 = vld [vmem:[%s534 + $0x198] sm:$0xff]
        %v1816 = vld [vmem:[%s534 + $0x1a0] sm:$0xff]
        %v1817 = vld [vmem:[%s534 + $0x1a8] sm:$0xff]
        %v1818 = vld [vmem:[%s534 + $0x1b0] sm:$0xff]
        %v1819 = vld [vmem:[%s534 + $0x1b8] sm:$0xff]
        %v1820 = vld [vmem:[%s534 + $0x1c0] sm:$0xff]
        %v1821 = vld [vmem:[%s534 + $0x1c8] sm:$0xff]
        %v1822 = vld [vmem:[%s534 + $0x1d0] sm:$0xff]
        %v1823 = vld [vmem:[%s534 + $0x1d8] sm:$0xff]
        %v1824 = vld [vmem:[%s534 + $0x1e0] sm:$0xff]
        %v1825 = vld [vmem:[%s534 + $0x1e8] sm:$0xff]
        %v1826 = vld [vmem:[%s534 + $0x1f0] sm:$0xff]
        %v1827 = vld [vmem:[%s534 + $0x1f8] sm:$0xff]
        %v1828 = vld [vmem:[%s534 + $0x200] sm:$0xff]
        %v1829 = vld [vmem:[%s534 + $0x208] sm:$0xff]
        %v1830 = vld [vmem:[%s534 + $0x210] sm:$0xff]
        %v1831 = vld [vmem:[%s534 + $0x218] sm:$0xff]
        %v1832 = vld [vmem:[%s534 + $0x220] sm:$0xff]
        %v1833 = vld [vmem:[%s534 + $0x228] sm:$0xff]
        %v1834 = vld [vmem:[%s534 + $0x230] sm:$0xff]
        %v1835 = vld [vmem:[%s534 + $0x238] sm:$0xff]
        %v1836 = vld [vmem:[%s534 + $0x240] sm:$0xff]
        %v1837 = vld [vmem:[%s534 + $0x248] sm:$0xff]
        %v1838 = vld [vmem:[%s534 + $0x250] sm:$0xff]
        %v1839 = vld [vmem:[%s534 + $0x258] sm:$0xff]
        %v1840 = vld [vmem:[%s534 + $0x260] sm:$0xff]
        %v1841 = vld [vmem:[%s534 + $0x268] sm:$0xff]
        %v1842 = vld [vmem:[%s534 + $0x270] sm:$0xff]
        %v1843 = vld [vmem:[%s534 + $0x278] sm:$0xff]
        %v1844 = vld [vmem:[%s534 + $0x280] sm:$0xff]
        %v1845 = vld [vmem:[%s534 + $0x288] sm:$0xff]
        %v1846 = vld [vmem:[%s534 + $0x290] sm:$0xff]
        %v1847 = vld [vmem:[%s534 + $0x298] sm:$0xff]
        %v1848 = vld [vmem:[%s534 + $0x2a0] sm:$0xff]
        %v1849 = vld [vmem:[%s534 + $0x2a8] sm:$0xff]
        %v1850 = vld [vmem:[%s534 + $0x2b0] sm:$0xff]
        %v1851 = vld [vmem:[%s534 + $0x2b8] sm:$0xff]
        %v1852 = vld [vmem:[%s534 + $0x2c0] sm:$0xff]
        %v1853 = vld [vmem:[%s534 + $0x2c8] sm:$0xff]
        %v1854 = vld [vmem:[%s534 + $0x2d0] sm:$0xff]
        %v1855 = vld [vmem:[%s534 + $0x2d8] sm:$0xff]
        %v1856 = vld [vmem:[%s534 + $0x2e0] sm:$0xff]
        %v1857 = vld [vmem:[%s534 + $0x2e8] sm:$0xff]
        %v1858 = vld [vmem:[%s534 + $0x2f0] sm:$0xff]
        %v1859 = vld [vmem:[%s534 + $0x2f8] sm:$0xff]
        %v1860 = vld [vmem:[%s534 + $0x300] sm:$0xff]
        %v1861 = vld [vmem:[%s534 + $0x308] sm:$0xff]
        %v1862 = vld [vmem:[%s534 + $0x310] sm:$0xff]
        %v1863 = vld [vmem:[%s534 + $0x318] sm:$0xff]
        %v1864 = vld [vmem:[%s534 + $0x320] sm:$0xff]
        %v1865 = vld [vmem:[%s534 + $0x328] sm:$0xff]
        %v1866 = vld [vmem:[%s534 + $0x330] sm:$0xff]
        %v1867 = vld [vmem:[%s534 + $0x338] sm:$0xff]
        %v1868 = vld [vmem:[%s534 + $0x340] sm:$0xff]
        %v1869 = vld [vmem:[%s534 + $0x348] sm:$0xff]
        %v1870 = vld [vmem:[%s534 + $0x350] sm:$0xff]
        %v1871 = vld [vmem:[%s534 + $0x358] sm:$0xff]
        %v1872 = vld [vmem:[%s534 + $0x360] sm:$0xff]
        %v1873 = vld [vmem:[%s534 + $0x368] sm:$0xff]
        %v1874 = vld [vmem:[%s534 + $0x370] sm:$0xff]
        %v1875 = vld [vmem:[%s534 + $0x378] sm:$0xff]
        %v1876 = vld [vmem:[%s534 + $0x380] sm:$0xff]
        %v1877 = vld [vmem:[%s534 + $0x388] sm:$0xff]
        %v1878 = vld [vmem:[%s534 + $0x390] sm:$0xff]
        %v1879 = vld [vmem:[%s534 + $0x398] sm:$0xff]
        %v1880 = vld [vmem:[%s534 + $0x3a0] sm:$0xff]
        %v1881 = vld [vmem:[%s534 + $0x3a8] sm:$0xff]
        %v1882 = vld [vmem:[%s534 + $0x3b0] sm:$0xff]
        %v1883 = vld [vmem:[%s534 + $0x3b8] sm:$0xff]
        %v1884 = vld [vmem:[%s534 + $0x3c0] sm:$0xff]
        %v1885 = vld [vmem:[%s534 + $0x3c8] sm:$0xff]
        %v1886 = vld [vmem:[%s534 + $0x3d0] sm:$0xff]
        %v1887 = vld [vmem:[%s534 + $0x3d8] sm:$0xff]
        %v1888 = vld [vmem:[%s534 + $0x3e0] sm:$0xff]
        %v1889 = vld [vmem:[%s534 + $0x3e8] sm:$0xff]
        %v1890 = vld [vmem:[%s534 + $0x3f0] sm:$0xff]
        %v1891 = vld [vmem:[%s534 + $0x3f8] sm:$0xff]
        %v1892 = vld [vmem:[%s543] sm:$0xf]
        %v1894 = vlaneseq
        %v1895 = vshrl.u32 %v1894, 7
        %v1896 = vsub.s32 0, %v1895
        %v1897 = vrot.slane %v1892, %v1896
        %v1898 = vlaneseq
        %v1899 = vshrl.u32 %v1898, 7
        %v1900 = vsub.s32 1, %v1899
        %v1901 = vrot.slane %v1892, %v1900
        %v1902 = vlaneseq
        %v1903 = vshrl.u32 %v1902, 7
        %v1904 = vsub.s32 2, %v1903
        %v1905 = vrot.slane %v1892, %v1904
        %v1906 = vlaneseq
        %v1907 = vshrl.u32 %v1906, 7
        %v1908 = vsub.s32 3, %v1907
        %v1909 = vrot.slane %v1892, %v1908
        %v2042 = vunpack.c.l.b16 %v1764
        %v2043 = vunpack.c.h.b16 %v1764
        %v2044 = vunpack.c.l.b16 %v1765
        %v2045 = vunpack.c.h.b16 %v1765
        %v2046 = vunpack.c.l.b16 %v1766
        %v2047 = vunpack.c.h.b16 %v1766
        %v2048 = vunpack.c.l.b16 %v1767
        %v2049 = vunpack.c.h.b16 %v1767
        %v2050 = vunpack.c.l.b16 %v1768
        %v2051 = vunpack.c.h.b16 %v1768
        %v2052 = vunpack.c.l.b16 %v1769
        %v2053 = vunpack.c.h.b16 %v1769
        %v2054 = vunpack.c.l.b16 %v1770
        %v2055 = vunpack.c.h.b16 %v1770
        %v2056 = vunpack.c.l.b16 %v1771
        %v2057 = vunpack.c.h.b16 %v1771
        %v2058 = vunpack.c.l.b16 %v1772
        %v2059 = vunpack.c.h.b16 %v1772
        %v2060 = vunpack.c.l.b16 %v1773
        %v2061 = vunpack.c.h.b16 %v1773
        %v2062 = vunpack.c.l.b16 %v1774
        %v2063 = vunpack.c.h.b16 %v1774
        %v2064 = vunpack.c.l.b16 %v1775
        %v2065 = vunpack.c.h.b16 %v1775
        %v2066 = vunpack.c.l.b16 %v1776
        %v2067 = vunpack.c.h.b16 %v1776
        %v2068 = vunpack.c.l.b16 %v1777
        %v2069 = vunpack.c.h.b16 %v1777
        %v2070 = vunpack.c.l.b16 %v1778
        %v2071 = vunpack.c.h.b16 %v1778
        %v2072 = vunpack.c.l.b16 %v1779
        %v2073 = vunpack.c.h.b16 %v1779
        %v2074 = vunpack.c.l.b16 %v1780
        %v2075 = vunpack.c.h.b16 %v1780
        %v2076 = vunpack.c.l.b16 %v1781
        %v2077 = vunpack.c.h.b16 %v1781
        %v2078 = vunpack.c.l.b16 %v1782
        %v2079 = vunpack.c.h.b16 %v1782
        %v2080 = vunpack.c.l.b16 %v1783
        %v2081 = vunpack.c.h.b16 %v1783
        %v2082 = vunpack.c.l.b16 %v1784
        %v2083 = vunpack.c.h.b16 %v1784
        %v2084 = vunpack.c.l.b16 %v1785
        %v2085 = vunpack.c.h.b16 %v1785
        %v2086 = vunpack.c.l.b16 %v1786
        %v2087 = vunpack.c.h.b16 %v1786
        %v2088 = vunpack.c.l.b16 %v1787
        %v2089 = vunpack.c.h.b16 %v1787
        %v2090 = vunpack.c.l.b16 %v1788
        %v2091 = vunpack.c.h.b16 %v1788
        %v2092 = vunpack.c.l.b16 %v1789
        %v2093 = vunpack.c.h.b16 %v1789
        %v2094 = vunpack.c.l.b16 %v1790
        %v2095 = vunpack.c.h.b16 %v1790
        %v2096 = vunpack.c.l.b16 %v1791
        %v2097 = vunpack.c.h.b16 %v1791
        %v2098 = vunpack.c.l.b16 %v1792
        %v2099 = vunpack.c.h.b16 %v1792
        %v2100 = vunpack.c.l.b16 %v1793
        %v2101 = vunpack.c.h.b16 %v1793
        %v2102 = vunpack.c.l.b16 %v1794
        %v2103 = vunpack.c.h.b16 %v1794
        %v2104 = vunpack.c.l.b16 %v1795
        %v2105 = vunpack.c.h.b16 %v1795
        %v2106 = vunpack.c.l.b16 %v1796
        %v2107 = vunpack.c.h.b16 %v1796
        %v2108 = vunpack.c.l.b16 %v1797
        %v2109 = vunpack.c.h.b16 %v1797
        %v2110 = vunpack.c.l.b16 %v1798
        %v2111 = vunpack.c.h.b16 %v1798
        %v2112 = vunpack.c.l.b16 %v1799
        %v2113 = vunpack.c.h.b16 %v1799
        %v2114 = vunpack.c.l.b16 %v1800
        %v2115 = vunpack.c.h.b16 %v1800
        %v2116 = vunpack.c.l.b16 %v1801
        %v2117 = vunpack.c.h.b16 %v1801
        %v2118 = vunpack.c.l.b16 %v1802
        %v2119 = vunpack.c.h.b16 %v1802
        %v2120 = vunpack.c.l.b16 %v1803
        %v2121 = vunpack.c.h.b16 %v1803
        %v2122 = vunpack.c.l.b16 %v1804
        %v2123 = vunpack.c.h.b16 %v1804
        %v2124 = vunpack.c.l.b16 %v1805
        %v2125 = vunpack.c.h.b16 %v1805
        %v2126 = vunpack.c.l.b16 %v1806
        %v2127 = vunpack.c.h.b16 %v1806
        %v2128 = vunpack.c.l.b16 %v1807
        %v2129 = vunpack.c.h.b16 %v1807
        %v2130 = vunpack.c.l.b16 %v1808
        %v2131 = vunpack.c.h.b16 %v1808
        %v2132 = vunpack.c.l.b16 %v1809
        %v2133 = vunpack.c.h.b16 %v1809
        %v2134 = vunpack.c.l.b16 %v1810
        %v2135 = vunpack.c.h.b16 %v1810
        %v2136 = vunpack.c.l.b16 %v1811
        %v2137 = vunpack.c.h.b16 %v1811
        %v2138 = vunpack.c.l.b16 %v1812
        %v2139 = vunpack.c.h.b16 %v1812
        %v2140 = vunpack.c.l.b16 %v1813
        %v2141 = vunpack.c.h.b16 %v1813
        %v2142 = vunpack.c.l.b16 %v1814
        %v2143 = vunpack.c.h.b16 %v1814
        %v2144 = vunpack.c.l.b16 %v1815
        %v2145 = vunpack.c.h.b16 %v1815
        %v2146 = vunpack.c.l.b16 %v1816
        %v2147 = vunpack.c.h.b16 %v1816
        %v2148 = vunpack.c.l.b16 %v1817
        %v2149 = vunpack.c.h.b16 %v1817
        %v2150 = vunpack.c.l.b16 %v1818
        %v2151 = vunpack.c.h.b16 %v1818
        %v2152 = vunpack.c.l.b16 %v1819
        %v2153 = vunpack.c.h.b16 %v1819
        %v2154 = vunpack.c.l.b16 %v1820
        %v2155 = vunpack.c.h.b16 %v1820
        %v2156 = vunpack.c.l.b16 %v1821
        %v2157 = vunpack.c.h.b16 %v1821
        %v2158 = vunpack.c.l.b16 %v1822
        %v2159 = vunpack.c.h.b16 %v1822
        %v2160 = vunpack.c.l.b16 %v1823
        %v2161 = vunpack.c.h.b16 %v1823
        %v2162 = vunpack.c.l.b16 %v1824
        %v2163 = vunpack.c.h.b16 %v1824
        %v2164 = vunpack.c.l.b16 %v1825
        %v2165 = vunpack.c.h.b16 %v1825
        %v2166 = vunpack.c.l.b16 %v1826
        %v2167 = vunpack.c.h.b16 %v1826
        %v2168 = vunpack.c.l.b16 %v1827
        %v2169 = vunpack.c.h.b16 %v1827
        %v2170 = vunpack.c.l.b16 %v1828
        %v2171 = vunpack.c.h.b16 %v1828
        %v2172 = vunpack.c.l.b16 %v1829
        %v2173 = vunpack.c.h.b16 %v1829
        %v2174 = vunpack.c.l.b16 %v1830
        %v2175 = vunpack.c.h.b16 %v1830
        %v2176 = vunpack.c.l.b16 %v1831
        %v2177 = vunpack.c.h.b16 %v1831
        %v2178 = vunpack.c.l.b16 %v1832
        %v2179 = vunpack.c.h.b16 %v1832
        %v2180 = vunpack.c.l.b16 %v1833
        %v2181 = vunpack.c.h.b16 %v1833
        %v2182 = vunpack.c.l.b16 %v1834
        %v2183 = vunpack.c.h.b16 %v1834
        %v2184 = vunpack.c.l.b16 %v1835
        %v2185 = vunpack.c.h.b16 %v1835
        %v2186 = vunpack.c.l.b16 %v1836
        %v2187 = vunpack.c.h.b16 %v1836
        %v2188 = vunpack.c.l.b16 %v1837
        %v2189 = vunpack.c.h.b16 %v1837
        %v2190 = vunpack.c.l.b16 %v1838
        %v2191 = vunpack.c.h.b16 %v1838
        %v2192 = vunpack.c.l.b16 %v1839
        %v2193 = vunpack.c.h.b16 %v1839
        %v2194 = vunpack.c.l.b16 %v1840
        %v2195 = vunpack.c.h.b16 %v1840
        %v2196 = vunpack.c.l.b16 %v1841
        %v2197 = vunpack.c.h.b16 %v1841
        %v2198 = vunpack.c.l.b16 %v1842
        %v2199 = vunpack.c.h.b16 %v1842
        %v2200 = vunpack.c.l.b16 %v1843
        %v2201 = vunpack.c.h.b16 %v1843
        %v2202 = vunpack.c.l.b16 %v1844
        %v2203 = vunpack.c.h.b16 %v1844
        %v2204 = vunpack.c.l.b16 %v1845
        %v2205 = vunpack.c.h.b16 %v1845
        %v2206 = vunpack.c.l.b16 %v1846
        %v2207 = vunpack.c.h.b16 %v1846
        %v2208 = vunpack.c.l.b16 %v1847
        %v2209 = vunpack.c.h.b16 %v1847
        %v2210 = vunpack.c.l.b16 %v1848
        %v2211 = vunpack.c.h.b16 %v1848
        %v2212 = vunpack.c.l.b16 %v1849
        %v2213 = vunpack.c.h.b16 %v1849
        %v2214 = vunpack.c.l.b16 %v1850
        %v2215 = vunpack.c.h.b16 %v1850
        %v2216 = vunpack.c.l.b16 %v1851
        %v2217 = vunpack.c.h.b16 %v1851
        %v2218 = vunpack.c.l.b16 %v1852
        %v2219 = vunpack.c.h.b16 %v1852
        %v2220 = vunpack.c.l.b16 %v1853
        %v2221 = vunpack.c.h.b16 %v1853
        %v2222 = vunpack.c.l.b16 %v1854
        %v2223 = vunpack.c.h.b16 %v1854
        %v2224 = vunpack.c.l.b16 %v1855
        %v2225 = vunpack.c.h.b16 %v1855
        %v2226 = vunpack.c.l.b16 %v1856
        %v2227 = vunpack.c.h.b16 %v1856
        %v2228 = vunpack.c.l.b16 %v1857
        %v2229 = vunpack.c.h.b16 %v1857
        %v2230 = vunpack.c.l.b16 %v1858
        %v2231 = vunpack.c.h.b16 %v1858
        %v2232 = vunpack.c.l.b16 %v1859
        %v2233 = vunpack.c.h.b16 %v1859
        %v2234 = vunpack.c.l.b16 %v1860
        %v2235 = vunpack.c.h.b16 %v1860
        %v2236 = vunpack.c.l.b16 %v1861
        %v2237 = vunpack.c.h.b16 %v1861
        %v2238 = vunpack.c.l.b16 %v1862
        %v2239 = vunpack.c.h.b16 %v1862
        %v2240 = vunpack.c.l.b16 %v1863
        %v2241 = vunpack.c.h.b16 %v1863
        %v2242 = vunpack.c.l.b16 %v1864
        %v2243 = vunpack.c.h.b16 %v1864
        %v2244 = vunpack.c.l.b16 %v1865
        %v2245 = vunpack.c.h.b16 %v1865
        %v2246 = vunpack.c.l.b16 %v1866
        %v2247 = vunpack.c.h.b16 %v1866
        %v2248 = vunpack.c.l.b16 %v1867
        %v2249 = vunpack.c.h.b16 %v1867
        %v2250 = vunpack.c.l.b16 %v1868
        %v2251 = vunpack.c.h.b16 %v1868
        %v2252 = vunpack.c.l.b16 %v1869
        %v2253 = vunpack.c.h.b16 %v1869
        %v2254 = vunpack.c.l.b16 %v1870
        %v2255 = vunpack.c.h.b16 %v1870
        %v2256 = vunpack.c.l.b16 %v1871
        %v2257 = vunpack.c.h.b16 %v1871
        %v2258 = vunpack.c.l.b16 %v1872
        %v2259 = vunpack.c.h.b16 %v1872
        %v2260 = vunpack.c.l.b16 %v1873
        %v2261 = vunpack.c.h.b16 %v1873
        %v2262 = vunpack.c.l.b16 %v1874
        %v2263 = vunpack.c.h.b16 %v1874
        %v2264 = vunpack.c.l.b16 %v1875
        %v2265 = vunpack.c.h.b16 %v1875
        %v2266 = vunpack.c.l.b16 %v1876
        %v2267 = vunpack.c.h.b16 %v1876
        %v2268 = vunpack.c.l.b16 %v1877
        %v2269 = vunpack.c.h.b16 %v1877
        %v2270 = vunpack.c.l.b16 %v1878
        %v2271 = vunpack.c.h.b16 %v1878
        %v2272 = vunpack.c.l.b16 %v1879
        %v2273 = vunpack.c.h.b16 %v1879
        %v2274 = vunpack.c.l.b16 %v1880
        %v2275 = vunpack.c.h.b16 %v1880
        %v2276 = vunpack.c.l.b16 %v1881
        %v2277 = vunpack.c.h.b16 %v1881
        %v2278 = vunpack.c.l.b16 %v1882
        %v2279 = vunpack.c.h.b16 %v1882
        %v2280 = vunpack.c.l.b16 %v1883
        %v2281 = vunpack.c.h.b16 %v1883
        %v2282 = vunpack.c.l.b16 %v1884
        %v2283 = vunpack.c.h.b16 %v1884
        %v2284 = vunpack.c.l.b16 %v1885
        %v2285 = vunpack.c.h.b16 %v1885
        %v2286 = vunpack.c.l.b16 %v1886
        %v2287 = vunpack.c.h.b16 %v1886
        %v2288 = vunpack.c.l.b16 %v1887
        %v2289 = vunpack.c.h.b16 %v1887
        %v2290 = vunpack.c.l.b16 %v1888
        %v2291 = vunpack.c.h.b16 %v1888
        %v2292 = vunpack.c.l.b16 %v1889
        %v2293 = vunpack.c.h.b16 %v1889
        %v2294 = vunpack.c.l.b16 %v1890
        %v2295 = vunpack.c.h.b16 %v1890
        %v2296 = vunpack.c.l.b16 %v1891
        %v2297 = vunpack.c.h.b16 %v1891
        %v2298 = vpack.c.b16 %v2046, %v2042
        %v2299 = vpack.c.b16 %v2047, %v2043
        %v2300 = vpack.c.b16 %v2048, %v2044
        %v2301 = vpack.c.b16 %v2049, %v2045
        %v2302 = vpack.c.b16 %v2054, %v2050
        %v2303 = vpack.c.b16 %v2055, %v2051
        %v2304 = vpack.c.b16 %v2056, %v2052
        %v2305 = vpack.c.b16 %v2057, %v2053
        %v2306 = vpack.c.b16 %v2062, %v2058
        %v2307 = vpack.c.b16 %v2063, %v2059
        %v2308 = vpack.c.b16 %v2064, %v2060
        %v2309 = vpack.c.b16 %v2065, %v2061
        %v2310 = vpack.c.b16 %v2070, %v2066
        %v2311 = vpack.c.b16 %v2071, %v2067
        %v2312 = vpack.c.b16 %v2072, %v2068
        %v2313 = vpack.c.b16 %v2073, %v2069
        %v2314 = vpack.c.b16 %v2078, %v2074
        %v2315 = vpack.c.b16 %v2079, %v2075
        %v2316 = vpack.c.b16 %v2080, %v2076
        %v2317 = vpack.c.b16 %v2081, %v2077
        %v2318 = vpack.c.b16 %v2086, %v2082
        %v2319 = vpack.c.b16 %v2087, %v2083
        %v2320 = vpack.c.b16 %v2088, %v2084
        %v2321 = vpack.c.b16 %v2089, %v2085
        %v2322 = vpack.c.b16 %v2094, %v2090
        %v2323 = vpack.c.b16 %v2095, %v2091
        %v2324 = vpack.c.b16 %v2096, %v2092
        %v2325 = vpack.c.b16 %v2097, %v2093
        %v2326 = vpack.c.b16 %v2102, %v2098
        %v2327 = vpack.c.b16 %v2103, %v2099
        %v2328 = vpack.c.b16 %v2104, %v2100
        %v2329 = vpack.c.b16 %v2105, %v2101
        %v2330 = vpack.c.b16 %v2110, %v2106
        %v2331 = vpack.c.b16 %v2111, %v2107
        %v2332 = vpack.c.b16 %v2112, %v2108
        %v2333 = vpack.c.b16 %v2113, %v2109
        %v2334 = vpack.c.b16 %v2118, %v2114
        %v2335 = vpack.c.b16 %v2119, %v2115
        %v2336 = vpack.c.b16 %v2120, %v2116
        %v2337 = vpack.c.b16 %v2121, %v2117
        %v2338 = vpack.c.b16 %v2126, %v2122
        %v2339 = vpack.c.b16 %v2127, %v2123
        %v2340 = vpack.c.b16 %v2128, %v2124
        %v2341 = vpack.c.b16 %v2129, %v2125
        %v2342 = vpack.c.b16 %v2134, %v2130
        %v2343 = vpack.c.b16 %v2135, %v2131
        %v2344 = vpack.c.b16 %v2136, %v2132
        %v2345 = vpack.c.b16 %v2137, %v2133
        %v2346 = vpack.c.b16 %v2142, %v2138
        %v2347 = vpack.c.b16 %v2143, %v2139
        %v2348 = vpack.c.b16 %v2144, %v2140
        %v2349 = vpack.c.b16 %v2145, %v2141
        %v2350 = vpack.c.b16 %v2150, %v2146
        %v2351 = vpack.c.b16 %v2151, %v2147
        %v2352 = vpack.c.b16 %v2152, %v2148
        %v2353 = vpack.c.b16 %v2153, %v2149
        %v2354 = vpack.c.b16 %v2158, %v2154
        %v2355 = vpack.c.b16 %v2159, %v2155
        %v2356 = vpack.c.b16 %v2160, %v2156
        %v2357 = vpack.c.b16 %v2161, %v2157
        %v2358 = vpack.c.b16 %v2166, %v2162
        %v2359 = vpack.c.b16 %v2167, %v2163
        %v2360 = vpack.c.b16 %v2168, %v2164
        %v2361 = vpack.c.b16 %v2169, %v2165
        %v2362 = vpack.c.b16 %v2174, %v2170
        %v2363 = vpack.c.b16 %v2175, %v2171
        %v2364 = vpack.c.b16 %v2176, %v2172
        %v2365 = vpack.c.b16 %v2177, %v2173
        %v2366 = vpack.c.b16 %v2182, %v2178
        %v2367 = vpack.c.b16 %v2183, %v2179
        %v2368 = vpack.c.b16 %v2184, %v2180
        %v2369 = vpack.c.b16 %v2185, %v2181
        %v2370 = vpack.c.b16 %v2190, %v2186
        %v2371 = vpack.c.b16 %v2191, %v2187
        %v2372 = vpack.c.b16 %v2192, %v2188
        %v2373 = vpack.c.b16 %v2193, %v2189
        %v2374 = vpack.c.b16 %v2198, %v2194
        %v2375 = vpack.c.b16 %v2199, %v2195
        %v2376 = vpack.c.b16 %v2200, %v2196
        %v2377 = vpack.c.b16 %v2201, %v2197
        %v2378 = vpack.c.b16 %v2206, %v2202
        %v2379 = vpack.c.b16 %v2207, %v2203
        %v2380 = vpack.c.b16 %v2208, %v2204
        %v2381 = vpack.c.b16 %v2209, %v2205
        %v2382 = vpack.c.b16 %v2214, %v2210
        %v2383 = vpack.c.b16 %v2215, %v2211
        %v2384 = vpack.c.b16 %v2216, %v2212
        %v2385 = vpack.c.b16 %v2217, %v2213
        %v2386 = vpack.c.b16 %v2222, %v2218
        %v2387 = vpack.c.b16 %v2223, %v2219
        %v2388 = vpack.c.b16 %v2224, %v2220
        %v2389 = vpack.c.b16 %v2225, %v2221
        %v2390 = vpack.c.b16 %v2230, %v2226
        %v2391 = vpack.c.b16 %v2231, %v2227
        %v2392 = vpack.c.b16 %v2232, %v2228
        %v2393 = vpack.c.b16 %v2233, %v2229
        %v2394 = vpack.c.b16 %v2238, %v2234
        %v2395 = vpack.c.b16 %v2239, %v2235
        %v2396 = vpack.c.b16 %v2240, %v2236
        %v2397 = vpack.c.b16 %v2241, %v2237
        %v2398 = vpack.c.b16 %v2246, %v2242
        %v2399 = vpack.c.b16 %v2247, %v2243
        %v2400 = vpack.c.b16 %v2248, %v2244
        %v2401 = vpack.c.b16 %v2249, %v2245
        %v2402 = vpack.c.b16 %v2254, %v2250
        %v2403 = vpack.c.b16 %v2255, %v2251
        %v2404 = vpack.c.b16 %v2256, %v2252
        %v2405 = vpack.c.b16 %v2257, %v2253
        %v2406 = vpack.c.b16 %v2262, %v2258
        %v2407 = vpack.c.b16 %v2263, %v2259
        %v2408 = vpack.c.b16 %v2264, %v2260
        %v2409 = vpack.c.b16 %v2265, %v2261
        %v2410 = vpack.c.b16 %v2270, %v2266
        %v2411 = vpack.c.b16 %v2271, %v2267
        %v2412 = vpack.c.b16 %v2272, %v2268
        %v2413 = vpack.c.b16 %v2273, %v2269
        %v2414 = vpack.c.b16 %v2278, %v2274
        %v2415 = vpack.c.b16 %v2279, %v2275
        %v2416 = vpack.c.b16 %v2280, %v2276
        %v2417 = vpack.c.b16 %v2281, %v2277
        %v2418 = vpack.c.b16 %v2286, %v2282
        %v2419 = vpack.c.b16 %v2287, %v2283
        %v2420 = vpack.c.b16 %v2288, %v2284
        %v2421 = vpack.c.b16 %v2289, %v2285
        %v2422 = vpack.c.b16 %v2294, %v2290
        %v2423 = vpack.c.b16 %v2295, %v2291
        %v2424 = vpack.c.b16 %v2296, %v2292
        %v2425 = vpack.c.b16 %v2297, %v2293
        %2554 = vmatprep.subr.bf16.mxu0 %v2299
        %2555 = vmatpush1.bf16.msra.mxu0 %v2298
        %2556 = vmatprep.subr.bf16.mxu0 %v2303
        %2557 = vmatpush1.bf16.msra.mxu0 %v2302
        %2558 = vmatprep.subr.bf16.mxu0 %v2307
        %2559 = vmatpush1.bf16.msra.mxu0 %v2306
        %2560 = vmatprep.subr.bf16.mxu0 %v2311
        %2561 = vmatpush1.bf16.msra.mxu0 %v2310
        %2562 = vmatprep.subr.bf16.mxu0 %v2315
        %2563 = vmatpush1.bf16.msra.mxu0 %v2314
        %2564 = vmatprep.subr.bf16.mxu0 %v2319
        %2565 = vmatpush1.bf16.msra.mxu0 %v2318
        %2566 = vmatprep.subr.bf16.mxu0 %v2323
        %2567 = vmatpush1.bf16.msra.mxu0 %v2322
        %2568 = vmatprep.subr.bf16.mxu0 %v2327
        %2569 = vmatpush1.bf16.msra.mxu0 %v2326
        %2570 = vmatprep.subr.bf16.mxu0 %v2331
        %2571 = vmatpush1.bf16.msra.mxu0 %v2330
        %2572 = vmatprep.subr.bf16.mxu0 %v2335
        %2573 = vmatpush1.bf16.msra.mxu0 %v2334
        %2574 = vmatprep.subr.bf16.mxu0 %v2339
        %2575 = vmatpush1.bf16.msra.mxu0 %v2338
        %2576 = vmatprep.subr.bf16.mxu0 %v2343
        %2577 = vmatpush1.bf16.msra.mxu0 %v2342
        %2578 = vmatprep.subr.bf16.mxu0 %v2347
        %2579 = vmatpush1.bf16.msra.mxu0 %v2346
        %2580 = vmatprep.subr.bf16.mxu0 %v2351
        %2581 = vmatpush1.bf16.msra.mxu0 %v2350
        %2582 = vmatprep.subr.bf16.mxu0 %v2355
        %2583 = vmatpush1.bf16.msra.mxu0 %v2354
        %2584 = vmatprep.subr.bf16.mxu0 %v2359
        %2585 = vmatpush1.bf16.msra.mxu0 %v2358
        %2586 = vmatprep.mubr.bf16.mxu0 %v1761
        %2587 = vmatmul.mubr.bf16.gmra.mrb[0].mxu0 %v1760
        %v2588 = vpop.f32.mrb[0].mxu0
        %v2589 = vadd.f32 %v1897, %v2588
        %v2590 = vpop.f32.mrb[0].mxu0
        %v2591 = vadd.f32 %v1901, %v2590
        %v2592 = vpop.f32.mrb[0].mxu0
        %v2593 = vpop.f32.mrb[0].mxu0
        %2594 = vdwg.mxu0
        %2595 = vmatprep.subr.bf16.mxu0 %v2363
        %2596 = vmatpush1.bf16.msra.mxu0 %v2362
        %2597 = vmatprep.subr.bf16.mxu0 %v2367
        %2598 = vmatpush1.bf16.msra.mxu0 %v2366
        %2599 = vmatprep.subr.bf16.mxu0 %v2371
        %2600 = vmatpush1.bf16.msra.mxu0 %v2370
        %2601 = vmatprep.subr.bf16.mxu0 %v2375
        %2602 = vmatpush1.bf16.msra.mxu0 %v2374
        %2603 = vmatprep.subr.bf16.mxu0 %v2379
        %2604 = vmatpush1.bf16.msra.mxu0 %v2378
        %2605 = vmatprep.subr.bf16.mxu0 %v2383
        %2606 = vmatpush1.bf16.msra.mxu0 %v2382
        %2607 = vmatprep.subr.bf16.mxu0 %v2387
        %2608 = vmatpush1.bf16.msra.mxu0 %v2386
        %2609 = vmatprep.subr.bf16.mxu0 %v2391
        %2610 = vmatpush1.bf16.msra.mxu0 %v2390
        %2611 = vmatprep.subr.bf16.mxu0 %v2395
        %2612 = vmatpush1.bf16.msra.mxu0 %v2394
        %2613 = vmatprep.subr.bf16.mxu0 %v2399
        %2614 = vmatpush1.bf16.msra.mxu0 %v2398
        %2615 = vmatprep.subr.bf16.mxu0 %v2403
        %2616 = vmatpush1.bf16.msra.mxu0 %v2402
        %2617 = vmatprep.subr.bf16.mxu0 %v2407
        %2618 = vmatpush1.bf16.msra.mxu0 %v2406
        %2619 = vmatprep.subr.bf16.mxu0 %v2411
        %2620 = vmatpush1.bf16.msra.mxu0 %v2410
        %2621 = vmatprep.subr.bf16.mxu0 %v2415
        %2622 = vmatpush1.bf16.msra.mxu0 %v2414
        %2623 = vmatprep.subr.bf16.mxu0 %v2419
        %2624 = vmatpush1.bf16.msra.mxu0 %v2418
        %2625 = vmatprep.subr.bf16.mxu0 %v2423
        %2626 = vmatpush1.bf16.msra.mxu0 %v2422
        %2627 = vmatprep.mubr.bf16.mxu0 %v1763
        %2628 = vmatmul.mubr.bf16.gmra.mrb[0].mxu0 %v1762
        %v2629 = vpop.f32.mrb[0].mxu0
        %v2630 = vadd.f32 %v2589, %v2629
        %v2631 = vpop.f32.mrb[0].mxu0
        %v2632 = vadd.f32 %v2591, %v2631
        %v2633 = vpop.f32.mrb[0].mxu0
        %v2634 = vpop.f32.mrb[0].mxu0
        %2635 = vdwg.mxu0
        %2636 = vmatprep.subr.bf16.mxu0 %v2301
        %2637 = vmatpush1.bf16.msra.mxu0 %v2300
        %2638 = vmatprep.subr.bf16.mxu0 %v2305
        %2639 = vmatpush1.bf16.msra.mxu0 %v2304
        %2640 = vmatprep.subr.bf16.mxu0 %v2309
        %2641 = vmatpush1.bf16.msra.mxu0 %v2308
        %2642 = vmatprep.subr.bf16.mxu0 %v2313
        %2643 = vmatpush1.bf16.msra.mxu0 %v2312
        %2644 = vmatprep.subr.bf16.mxu0 %v2317
        %2645 = vmatpush1.bf16.msra.mxu0 %v2316
        %2646 = vmatprep.subr.bf16.mxu0 %v2321
        %2647 = vmatpush1.bf16.msra.mxu0 %v2320
        %2648 = vmatprep.subr.bf16.mxu0 %v2325
        %2649 = vmatpush1.bf16.msra.mxu0 %v2324
        %2650 = vmatprep.subr.bf16.mxu0 %v2329
        %2651 = vmatpush1.bf16.msra.mxu0 %v2328
        %2652 = vmatprep.subr.bf16.mxu0 %v2333
        %2653 = vmatpush1.bf16.msra.mxu0 %v2332
        %2654 = vmatprep.subr.bf16.mxu0 %v2337
        %2655 = vmatpush1.bf16.msra.mxu0 %v2336
        %2656 = vmatprep.subr.bf16.mxu0 %v2341
        %2657 = vmatpush1.bf16.msra.mxu0 %v2340
        %2658 = vmatprep.subr.bf16.mxu0 %v2345
        %2659 = vmatpush1.bf16.msra.mxu0 %v2344
        %2660 = vmatprep.subr.bf16.mxu0 %v2349
        %2661 = vmatpush1.bf16.msra.mxu0 %v2348
        %2662 = vmatprep.subr.bf16.mxu0 %v2353
        %2663 = vmatpush1.bf16.msra.mxu0 %v2352
        %2664 = vmatprep.subr.bf16.mxu0 %v2357
        %2665 = vmatpush1.bf16.msra.mxu0 %v2356
        %2666 = vmatprep.subr.bf16.mxu0 %v2361
        %2667 = vmatpush1.bf16.msra.mxu0 %v2360
        %2668 = vmatprep.mubr.bf16.mxu0 %v1761
        %2669 = vmatmul.mubr.bf16.gmra.mrb[0].mxu0 %v1760
        %v2670 = vpop.f32.mrb[0].mxu0
        %v2671 = vadd.f32 %v1905, %v2670
        %v2672 = vpop.f32.mrb[0].mxu0
        %v2673 = vadd.f32 %v1909, %v2672
        %v2674 = vpop.f32.mrb[0].mxu0
        %v2675 = vpop.f32.mrb[0].mxu0
        %2676 = vdwg.mxu0
        %2677 = vmatprep.subr.bf16.mxu0 %v2365
        %2678 = vmatpush1.bf16.msra.mxu0 %v2364
        %2679 = vmatprep.subr.bf16.mxu0 %v2369
        %2680 = vmatpush1.bf16.msra.mxu0 %v2368
        %2681 = vmatprep.subr.bf16.mxu0 %v2373
        %2682 = vmatpush1.bf16.msra.mxu0 %v2372
        %2683 = vmatprep.subr.bf16.mxu0 %v2377
        %2684 = vmatpush1.bf16.msra.mxu0 %v2376
        %2685 = vmatprep.subr.bf16.mxu0 %v2381
        %2686 = vmatpush1.bf16.msra.mxu0 %v2380
        %2687 = vmatprep.subr.bf16.mxu0 %v2385
        %2688 = vmatpush1.bf16.msra.mxu0 %v2384
        %2689 = vmatprep.subr.bf16.mxu0 %v2389
        %2690 = vmatpush1.bf16.msra.mxu0 %v2388
        %2691 = vmatprep.subr.bf16.mxu0 %v2393
        %2692 = vmatpush1.bf16.msra.mxu0 %v2392
        %2693 = vmatprep.subr.bf16.mxu0 %v2397
        %2694 = vmatpush1.bf16.msra.mxu0 %v2396
        %2695 = vmatprep.subr.bf16.mxu0 %v2401
        %2696 = vmatpush1.bf16.msra.mxu0 %v2400
        %2697 = vmatprep.subr.bf16.mxu0 %v2405
        %2698 = vmatpush1.bf16.msra.mxu0 %v2404
        %2699 = vmatprep.subr.bf16.mxu0 %v2409
        %2700 = vmatpush1.bf16.msra.mxu0 %v2408
        %2701 = vmatprep.subr.bf16.mxu0 %v2413
        %2702 = vmatpush1.bf16.msra.mxu0 %v2412
        %2703 = vmatprep.subr.bf16.mxu0 %v2417
        %2704 = vmatpush1.bf16.msra.mxu0 %v2416
        %2705 = vmatprep.subr.bf16.mxu0 %v2421
        %2706 = vmatpush1.bf16.msra.mxu0 %v2420
        %2707 = vmatprep.subr.bf16.mxu0 %v2425
        %2708 = vmatpush1.bf16.msra.mxu0 %v2424
        %2709 = vmatprep.mubr.bf16.mxu0 %v1763
        %2710 = vmatmul.mubr.bf16.gmra.mrb[0].mxu0 %v1762
        %v2711 = vpop.f32.mrb[0].mxu0
        %v2712 = vadd.f32 %v2671, %v2711
        %v2713 = vpop.f32.mrb[0].mxu0
        %v2714 = vadd.f32 %v2673, %v2713
        %v2715 = vpop.f32.mrb[0].mxu0
        %v2716 = vpop.f32.mrb[0].mxu0
        %2717 = vdwg.mxu0
        %vm2718 = vcmp.ge.f32.partialorder %v2630, 0.0
        %vm2719 = vcmp.ge.f32.partialorder %v2632, 0.0
        %vm2720 = vcmp.ge.f32.partialorder %v2712, 0.0
        %vm2721 = vcmp.ge.f32.partialorder %v2714, 0.0
        %v2722 = vmul.f32 %v2630, 0.2
        %v2723 = vmul.f32 %v2632, 0.2
        %v2724 = vmul.f32 %v2712, 0.2
        %v2725 = vmul.f32 %v2714, 0.2
        %v2726 = vsel %vm2718, %v2630, %v2722
        %v2727 = vsel %vm2719, %v2632, %v2723
        %v2728 = vsel %vm2720, %v2712, %v2724
        %v2729 = vsel %vm2721, %v2714, %v2725
        %v2730 = vpack.c.bf16 %v2726, %v2726
        %v2731 = vpack.c.bf16 %v2727, %v2727
        %v2732 = vpack.c.bf16 %v2728, %v2728
        %v2733 = vpack.c.bf16 %v2729, %v2729
        %v2734 = vld [vmem:[%s552] sm:$0xff]
        %v2735 = vld [vmem:[%s552 + $0x8] sm:$0xff]
        %v2736 = vld [vmem:[%s552 + $0x10] sm:$0xff]
        %v2737 = vld [vmem:[%s552 + $0x18] sm:$0xff]
        %v2738 = vld [vmem:[%s552 + $0x20] sm:$0xff]
        %v2739 = vld [vmem:[%s552 + $0x28] sm:$0xff]
        %v2740 = vld [vmem:[%s552 + $0x30] sm:$0xff]
        %v2741 = vld [vmem:[%s552 + $0x38] sm:$0xff]
        %v2742 = vld [vmem:[%s552 + $0x40] sm:$0xff]
        %v2743 = vld [vmem:[%s552 + $0x48] sm:$0xff]
        %v2744 = vld [vmem:[%s552 + $0x50] sm:$0xff]
        %v2745 = vld [vmem:[%s552 + $0x58] sm:$0xff]
        %v2746 = vld [vmem:[%s552 + $0x60] sm:$0xff]
        %v2747 = vld [vmem:[%s552 + $0x68] sm:$0xff]
        %v2748 = vld [vmem:[%s552 + $0x70] sm:$0xff]
        %v2749 = vld [vmem:[%s552 + $0x78] sm:$0xff]
        %v2750 = vld [vmem:[%s552 + $0x80] sm:$0xff]
        %v2751 = vld [vmem:[%s552 + $0x88] sm:$0xff]
        %v2752 = vld [vmem:[%s552 + $0x90] sm:$0xff]
        %v2753 = vld [vmem:[%s552 + $0x98] sm:$0xff]
        %v2754 = vld [vmem:[%s552 + $0xa0] sm:$0xff]
        %v2755 = vld [vmem:[%s552 + $0xa8] sm:$0xff]
        %v2756 = vld [vmem:[%s552 + $0xb0] sm:$0xff]
        %v2757 = vld [vmem:[%s552 + $0xb8] sm:$0xff]
        %v2758 = vld [vmem:[%s552 + $0xc0] sm:$0xff]
        %v2759 = vld [vmem:[%s552 + $0xc8] sm:$0xff]
        %v2760 = vld [vmem:[%s552 + $0xd0] sm:$0xff]
        %v2761 = vld [vmem:[%s552 + $0xd8] sm:$0xff]
        %v2762 = vld [vmem:[%s552 + $0xe0] sm:$0xff]
        %v2763 = vld [vmem:[%s552 + $0xe8] sm:$0xff]
        %v2764 = vld [vmem:[%s552 + $0xf0] sm:$0xff]
        %v2765 = vld [vmem:[%s552 + $0xf8] sm:$0xff]
        %v2766 = vld [vmem:[%s552 + $0x100] sm:$0xff]
        %v2767 = vld [vmem:[%s552 + $0x108] sm:$0xff]
        %v2768 = vld [vmem:[%s552 + $0x110] sm:$0xff]
        %v2769 = vld [vmem:[%s552 + $0x118] sm:$0xff]
        %v2770 = vld [vmem:[%s552 + $0x120] sm:$0xff]
        %v2771 = vld [vmem:[%s552 + $0x128] sm:$0xff]
        %v2772 = vld [vmem:[%s552 + $0x130] sm:$0xff]
        %v2773 = vld [vmem:[%s552 + $0x138] sm:$0xff]
        %v2774 = vld [vmem:[%s552 + $0x140] sm:$0xff]
        %v2775 = vld [vmem:[%s552 + $0x148] sm:$0xff]
        %v2776 = vld [vmem:[%s552 + $0x150] sm:$0xff]
        %v2777 = vld [vmem:[%s552 + $0x158] sm:$0xff]
        %v2778 = vld [vmem:[%s552 + $0x160] sm:$0xff]
        %v2779 = vld [vmem:[%s552 + $0x168] sm:$0xff]
        %v2780 = vld [vmem:[%s552 + $0x170] sm:$0xff]
        %v2781 = vld [vmem:[%s552 + $0x178] sm:$0xff]
        %v2782 = vld [vmem:[%s552 + $0x180] sm:$0xff]
        %v2783 = vld [vmem:[%s552 + $0x188] sm:$0xff]
        %v2784 = vld [vmem:[%s552 + $0x190] sm:$0xff]
        %v2785 = vld [vmem:[%s552 + $0x198] sm:$0xff]
        %v2786 = vld [vmem:[%s552 + $0x1a0] sm:$0xff]
        %v2787 = vld [vmem:[%s552 + $0x1a8] sm:$0xff]
        %v2788 = vld [vmem:[%s552 + $0x1b0] sm:$0xff]
        %v2789 = vld [vmem:[%s552 + $0x1b8] sm:$0xff]
        %v2790 = vld [vmem:[%s552 + $0x1c0] sm:$0xff]
        %v2791 = vld [vmem:[%s552 + $0x1c8] sm:$0xff]
        %v2792 = vld [vmem:[%s552 + $0x1d0] sm:$0xff]
        %v2793 = vld [vmem:[%s552 + $0x1d8] sm:$0xff]
        %v2794 = vld [vmem:[%s552 + $0x1e0] sm:$0xff]
        %v2795 = vld [vmem:[%s552 + $0x1e8] sm:$0xff]
        %v2796 = vld [vmem:[%s552 + $0x1f0] sm:$0xff]
        %v2797 = vld [vmem:[%s552 + $0x1f8] sm:$0xff]
        %v2798 = vld [vmem:[%s552 + $0x200] sm:$0xff]
        %v2799 = vld [vmem:[%s552 + $0x208] sm:$0xff]
        %v2800 = vld [vmem:[%s552 + $0x210] sm:$0xff]
        %v2801 = vld [vmem:[%s552 + $0x218] sm:$0xff]
        %v2802 = vld [vmem:[%s552 + $0x220] sm:$0xff]
        %v2803 = vld [vmem:[%s552 + $0x228] sm:$0xff]
        %v2804 = vld [vmem:[%s552 + $0x230] sm:$0xff]
        %v2805 = vld [vmem:[%s552 + $0x238] sm:$0xff]
        %v2806 = vld [vmem:[%s552 + $0x240] sm:$0xff]
        %v2807 = vld [vmem:[%s552 + $0x248] sm:$0xff]
        %v2808 = vld [vmem:[%s552 + $0x250] sm:$0xff]
        %v2809 = vld [vmem:[%s552 + $0x258] sm:$0xff]
        %v2810 = vld [vmem:[%s552 + $0x260] sm:$0xff]
        %v2811 = vld [vmem:[%s552 + $0x268] sm:$0xff]
        %v2812 = vld [vmem:[%s552 + $0x270] sm:$0xff]
        %v2813 = vld [vmem:[%s552 + $0x278] sm:$0xff]
        %v2814 = vld [vmem:[%s552 + $0x280] sm:$0xff]
        %v2815 = vld [vmem:[%s552 + $0x288] sm:$0xff]
        %v2816 = vld [vmem:[%s552 + $0x290] sm:$0xff]
        %v2817 = vld [vmem:[%s552 + $0x298] sm:$0xff]
        %v2818 = vld [vmem:[%s552 + $0x2a0] sm:$0xff]
        %v2819 = vld [vmem:[%s552 + $0x2a8] sm:$0xff]
        %v2820 = vld [vmem:[%s552 + $0x2b0] sm:$0xff]
        %v2821 = vld [vmem:[%s552 + $0x2b8] sm:$0xff]
        %v2822 = vld [vmem:[%s552 + $0x2c0] sm:$0xff]
        %v2823 = vld [vmem:[%s552 + $0x2c8] sm:$0xff]
        %v2824 = vld [vmem:[%s552 + $0x2d0] sm:$0xff]
        %v2825 = vld [vmem:[%s552 + $0x2d8] sm:$0xff]
        %v2826 = vld [vmem:[%s552 + $0x2e0] sm:$0xff]
        %v2827 = vld [vmem:[%s552 + $0x2e8] sm:$0xff]
        %v2828 = vld [vmem:[%s552 + $0x2f0] sm:$0xff]
        %v2829 = vld [vmem:[%s552 + $0x2f8] sm:$0xff]
        %v2830 = vld [vmem:[%s552 + $0x300] sm:$0xff]
        %v2831 = vld [vmem:[%s552 + $0x308] sm:$0xff]
        %v2832 = vld [vmem:[%s552 + $0x310] sm:$0xff]
        %v2833 = vld [vmem:[%s552 + $0x318] sm:$0xff]
        %v2834 = vld [vmem:[%s552 + $0x320] sm:$0xff]
        %v2835 = vld [vmem:[%s552 + $0x328] sm:$0xff]
        %v2836 = vld [vmem:[%s552 + $0x330] sm:$0xff]
        %v2837 = vld [vmem:[%s552 + $0x338] sm:$0xff]
        %v2838 = vld [vmem:[%s552 + $0x340] sm:$0xff]
        %v2839 = vld [vmem:[%s552 + $0x348] sm:$0xff]
        %v2840 = vld [vmem:[%s552 + $0x350] sm:$0xff]
        %v2841 = vld [vmem:[%s552 + $0x358] sm:$0xff]
        %v2842 = vld [vmem:[%s552 + $0x360] sm:$0xff]
        %v2843 = vld [vmem:[%s552 + $0x368] sm:$0xff]
        %v2844 = vld [vmem:[%s552 + $0x370] sm:$0xff]
        %v2845 = vld [vmem:[%s552 + $0x378] sm:$0xff]
        %v2846 = vld [vmem:[%s552 + $0x380] sm:$0xff]
        %v2847 = vld [vmem:[%s552 + $0x388] sm:$0xff]
        %v2848 = vld [vmem:[%s552 + $0x390] sm:$0xff]
        %v2849 = vld [vmem:[%s552 + $0x398] sm:$0xff]
        %v2850 = vld [vmem:[%s552 + $0x3a0] sm:$0xff]
        %v2851 = vld [vmem:[%s552 + $0x3a8] sm:$0xff]
        %v2852 = vld [vmem:[%s552 + $0x3b0] sm:$0xff]
        %v2853 = vld [vmem:[%s552 + $0x3b8] sm:$0xff]
        %v2854 = vld [vmem:[%s552 + $0x3c0] sm:$0xff]
        %v2855 = vld [vmem:[%s552 + $0x3c8] sm:$0xff]
        %v2856 = vld [vmem:[%s552 + $0x3d0] sm:$0xff]
        %v2857 = vld [vmem:[%s552 + $0x3d8] sm:$0xff]
        %v2858 = vld [vmem:[%s552 + $0x3e0] sm:$0xff]
        %v2859 = vld [vmem:[%s552 + $0x3e8] sm:$0xff]
        %v2860 = vld [vmem:[%s552 + $0x3f0] sm:$0xff]
        %v2861 = vld [vmem:[%s552 + $0x3f8] sm:$0xff]
        %v2862 = vld [vmem:[%s561] sm:$0xf]
        %v2864 = vlaneseq
        %v2865 = vshrl.u32 %v2864, 7
        %v2866 = vsub.s32 0, %v2865
        %v2867 = vrot.slane %v2862, %v2866
        %v2868 = vlaneseq
        %v2869 = vshrl.u32 %v2868, 7
        %v2870 = vsub.s32 1, %v2869
        %v2871 = vrot.slane %v2862, %v2870
        %v2872 = vlaneseq
        %v2873 = vshrl.u32 %v2872, 7
        %v2874 = vsub.s32 2, %v2873
        %v2875 = vrot.slane %v2862, %v2874
        %v2876 = vlaneseq
        %v2877 = vshrl.u32 %v2876, 7
        %v2878 = vsub.s32 3, %v2877
        %v2879 = vrot.slane %v2862, %v2878
        %v3012 = vunpack.c.l.b16 %v2734
        %v3013 = vunpack.c.h.b16 %v2734
        %v3014 = vunpack.c.l.b16 %v2735
        %v3015 = vunpack.c.h.b16 %v2735
        %v3016 = vunpack.c.l.b16 %v2736
        %v3017 = vunpack.c.h.b16 %v2736
        %v3018 = vunpack.c.l.b16 %v2737
        %v3019 = vunpack.c.h.b16 %v2737
        %v3020 = vunpack.c.l.b16 %v2738
        %v3021 = vunpack.c.h.b16 %v2738
        %v3022 = vunpack.c.l.b16 %v2739
        %v3023 = vunpack.c.h.b16 %v2739
        %v3024 = vunpack.c.l.b16 %v2740
        %v3025 = vunpack.c.h.b16 %v2740
        %v3026 = vunpack.c.l.b16 %v2741
        %v3027 = vunpack.c.h.b16 %v2741
        %v3028 = vunpack.c.l.b16 %v2742
        %v3029 = vunpack.c.h.b16 %v2742
        %v3030 = vunpack.c.l.b16 %v2743
        %v3031 = vunpack.c.h.b16 %v2743
        %v3032 = vunpack.c.l.b16 %v2744
        %v3033 = vunpack.c.h.b16 %v2744
        %v3034 = vunpack.c.l.b16 %v2745
        %v3035 = vunpack.c.h.b16 %v2745
        %v3036 = vunpack.c.l.b16 %v2746
        %v3037 = vunpack.c.h.b16 %v2746
        %v3038 = vunpack.c.l.b16 %v2747
        %v3039 = vunpack.c.h.b16 %v2747
        %v3040 = vunpack.c.l.b16 %v2748
        %v3041 = vunpack.c.h.b16 %v2748
        %v3042 = vunpack.c.l.b16 %v2749
        %v3043 = vunpack.c.h.b16 %v2749
        %v3044 = vunpack.c.l.b16 %v2750
        %v3045 = vunpack.c.h.b16 %v2750
        %v3046 = vunpack.c.l.b16 %v2751
        %v3047 = vunpack.c.h.b16 %v2751
        %v3048 = vunpack.c.l.b16 %v2752
        %v3049 = vunpack.c.h.b16 %v2752
        %v3050 = vunpack.c.l.b16 %v2753
        %v3051 = vunpack.c.h.b16 %v2753
        %v3052 = vunpack.c.l.b16 %v2754
        %v3053 = vunpack.c.h.b16 %v2754
        %v3054 = vunpack.c.l.b16 %v2755
        %v3055 = vunpack.c.h.b16 %v2755
        %v3056 = vunpack.c.l.b16 %v2756
        %v3057 = vunpack.c.h.b16 %v2756
        %v3058 = vunpack.c.l.b16 %v2757
        %v3059 = vunpack.c.h.b16 %v2757
        %v3060 = vunpack.c.l.b16 %v2758
        %v3061 = vunpack.c.h.b16 %v2758
        %v3062 = vunpack.c.l.b16 %v2759
        %v3063 = vunpack.c.h.b16 %v2759
        %v3064 = vunpack.c.l.b16 %v2760
        %v3065 = vunpack.c.h.b16 %v2760
        %v3066 = vunpack.c.l.b16 %v2761
        %v3067 = vunpack.c.h.b16 %v2761
        %v3068 = vunpack.c.l.b16 %v2762
        %v3069 = vunpack.c.h.b16 %v2762
        %v3070 = vunpack.c.l.b16 %v2763
        %v3071 = vunpack.c.h.b16 %v2763
        %v3072 = vunpack.c.l.b16 %v2764
        %v3073 = vunpack.c.h.b16 %v2764
        %v3074 = vunpack.c.l.b16 %v2765
        %v3075 = vunpack.c.h.b16 %v2765
        %v3076 = vunpack.c.l.b16 %v2766
        %v3077 = vunpack.c.h.b16 %v2766
        %v3078 = vunpack.c.l.b16 %v2767
        %v3079 = vunpack.c.h.b16 %v2767
        %v3080 = vunpack.c.l.b16 %v2768
        %v3081 = vunpack.c.h.b16 %v2768
        %v3082 = vunpack.c.l.b16 %v2769
        %v3083 = vunpack.c.h.b16 %v2769
        %v3084 = vunpack.c.l.b16 %v2770
        %v3085 = vunpack.c.h.b16 %v2770
        %v3086 = vunpack.c.l.b16 %v2771
        %v3087 = vunpack.c.h.b16 %v2771
        %v3088 = vunpack.c.l.b16 %v2772
        %v3089 = vunpack.c.h.b16 %v2772
        %v3090 = vunpack.c.l.b16 %v2773
        %v3091 = vunpack.c.h.b16 %v2773
        %v3092 = vunpack.c.l.b16 %v2774
        %v3093 = vunpack.c.h.b16 %v2774
        %v3094 = vunpack.c.l.b16 %v2775
        %v3095 = vunpack.c.h.b16 %v2775
        %v3096 = vunpack.c.l.b16 %v2776
        %v3097 = vunpack.c.h.b16 %v2776
        %v3098 = vunpack.c.l.b16 %v2777
        %v3099 = vunpack.c.h.b16 %v2777
        %v3100 = vunpack.c.l.b16 %v2778
        %v3101 = vunpack.c.h.b16 %v2778
        %v3102 = vunpack.c.l.b16 %v2779
        %v3103 = vunpack.c.h.b16 %v2779
        %v3104 = vunpack.c.l.b16 %v2780
        %v3105 = vunpack.c.h.b16 %v2780
        %v3106 = vunpack.c.l.b16 %v2781
        %v3107 = vunpack.c.h.b16 %v2781
        %v3108 = vunpack.c.l.b16 %v2782
        %v3109 = vunpack.c.h.b16 %v2782
        %v3110 = vunpack.c.l.b16 %v2783
        %v3111 = vunpack.c.h.b16 %v2783
        %v3112 = vunpack.c.l.b16 %v2784
        %v3113 = vunpack.c.h.b16 %v2784
        %v3114 = vunpack.c.l.b16 %v2785
        %v3115 = vunpack.c.h.b16 %v2785
        %v3116 = vunpack.c.l.b16 %v2786
        %v3117 = vunpack.c.h.b16 %v2786
        %v3118 = vunpack.c.l.b16 %v2787
        %v3119 = vunpack.c.h.b16 %v2787
        %v3120 = vunpack.c.l.b16 %v2788
        %v3121 = vunpack.c.h.b16 %v2788
        %v3122 = vunpack.c.l.b16 %v2789
        %v3123 = vunpack.c.h.b16 %v2789
        %v3124 = vunpack.c.l.b16 %v2790
        %v3125 = vunpack.c.h.b16 %v2790
        %v3126 = vunpack.c.l.b16 %v2791
        %v3127 = vunpack.c.h.b16 %v2791
        %v3128 = vunpack.c.l.b16 %v2792
        %v3129 = vunpack.c.h.b16 %v2792
        %v3130 = vunpack.c.l.b16 %v2793
        %v3131 = vunpack.c.h.b16 %v2793
        %v3132 = vunpack.c.l.b16 %v2794
        %v3133 = vunpack.c.h.b16 %v2794
        %v3134 = vunpack.c.l.b16 %v2795
        %v3135 = vunpack.c.h.b16 %v2795
        %v3136 = vunpack.c.l.b16 %v2796
        %v3137 = vunpack.c.h.b16 %v2796
        %v3138 = vunpack.c.l.b16 %v2797
        %v3139 = vunpack.c.h.b16 %v2797
        %v3140 = vunpack.c.l.b16 %v2798
        %v3141 = vunpack.c.h.b16 %v2798
        %v3142 = vunpack.c.l.b16 %v2799
        %v3143 = vunpack.c.h.b16 %v2799
        %v3144 = vunpack.c.l.b16 %v2800
        %v3145 = vunpack.c.h.b16 %v2800
        %v3146 = vunpack.c.l.b16 %v2801
        %v3147 = vunpack.c.h.b16 %v2801
        %v3148 = vunpack.c.l.b16 %v2802
        %v3149 = vunpack.c.h.b16 %v2802
        %v3150 = vunpack.c.l.b16 %v2803
        %v3151 = vunpack.c.h.b16 %v2803
        %v3152 = vunpack.c.l.b16 %v2804
        %v3153 = vunpack.c.h.b16 %v2804
        %v3154 = vunpack.c.l.b16 %v2805
        %v3155 = vunpack.c.h.b16 %v2805
        %v3156 = vunpack.c.l.b16 %v2806
        %v3157 = vunpack.c.h.b16 %v2806
        %v3158 = vunpack.c.l.b16 %v2807
        %v3159 = vunpack.c.h.b16 %v2807
        %v3160 = vunpack.c.l.b16 %v2808
        %v3161 = vunpack.c.h.b16 %v2808
        %v3162 = vunpack.c.l.b16 %v2809
        %v3163 = vunpack.c.h.b16 %v2809
        %v3164 = vunpack.c.l.b16 %v2810
        %v3165 = vunpack.c.h.b16 %v2810
        %v3166 = vunpack.c.l.b16 %v2811
        %v3167 = vunpack.c.h.b16 %v2811
        %v3168 = vunpack.c.l.b16 %v2812
        %v3169 = vunpack.c.h.b16 %v2812
        %v3170 = vunpack.c.l.b16 %v2813
        %v3171 = vunpack.c.h.b16 %v2813
        %v3172 = vunpack.c.l.b16 %v2814
        %v3173 = vunpack.c.h.b16 %v2814
        %v3174 = vunpack.c.l.b16 %v2815
        %v3175 = vunpack.c.h.b16 %v2815
        %v3176 = vunpack.c.l.b16 %v2816
        %v3177 = vunpack.c.h.b16 %v2816
        %v3178 = vunpack.c.l.b16 %v2817
        %v3179 = vunpack.c.h.b16 %v2817
        %v3180 = vunpack.c.l.b16 %v2818
        %v3181 = vunpack.c.h.b16 %v2818
        %v3182 = vunpack.c.l.b16 %v2819
        %v3183 = vunpack.c.h.b16 %v2819
        %v3184 = vunpack.c.l.b16 %v2820
        %v3185 = vunpack.c.h.b16 %v2820
        %v3186 = vunpack.c.l.b16 %v2821
        %v3187 = vunpack.c.h.b16 %v2821
        %v3188 = vunpack.c.l.b16 %v2822
        %v3189 = vunpack.c.h.b16 %v2822
        %v3190 = vunpack.c.l.b16 %v2823
        %v3191 = vunpack.c.h.b16 %v2823
        %v3192 = vunpack.c.l.b16 %v2824
        %v3193 = vunpack.c.h.b16 %v2824
        %v3194 = vunpack.c.l.b16 %v2825
        %v3195 = vunpack.c.h.b16 %v2825
        %v3196 = vunpack.c.l.b16 %v2826
        %v3197 = vunpack.c.h.b16 %v2826
        %v3198 = vunpack.c.l.b16 %v2827
        %v3199 = vunpack.c.h.b16 %v2827
        %v3200 = vunpack.c.l.b16 %v2828
        %v3201 = vunpack.c.h.b16 %v2828
        %v3202 = vunpack.c.l.b16 %v2829
        %v3203 = vunpack.c.h.b16 %v2829
        %v3204 = vunpack.c.l.b16 %v2830
        %v3205 = vunpack.c.h.b16 %v2830
        %v3206 = vunpack.c.l.b16 %v2831
        %v3207 = vunpack.c.h.b16 %v2831
        %v3208 = vunpack.c.l.b16 %v2832
        %v3209 = vunpack.c.h.b16 %v2832
        %v3210 = vunpack.c.l.b16 %v2833
        %v3211 = vunpack.c.h.b16 %v2833
        %v3212 = vunpack.c.l.b16 %v2834
        %v3213 = vunpack.c.h.b16 %v2834
        %v3214 = vunpack.c.l.b16 %v2835
        %v3215 = vunpack.c.h.b16 %v2835
        %v3216 = vunpack.c.l.b16 %v2836
        %v3217 = vunpack.c.h.b16 %v2836
        %v3218 = vunpack.c.l.b16 %v2837
        %v3219 = vunpack.c.h.b16 %v2837
        %v3220 = vunpack.c.l.b16 %v2838
        %v3221 = vunpack.c.h.b16 %v2838
        %v3222 = vunpack.c.l.b16 %v2839
        %v3223 = vunpack.c.h.b16 %v2839
        %v3224 = vunpack.c.l.b16 %v2840
        %v3225 = vunpack.c.h.b16 %v2840
        %v3226 = vunpack.c.l.b16 %v2841
        %v3227 = vunpack.c.h.b16 %v2841
        %v3228 = vunpack.c.l.b16 %v2842
        %v3229 = vunpack.c.h.b16 %v2842
        %v3230 = vunpack.c.l.b16 %v2843
        %v3231 = vunpack.c.h.b16 %v2843
        %v3232 = vunpack.c.l.b16 %v2844
        %v3233 = vunpack.c.h.b16 %v2844
        %v3234 = vunpack.c.l.b16 %v2845
        %v3235 = vunpack.c.h.b16 %v2845
        %v3236 = vunpack.c.l.b16 %v2846
        %v3237 = vunpack.c.h.b16 %v2846
        %v3238 = vunpack.c.l.b16 %v2847
        %v3239 = vunpack.c.h.b16 %v2847
        %v3240 = vunpack.c.l.b16 %v2848
        %v3241 = vunpack.c.h.b16 %v2848
        %v3242 = vunpack.c.l.b16 %v2849
        %v3243 = vunpack.c.h.b16 %v2849
        %v3244 = vunpack.c.l.b16 %v2850
        %v3245 = vunpack.c.h.b16 %v2850
        %v3246 = vunpack.c.l.b16 %v2851
        %v3247 = vunpack.c.h.b16 %v2851
        %v3248 = vunpack.c.l.b16 %v2852
        %v3249 = vunpack.c.h.b16 %v2852
        %v3250 = vunpack.c.l.b16 %v2853
        %v3251 = vunpack.c.h.b16 %v2853
        %v3252 = vunpack.c.l.b16 %v2854
        %v3253 = vunpack.c.h.b16 %v2854
        %v3254 = vunpack.c.l.b16 %v2855
        %v3255 = vunpack.c.h.b16 %v2855
        %v3256 = vunpack.c.l.b16 %v2856
        %v3257 = vunpack.c.h.b16 %v2856
        %v3258 = vunpack.c.l.b16 %v2857
        %v3259 = vunpack.c.h.b16 %v2857
        %v3260 = vunpack.c.l.b16 %v2858
        %v3261 = vunpack.c.h.b16 %v2858
        %v3262 = vunpack.c.l.b16 %v2859
        %v3263 = vunpack.c.h.b16 %v2859
        %v3264 = vunpack.c.l.b16 %v2860
        %v3265 = vunpack.c.h.b16 %v2860
        %v3266 = vunpack.c.l.b16 %v2861
        %v3267 = vunpack.c.h.b16 %v2861
        %v3268 = vpack.c.b16 %v3016, %v3012
        %v3269 = vpack.c.b16 %v3017, %v3013
        %v3270 = vpack.c.b16 %v3018, %v3014
        %v3271 = vpack.c.b16 %v3019, %v3015
        %v3272 = vpack.c.b16 %v3024, %v3020
        %v3273 = vpack.c.b16 %v3025, %v3021
        %v3274 = vpack.c.b16 %v3026, %v3022
        %v3275 = vpack.c.b16 %v3027, %v3023
        %v3276 = vpack.c.b16 %v3032, %v3028
        %v3277 = vpack.c.b16 %v3033, %v3029
        %v3278 = vpack.c.b16 %v3034, %v3030
        %v3279 = vpack.c.b16 %v3035, %v3031
        %v3280 = vpack.c.b16 %v3040, %v3036
        %v3281 = vpack.c.b16 %v3041, %v3037
        %v3282 = vpack.c.b16 %v3042, %v3038
        %v3283 = vpack.c.b16 %v3043, %v3039
        %v3284 = vpack.c.b16 %v3048, %v3044
        %v3285 = vpack.c.b16 %v3049, %v3045
        %v3286 = vpack.c.b16 %v3050, %v3046
        %v3287 = vpack.c.b16 %v3051, %v3047
        %v3288 = vpack.c.b16 %v3056, %v3052
        %v3289 = vpack.c.b16 %v3057, %v3053
        %v3290 = vpack.c.b16 %v3058, %v3054
        %v3291 = vpack.c.b16 %v3059, %v3055
        %v3292 = vpack.c.b16 %v3064, %v3060
        %v3293 = vpack.c.b16 %v3065, %v3061
        %v3294 = vpack.c.b16 %v3066, %v3062
        %v3295 = vpack.c.b16 %v3067, %v3063
        %v3296 = vpack.c.b16 %v3072, %v3068
        %v3297 = vpack.c.b16 %v3073, %v3069
        %v3298 = vpack.c.b16 %v3074, %v3070
        %v3299 = vpack.c.b16 %v3075, %v3071
        %v3300 = vpack.c.b16 %v3080, %v3076
        %v3301 = vpack.c.b16 %v3081, %v3077
        %v3302 = vpack.c.b16 %v3082, %v3078
        %v3303 = vpack.c.b16 %v3083, %v3079
        %v3304 = vpack.c.b16 %v3088, %v3084
        %v3305 = vpack.c.b16 %v3089, %v3085
        %v3306 = vpack.c.b16 %v3090, %v3086
        %v3307 = vpack.c.b16 %v3091, %v3087
        %v3308 = vpack.c.b16 %v3096, %v3092
        %v3309 = vpack.c.b16 %v3097, %v3093
        %v3310 = vpack.c.b16 %v3098, %v3094
        %v3311 = vpack.c.b16 %v3099, %v3095
        %v3312 = vpack.c.b16 %v3104, %v3100
        %v3313 = vpack.c.b16 %v3105, %v3101
        %v3314 = vpack.c.b16 %v3106, %v3102
        %v3315 = vpack.c.b16 %v3107, %v3103
        %v3316 = vpack.c.b16 %v3112, %v3108
        %v3317 = vpack.c.b16 %v3113, %v3109
        %v3318 = vpack.c.b16 %v3114, %v3110
        %v3319 = vpack.c.b16 %v3115, %v3111
        %v3320 = vpack.c.b16 %v3120, %v3116
        %v3321 = vpack.c.b16 %v3121, %v3117
        %v3322 = vpack.c.b16 %v3122, %v3118
        %v3323 = vpack.c.b16 %v3123, %v3119
        %v3324 = vpack.c.b16 %v3128, %v3124
        %v3325 = vpack.c.b16 %v3129, %v3125
        %v3326 = vpack.c.b16 %v3130, %v3126
        %v3327 = vpack.c.b16 %v3131, %v3127
        %v3328 = vpack.c.b16 %v3136, %v3132
        %v3329 = vpack.c.b16 %v3137, %v3133
        %v3330 = vpack.c.b16 %v3138, %v3134
        %v3331 = vpack.c.b16 %v3139, %v3135
        %v3332 = vpack.c.b16 %v3144, %v3140
        %v3333 = vpack.c.b16 %v3145, %v3141
        %v3334 = vpack.c.b16 %v3146, %v3142
        %v3335 = vpack.c.b16 %v3147, %v3143
        %v3336 = vpack.c.b16 %v3152, %v3148
        %v3337 = vpack.c.b16 %v3153, %v3149
        %v3338 = vpack.c.b16 %v3154, %v3150
        %v3339 = vpack.c.b16 %v3155, %v3151
        %v3340 = vpack.c.b16 %v3160, %v3156
        %v3341 = vpack.c.b16 %v3161, %v3157
        %v3342 = vpack.c.b16 %v3162, %v3158
        %v3343 = vpack.c.b16 %v3163, %v3159
        %v3344 = vpack.c.b16 %v3168, %v3164
        %v3345 = vpack.c.b16 %v3169, %v3165
        %v3346 = vpack.c.b16 %v3170, %v3166
        %v3347 = vpack.c.b16 %v3171, %v3167
        %v3348 = vpack.c.b16 %v3176, %v3172
        %v3349 = vpack.c.b16 %v3177, %v3173
        %v3350 = vpack.c.b16 %v3178, %v3174
        %v3351 = vpack.c.b16 %v3179, %v3175
        %v3352 = vpack.c.b16 %v3184, %v3180
        %v3353 = vpack.c.b16 %v3185, %v3181
        %v3354 = vpack.c.b16 %v3186, %v3182
        %v3355 = vpack.c.b16 %v3187, %v3183
        %v3356 = vpack.c.b16 %v3192, %v3188
        %v3357 = vpack.c.b16 %v3193, %v3189
        %v3358 = vpack.c.b16 %v3194, %v3190
        %v3359 = vpack.c.b16 %v3195, %v3191
        %v3360 = vpack.c.b16 %v3200, %v3196
        %v3361 = vpack.c.b16 %v3201, %v3197
        %v3362 = vpack.c.b16 %v3202, %v3198
        %v3363 = vpack.c.b16 %v3203, %v3199
        %v3364 = vpack.c.b16 %v3208, %v3204
        %v3365 = vpack.c.b16 %v3209, %v3205
        %v3366 = vpack.c.b16 %v3210, %v3206
        %v3367 = vpack.c.b16 %v3211, %v3207
        %v3368 = vpack.c.b16 %v3216, %v3212
        %v3369 = vpack.c.b16 %v3217, %v3213
        %v3370 = vpack.c.b16 %v3218, %v3214
        %v3371 = vpack.c.b16 %v3219, %v3215
        %v3372 = vpack.c.b16 %v3224, %v3220
        %v3373 = vpack.c.b16 %v3225, %v3221
        %v3374 = vpack.c.b16 %v3226, %v3222
        %v3375 = vpack.c.b16 %v3227, %v3223
        %v3376 = vpack.c.b16 %v3232, %v3228
        %v3377 = vpack.c.b16 %v3233, %v3229
        %v3378 = vpack.c.b16 %v3234, %v3230
        %v3379 = vpack.c.b16 %v3235, %v3231
        %v3380 = vpack.c.b16 %v3240, %v3236
        %v3381 = vpack.c.b16 %v3241, %v3237
        %v3382 = vpack.c.b16 %v3242, %v3238
        %v3383 = vpack.c.b16 %v3243, %v3239
        %v3384 = vpack.c.b16 %v3248, %v3244
        %v3385 = vpack.c.b16 %v3249, %v3245
        %v3386 = vpack.c.b16 %v3250, %v3246
        %v3387 = vpack.c.b16 %v3251, %v3247
        %v3388 = vpack.c.b16 %v3256, %v3252
        %v3389 = vpack.c.b16 %v3257, %v3253
        %v3390 = vpack.c.b16 %v3258, %v3254
        %v3391 = vpack.c.b16 %v3259, %v3255
        %v3392 = vpack.c.b16 %v3264, %v3260
        %v3393 = vpack.c.b16 %v3265, %v3261
        %v3394 = vpack.c.b16 %v3266, %v3262
        %v3395 = vpack.c.b16 %v3267, %v3263
        %3524 = vmatprep.subr.bf16.mxu0 %v3269
        %3525 = vmatpush1.bf16.msra.mxu0 %v3268
        %3526 = vmatprep.subr.bf16.mxu0 %v3273
        %3527 = vmatpush1.bf16.msra.mxu0 %v3272
        %3528 = vmatprep.subr.bf16.mxu0 %v3277
        %3529 = vmatpush1.bf16.msra.mxu0 %v3276
        %3530 = vmatprep.subr.bf16.mxu0 %v3281
        %3531 = vmatpush1.bf16.msra.mxu0 %v3280
        %3532 = vmatprep.subr.bf16.mxu0 %v3285
        %3533 = vmatpush1.bf16.msra.mxu0 %v3284
        %3534 = vmatprep.subr.bf16.mxu0 %v3289
        %3535 = vmatpush1.bf16.msra.mxu0 %v3288
        %3536 = vmatprep.subr.bf16.mxu0 %v3293
        %3537 = vmatpush1.bf16.msra.mxu0 %v3292
        %3538 = vmatprep.subr.bf16.mxu0 %v3297
        %3539 = vmatpush1.bf16.msra.mxu0 %v3296
        %3540 = vmatprep.subr.bf16.mxu0 %v3301
        %3541 = vmatpush1.bf16.msra.mxu0 %v3300
        %3542 = vmatprep.subr.bf16.mxu0 %v3305
        %3543 = vmatpush1.bf16.msra.mxu0 %v3304
        %3544 = vmatprep.subr.bf16.mxu0 %v3309
        %3545 = vmatpush1.bf16.msra.mxu0 %v3308
        %3546 = vmatprep.subr.bf16.mxu0 %v3313
        %3547 = vmatpush1.bf16.msra.mxu0 %v3312
        %3548 = vmatprep.subr.bf16.mxu0 %v3317
        %3549 = vmatpush1.bf16.msra.mxu0 %v3316
        %3550 = vmatprep.subr.bf16.mxu0 %v3321
        %3551 = vmatpush1.bf16.msra.mxu0 %v3320
        %3552 = vmatprep.subr.bf16.mxu0 %v3325
        %3553 = vmatpush1.bf16.msra.mxu0 %v3324
        %3554 = vmatprep.subr.bf16.mxu0 %v3329
        %3555 = vmatpush1.bf16.msra.mxu0 %v3328
        %3556 = vmatprep.mubr.bf16.mxu0 %v2731
        %3557 = vmatmul.mubr.bf16.gmra.mrb[0].mxu0 %v2730
        %v3558 = vpop.f32.mrb[0].mxu0
        %v3559 = vadd.f32 %v2867, %v3558
        %v3560 = vpop.f32.mrb[0].mxu0
        %v3561 = vadd.f32 %v2871, %v3560
        %v3562 = vpop.f32.mrb[0].mxu0
        %v3563 = vpop.f32.mrb[0].mxu0
        %3564 = vdwg.mxu0
        %3565 = vmatprep.subr.bf16.mxu0 %v3333
        %3566 = vmatpush1.bf16.msra.mxu0 %v3332
        %3567 = vmatprep.subr.bf16.mxu0 %v3337
        %3568 = vmatpush1.bf16.msra.mxu0 %v3336
        %3569 = vmatprep.subr.bf16.mxu0 %v3341
        %3570 = vmatpush1.bf16.msra.mxu0 %v3340
        %3571 = vmatprep.subr.bf16.mxu0 %v3345
        %3572 = vmatpush1.bf16.msra.mxu0 %v3344
        %3573 = vmatprep.subr.bf16.mxu0 %v3349
        %3574 = vmatpush1.bf16.msra.mxu0 %v3348
        %3575 = vmatprep.subr.bf16.mxu0 %v3353
        %3576 = vmatpush1.bf16.msra.mxu0 %v3352
        %3577 = vmatprep.subr.bf16.mxu0 %v3357
        %3578 = vmatpush1.bf16.msra.mxu0 %v3356
        %3579 = vmatprep.subr.bf16.mxu0 %v3361
        %3580 = vmatpush1.bf16.msra.mxu0 %v3360
        %3581 = vmatprep.subr.bf16.mxu0 %v3365
        %3582 = vmatpush1.bf16.msra.mxu0 %v3364
        %3583 = vmatprep.subr.bf16.mxu0 %v3369
        %3584 = vmatpush1.bf16.msra.mxu0 %v3368
        %3585 = vmatprep.subr.bf16.mxu0 %v3373
        %3586 = vmatpush1.bf16.msra.mxu0 %v3372
        %3587 = vmatprep.subr.bf16.mxu0 %v3377
        %3588 = vmatpush1.bf16.msra.mxu0 %v3376
        %3589 = vmatprep.subr.bf16.mxu0 %v3381
        %3590 = vmatpush1.bf16.msra.mxu0 %v3380
        %3591 = vmatprep.subr.bf16.mxu0 %v3385
        %3592 = vmatpush1.bf16.msra.mxu0 %v3384
        %3593 = vmatprep.subr.bf16.mxu0 %v3389
        %3594 = vmatpush1.bf16.msra.mxu0 %v3388
        %3595 = vmatprep.subr.bf16.mxu0 %v3393
        %3596 = vmatpush1.bf16.msra.mxu0 %v3392
        %3597 = vmatprep.mubr.bf16.mxu0 %v2733
        %3598 = vmatmul.mubr.bf16.gmra.mrb[0].mxu0 %v2732
        %v3599 = vpop.f32.mrb[0].mxu0
        %v3600 = vadd.f32 %v3559, %v3599
        %v3601 = vpop.f32.mrb[0].mxu0
        %v3602 = vadd.f32 %v3561, %v3601
        %v3603 = vpop.f32.mrb[0].mxu0
        %v3604 = vpop.f32.mrb[0].mxu0
        %3605 = vdwg.mxu0
        %3606 = vmatprep.subr.bf16.mxu0 %v3271
        %3607 = vmatpush1.bf16.msra.mxu0 %v3270
        %3608 = vmatprep.subr.bf16.mxu0 %v3275
        %3609 = vmatpush1.bf16.msra.mxu0 %v3274
        %3610 = vmatprep.subr.bf16.mxu0 %v3279
        %3611 = vmatpush1.bf16.msra.mxu0 %v3278
        %3612 = vmatprep.subr.bf16.mxu0 %v3283
        %3613 = vmatpush1.bf16.msra.mxu0 %v3282
        %3614 = vmatprep.subr.bf16.mxu0 %v3287
        %3615 = vmatpush1.bf16.msra.mxu0 %v3286
        %3616 = vmatprep.subr.bf16.mxu0 %v3291
        %3617 = vmatpush1.bf16.msra.mxu0 %v3290
        %3618 = vmatprep.subr.bf16.mxu0 %v3295
        %3619 = vmatpush1.bf16.msra.mxu0 %v3294
        %3620 = vmatprep.subr.bf16.mxu0 %v3299
        %3621 = vmatpush1.bf16.msra.mxu0 %v3298
        %3622 = vmatprep.subr.bf16.mxu0 %v3303
        %3623 = vmatpush1.bf16.msra.mxu0 %v3302
        %3624 = vmatprep.subr.bf16.mxu0 %v3307
        %3625 = vmatpush1.bf16.msra.mxu0 %v3306
        %3626 = vmatprep.subr.bf16.mxu0 %v3311
        %3627 = vmatpush1.bf16.msra.mxu0 %v3310
        %3628 = vmatprep.subr.bf16.mxu0 %v3315
        %3629 = vmatpush1.bf16.msra.mxu0 %v3314
        %3630 = vmatprep.subr.bf16.mxu0 %v3319
        %3631 = vmatpush1.bf16.msra.mxu0 %v3318
        %3632 = vmatprep.subr.bf16.mxu0 %v3323
        %3633 = vmatpush1.bf16.msra.mxu0 %v3322
        %3634 = vmatprep.subr.bf16.mxu0 %v3327
        %3635 = vmatpush1.bf16.msra.mxu0 %v3326
        %3636 = vmatprep.subr.bf16.mxu0 %v3331
        %3637 = vmatpush1.bf16.msra.mxu0 %v3330
        %3638 = vmatprep.mubr.bf16.mxu0 %v2731
        %3639 = vmatmul.mubr.bf16.gmra.mrb[0].mxu0 %v2730
        %v3640 = vpop.f32.mrb[0].mxu0
        %v3641 = vadd.f32 %v2875, %v3640
        %v3642 = vpop.f32.mrb[0].mxu0
        %v3643 = vadd.f32 %v2879, %v3642
        %v3644 = vpop.f32.mrb[0].mxu0
        %v3645 = vpop.f32.mrb[0].mxu0
        %3646 = vdwg.mxu0
        %3647 = vmatprep.subr.bf16.mxu0 %v3335
        %3648 = vmatpush1.bf16.msra.mxu0 %v3334
        %3649 = vmatprep.subr.bf16.mxu0 %v3339
        %3650 = vmatpush1.bf16.msra.mxu0 %v3338
        %3651 = vmatprep.subr.bf16.mxu0 %v3343
        %3652 = vmatpush1.bf16.msra.mxu0 %v3342
        %3653 = vmatprep.subr.bf16.mxu0 %v3347
        %3654 = vmatpush1.bf16.msra.mxu0 %v3346
        %3655 = vmatprep.subr.bf16.mxu0 %v3351
        %3656 = vmatpush1.bf16.msra.mxu0 %v3350
        %3657 = vmatprep.subr.bf16.mxu0 %v3355
        %3658 = vmatpush1.bf16.msra.mxu0 %v3354
        %3659 = vmatprep.subr.bf16.mxu0 %v3359
        %3660 = vmatpush1.bf16.msra.mxu0 %v3358
        %3661 = vmatprep.subr.bf16.mxu0 %v3363
        %3662 = vmatpush1.bf16.msra.mxu0 %v3362
        %3663 = vmatprep.subr.bf16.mxu0 %v3367
        %3664 = vmatpush1.bf16.msra.mxu0 %v3366
        %3665 = vmatprep.subr.bf16.mxu0 %v3371
        %3666 = vmatpush1.bf16.msra.mxu0 %v3370
        %3667 = vmatprep.subr.bf16.mxu0 %v3375
        %3668 = vmatpush1.bf16.msra.mxu0 %v3374
        %3669 = vmatprep.subr.bf16.mxu0 %v3379
        %3670 = vmatpush1.bf16.msra.mxu0 %v3378
        %3671 = vmatprep.subr.bf16.mxu0 %v3383
        %3672 = vmatpush1.bf16.msra.mxu0 %v3382
        %3673 = vmatprep.subr.bf16.mxu0 %v3387
        %3674 = vmatpush1.bf16.msra.mxu0 %v3386
        %3675 = vmatprep.subr.bf16.mxu0 %v3391
        %3676 = vmatpush1.bf16.msra.mxu0 %v3390
        %3677 = vmatprep.subr.bf16.mxu0 %v3395
        %3678 = vmatpush1.bf16.msra.mxu0 %v3394
        %3679 = vmatprep.mubr.bf16.mxu0 %v2733
        %3680 = vmatmul.mubr.bf16.gmra.mrb[0].mxu0 %v2732
        %v3681 = vpop.f32.mrb[0].mxu0
        %v3682 = vadd.f32 %v3641, %v3681
        %v3683 = vpop.f32.mrb[0].mxu0
        %v3684 = vadd.f32 %v3643, %v3683
        %v3685 = vpop.f32.mrb[0].mxu0
        %v3686 = vpop.f32.mrb[0].mxu0
        %3687 = vdwg.mxu0
        %vm3688 = vcmp.ge.f32.partialorder %v3600, 0.0
        %vm3689 = vcmp.ge.f32.partialorder %v3602, 0.0
        %vm3690 = vcmp.ge.f32.partialorder %v3682, 0.0
        %vm3691 = vcmp.ge.f32.partialorder %v3684, 0.0
        %v3692 = vmul.f32 %v3600, 0.2
        %v3693 = vmul.f32 %v3602, 0.2
        %v3694 = vmul.f32 %v3682, 0.2
        %v3695 = vmul.f32 %v3684, 0.2
        %v3696 = vsel %vm3688, %v3600, %v3692
        %v3697 = vsel %vm3689, %v3602, %v3693
        %v3698 = vsel %vm3690, %v3682, %v3694
        %v3699 = vsel %vm3691, %v3684, %v3695
        %v3700 = vpack.c.bf16 %v3696, %v3696
        %v3701 = vpack.c.bf16 %v3697, %v3697
        %v3702 = vpack.c.bf16 %v3698, %v3698
        %v3703 = vpack.c.bf16 %v3699, %v3699
        %v3704 = vld [vmem:[%s570] sm:$0xf]
        %v3705 = vld [vmem:[%s570 + $0x4] sm:$0xf]
        %v3706 = vld [vmem:[%s570 + $0x8] sm:$0xf]
        %v3707 = vld [vmem:[%s570 + $0xc] sm:$0xf]
        %v3708 = vld [vmem:[%s570 + $0x10] sm:$0xf]
        %v3709 = vld [vmem:[%s570 + $0x14] sm:$0xf]
        %v3710 = vld [vmem:[%s570 + $0x18] sm:$0xf]
        %v3711 = vld [vmem:[%s570 + $0x1c] sm:$0xf]
        %v3712 = vld [vmem:[%s570 + $0x20] sm:$0xf]
        %v3713 = vld [vmem:[%s570 + $0x24] sm:$0xf]
        %v3714 = vld [vmem:[%s570 + $0x28] sm:$0xf]
        %v3715 = vld [vmem:[%s570 + $0x2c] sm:$0xf]
        %v3716 = vld [vmem:[%s570 + $0x30] sm:$0xf]
        %v3717 = vld [vmem:[%s570 + $0x34] sm:$0xf]
        %v3718 = vld [vmem:[%s570 + $0x38] sm:$0xf]
        %v3719 = vld [vmem:[%s570 + $0x3c] sm:$0xf]
        %v3720 = vld [vmem:[%s570 + $0x40] sm:$0xf]
        %v3721 = vld [vmem:[%s570 + $0x44] sm:$0xf]
        %v3722 = vld [vmem:[%s570 + $0x48] sm:$0xf]
        %v3723 = vld [vmem:[%s570 + $0x4c] sm:$0xf]
        %v3724 = vld [vmem:[%s570 + $0x50] sm:$0xf]
        %v3725 = vld [vmem:[%s570 + $0x54] sm:$0xf]
        %v3726 = vld [vmem:[%s570 + $0x58] sm:$0xf]
        %v3727 = vld [vmem:[%s570 + $0x5c] sm:$0xf]
        %v3728 = vld [vmem:[%s570 + $0x60] sm:$0xf]
        %v3729 = vld [vmem:[%s570 + $0x64] sm:$0xf]
        %v3730 = vld [vmem:[%s570 + $0x68] sm:$0xf]
        %v3731 = vld [vmem:[%s570 + $0x6c] sm:$0xf]
        %v3732 = vld [vmem:[%s570 + $0x70] sm:$0xf]
        %v3733 = vld [vmem:[%s570 + $0x74] sm:$0xf]
        %v3734 = vld [vmem:[%s570 + $0x78] sm:$0xf]
        %v3735 = vld [vmem:[%s570 + $0x7c] sm:$0xf]
        %v3736 = vld [vmem:[%s570 + $0x80] sm:$0xf]
        %v3737 = vld [vmem:[%s570 + $0x84] sm:$0xf]
        %v3738 = vld [vmem:[%s570 + $0x88] sm:$0xf]
        %v3739 = vld [vmem:[%s570 + $0x8c] sm:$0xf]
        %v3740 = vld [vmem:[%s570 + $0x90] sm:$0xf]
        %v3741 = vld [vmem:[%s570 + $0x94] sm:$0xf]
        %v3742 = vld [vmem:[%s570 + $0x98] sm:$0xf]
        %v3743 = vld [vmem:[%s570 + $0x9c] sm:$0xf]
        %v3744 = vld [vmem:[%s570 + $0xa0] sm:$0xf]
        %v3745 = vld [vmem:[%s570 + $0xa4] sm:$0xf]
        %v3746 = vld [vmem:[%s570 + $0xa8] sm:$0xf]
        %v3747 = vld [vmem:[%s570 + $0xac] sm:$0xf]
        %v3748 = vld [vmem:[%s570 + $0xb0] sm:$0xf]
        %v3749 = vld [vmem:[%s570 + $0xb4] sm:$0xf]
        %v3750 = vld [vmem:[%s570 + $0xb8] sm:$0xf]
        %v3751 = vld [vmem:[%s570 + $0xbc] sm:$0xf]
        %v3752 = vld [vmem:[%s570 + $0xc0] sm:$0xf]
        %v3753 = vld [vmem:[%s570 + $0xc4] sm:$0xf]
        %v3754 = vld [vmem:[%s570 + $0xc8] sm:$0xf]
        %v3755 = vld [vmem:[%s570 + $0xcc] sm:$0xf]
        %v3756 = vld [vmem:[%s570 + $0xd0] sm:$0xf]
        %v3757 = vld [vmem:[%s570 + $0xd4] sm:$0xf]
        %v3758 = vld [vmem:[%s570 + $0xd8] sm:$0xf]
        %v3759 = vld [vmem:[%s570 + $0xdc] sm:$0xf]
        %v3760 = vld [vmem:[%s570 + $0xe0] sm:$0xf]
        %v3761 = vld [vmem:[%s570 + $0xe4] sm:$0xf]
        %v3762 = vld [vmem:[%s570 + $0xe8] sm:$0xf]
        %v3763 = vld [vmem:[%s570 + $0xec] sm:$0xf]
        %v3764 = vld [vmem:[%s570 + $0xf0] sm:$0xf]
        %v3765 = vld [vmem:[%s570 + $0xf4] sm:$0xf]
        %v3766 = vld [vmem:[%s570 + $0xf8] sm:$0xf]
        %v3767 = vld [vmem:[%s570 + $0xfc] sm:$0xf]
        %v3768 = vld [vmem:[%s578] sm:$0x1]
        %v3770 = vlaneseq
        %v3771 = vshrl.u32 %v3770, 7
        %v3772 = vsub.s32 0, %v3771
        %v3773 = vrot.slane %v3768, %v3772
        %v3839 = vunpack.c.l.b16 %v3704
        %v3840 = vunpack.c.l.b16 %v3705
        %v3841 = vunpack.c.l.b16 %v3706
        %v3842 = vunpack.c.l.b16 %v3707
        %v3843 = vunpack.c.l.b16 %v3708
        %v3844 = vunpack.c.l.b16 %v3709
        %v3845 = vunpack.c.l.b16 %v3710
        %v3846 = vunpack.c.l.b16 %v3711
        %v3847 = vunpack.c.l.b16 %v3712
        %v3848 = vunpack.c.l.b16 %v3713
        %v3849 = vunpack.c.l.b16 %v3714
        %v3850 = vunpack.c.l.b16 %v3715
        %v3851 = vunpack.c.l.b16 %v3716
        %v3852 = vunpack.c.l.b16 %v3717
        %v3853 = vunpack.c.l.b16 %v3718
        %v3854 = vunpack.c.l.b16 %v3719
        %v3855 = vunpack.c.l.b16 %v3720
        %v3856 = vunpack.c.l.b16 %v3721
        %v3857 = vunpack.c.l.b16 %v3722
        %v3858 = vunpack.c.l.b16 %v3723
        %v3859 = vunpack.c.l.b16 %v3724
        %v3860 = vunpack.c.l.b16 %v3725
        %v3861 = vunpack.c.l.b16 %v3726
        %v3862 = vunpack.c.l.b16 %v3727
        %v3863 = vunpack.c.l.b16 %v3728
        %v3864 = vunpack.c.l.b16 %v3729
        %v3865 = vunpack.c.l.b16 %v3730
        %v3866 = vunpack.c.l.b16 %v3731
        %v3867 = vunpack.c.l.b16 %v3732
        %v3868 = vunpack.c.l.b16 %v3733
        %v3869 = vunpack.c.l.b16 %v3734
        %v3870 = vunpack.c.l.b16 %v3735
        %v3871 = vunpack.c.l.b16 %v3736
        %v3872 = vunpack.c.l.b16 %v3737
        %v3873 = vunpack.c.l.b16 %v3738
        %v3874 = vunpack.c.l.b16 %v3739
        %v3875 = vunpack.c.l.b16 %v3740
        %v3876 = vunpack.c.l.b16 %v3741
        %v3877 = vunpack.c.l.b16 %v3742
        %v3878 = vunpack.c.l.b16 %v3743
        %v3879 = vunpack.c.l.b16 %v3744
        %v3880 = vunpack.c.l.b16 %v3745
        %v3881 = vunpack.c.l.b16 %v3746
        %v3882 = vunpack.c.l.b16 %v3747
        %v3883 = vunpack.c.l.b16 %v3748
        %v3884 = vunpack.c.l.b16 %v3749
        %v3885 = vunpack.c.l.b16 %v3750
        %v3886 = vunpack.c.l.b16 %v3751
        %v3887 = vunpack.c.l.b16 %v3752
        %v3888 = vunpack.c.l.b16 %v3753
        %v3889 = vunpack.c.l.b16 %v3754
        %v3890 = vunpack.c.l.b16 %v3755
        %v3891 = vunpack.c.l.b16 %v3756
        %v3892 = vunpack.c.l.b16 %v3757
        %v3893 = vunpack.c.l.b16 %v3758
        %v3894 = vunpack.c.l.b16 %v3759
        %v3895 = vunpack.c.l.b16 %v3760
        %v3896 = vunpack.c.l.b16 %v3761
        %v3897 = vunpack.c.l.b16 %v3762
        %v3898 = vunpack.c.l.b16 %v3763
        %v3899 = vunpack.c.l.b16 %v3764
        %v3900 = vunpack.c.l.b16 %v3765
        %v3901 = vunpack.c.l.b16 %v3766
        %v3902 = vunpack.c.l.b16 %v3767
        %v3903 = vpack.c.b16 %v3840, %v3839
        %v3904 = vpack.c.b16 %v3842, %v3841
        %v3905 = vpack.c.b16 %v3844, %v3843
        %v3906 = vpack.c.b16 %v3846, %v3845
        %v3907 = vpack.c.b16 %v3848, %v3847
        %v3908 = vpack.c.b16 %v3850, %v3849
        %v3909 = vpack.c.b16 %v3852, %v3851
        %v3910 = vpack.c.b16 %v3854, %v3853
        %v3911 = vpack.c.b16 %v3856, %v3855
        %v3912 = vpack.c.b16 %v3858, %v3857
        %v3913 = vpack.c.b16 %v3860, %v3859
        %v3914 = vpack.c.b16 %v3862, %v3861
        %v3915 = vpack.c.b16 %v3864, %v3863
        %v3916 = vpack.c.b16 %v3866, %v3865
        %v3917 = vpack.c.b16 %v3868, %v3867
        %v3918 = vpack.c.b16 %v3870, %v3869
        %v3919 = vpack.c.b16 %v3872, %v3871
        %v3920 = vpack.c.b16 %v3874, %v3873
        %v3921 = vpack.c.b16 %v3876, %v3875
        %v3922 = vpack.c.b16 %v3878, %v3877
        %v3923 = vpack.c.b16 %v3880, %v3879
        %v3924 = vpack.c.b16 %v3882, %v3881
        %v3925 = vpack.c.b16 %v3884, %v3883
        %v3926 = vpack.c.b16 %v3886, %v3885
        %v3927 = vpack.c.b16 %v3888, %v3887
        %v3928 = vpack.c.b16 %v3890, %v3889
        %v3929 = vpack.c.b16 %v3892, %v3891
        %v3930 = vpack.c.b16 %v3894, %v3893
        %v3931 = vpack.c.b16 %v3896, %v3895
        %v3932 = vpack.c.b16 %v3898, %v3897
        %v3933 = vpack.c.b16 %v3900, %v3899
        %v3934 = vpack.c.b16 %v3902, %v3901
        %3967 = vmatprep.subr.bf16.mxu0 0
        %3968 = vmatpush1.bf16.msra.mxu0 %v3903
        %3969 = vmatprep.subr.bf16.mxu0 0
        %3970 = vmatpush1.bf16.msra.mxu0 %v3904
        %3971 = vmatprep.subr.bf16.mxu0 0
        %3972 = vmatpush1.bf16.msra.mxu0 %v3905
        %3973 = vmatprep.subr.bf16.mxu0 0
        %3974 = vmatpush1.bf16.msra.mxu0 %v3906
        %3975 = vmatprep.subr.bf16.mxu0 0
        %3976 = vmatpush1.bf16.msra.mxu0 %v3907
        %3977 = vmatprep.subr.bf16.mxu0 0
        %3978 = vmatpush1.bf16.msra.mxu0 %v3908
        %3979 = vmatprep.subr.bf16.mxu0 0
        %3980 = vmatpush1.bf16.msra.mxu0 %v3909
        %3981 = vmatprep.subr.bf16.mxu0 0
        %3982 = vmatpush1.bf16.msra.mxu0 %v3910
        %3983 = vmatprep.subr.bf16.mxu0 0
        %3984 = vmatpush1.bf16.msra.mxu0 %v3911
        %3985 = vmatprep.subr.bf16.mxu0 0
        %3986 = vmatpush1.bf16.msra.mxu0 %v3912
        %3987 = vmatprep.subr.bf16.mxu0 0
        %3988 = vmatpush1.bf16.msra.mxu0 %v3913
        %3989 = vmatprep.subr.bf16.mxu0 0
        %3990 = vmatpush1.bf16.msra.mxu0 %v3914
        %3991 = vmatprep.subr.bf16.mxu0 0
        %3992 = vmatpush1.bf16.msra.mxu0 %v3915
        %3993 = vmatprep.subr.bf16.mxu0 0
        %3994 = vmatpush1.bf16.msra.mxu0 %v3916
        %3995 = vmatprep.subr.bf16.mxu0 0
        %3996 = vmatpush1.bf16.msra.mxu0 %v3917
        %3997 = vmatprep.subr.bf16.mxu0 0
        %3998 = vmatpush1.bf16.msra.mxu0 %v3918
        %3999 = vmatprep.mubr.bf16.mxu0 %v3701
        %4000 = vmatmul.mubr.bf16.gmra.mrb[0].mxu0 %v3700
        %v4001 = vpop.f32.mrb[0].mxu0
        %v4002 = vadd.f32 %v3773, %v4001
        %v4003 = vpop.f32.mrb[0].mxu0
        %v4004 = vpop.f32.mrb[0].mxu0
        %v4005 = vpop.f32.mrb[0].mxu0
        %4006 = vdwg.mxu0
        %4007 = vmatprep.subr.bf16.mxu0 0
        %4008 = vmatpush1.bf16.msra.mxu0 %v3919
        %4009 = vmatprep.subr.bf16.mxu0 0
        %4010 = vmatpush1.bf16.msra.mxu0 %v3920
        %4011 = vmatprep.subr.bf16.mxu0 0
        %4012 = vmatpush1.bf16.msra.mxu0 %v3921
        %4013 = vmatprep.subr.bf16.mxu0 0
        %4014 = vmatpush1.bf16.msra.mxu0 %v3922
        %4015 = vmatprep.subr.bf16.mxu0 0
        %4016 = vmatpush1.bf16.msra.mxu0 %v3923
        %4017 = vmatprep.subr.bf16.mxu0 0
        %4018 = vmatpush1.bf16.msra.mxu0 %v3924
        %4019 = vmatprep.subr.bf16.mxu0 0
        %4020 = vmatpush1.bf16.msra.mxu0 %v3925
        %4021 = vmatprep.subr.bf16.mxu0 0
        %4022 = vmatpush1.bf16.msra.mxu0 %v3926
        %4023 = vmatprep.subr.bf16.mxu0 0
        %4024 = vmatpush1.bf16.msra.mxu0 %v3927
        %4025 = vmatprep.subr.bf16.mxu0 0
        %4026 = vmatpush1.bf16.msra.mxu0 %v3928
        %4027 = vmatprep.subr.bf16.mxu0 0
        %4028 = vmatpush1.bf16.msra.mxu0 %v3929
        %4029 = vmatprep.subr.bf16.mxu0 0
        %4030 = vmatpush1.bf16.msra.mxu0 %v3930
        %4031 = vmatprep.subr.bf16.mxu0 0
        %4032 = vmatpush1.bf16.msra.mxu0 %v3931
        %4033 = vmatprep.subr.bf16.mxu0 0
        %4034 = vmatpush1.bf16.msra.mxu0 %v3932
        %4035 = vmatprep.subr.bf16.mxu0 0
        %4036 = vmatpush1.bf16.msra.mxu0 %v3933
        %4037 = vmatprep.subr.bf16.mxu0 0
        %4038 = vmatpush1.bf16.msra.mxu0 %v3934
        %4039 = vmatprep.mubr.bf16.mxu0 %v3703
        %4040 = vmatmul.mubr.bf16.gmra.mrb[0].mxu0 %v3702
        %v4041 = vpop.f32.mrb[0].mxu0
        %v4042 = vadd.f32 %v4002, %v4041
        %v4043 = vpop.f32.mrb[0].mxu0
        %v4044 = vpop.f32.mrb[0].mxu0
        %v4045 = vpop.f32.mrb[0].mxu0
        %4046 = vdwg.mxu0
        %vm4047 = vcmp.ge.f32.partialorder %v4042, 0.0
        %v4048 = vmul.f32 %v4042, 0.2
        %v4049 = vsel %vm4047, %v4042, %v4048
        %v4050 = vmul.f32 %v4049, 1.4142135
        %v4052 = vcombine.high %v4050, %v4050
        %4054 = vst [vmem:[%s651] sm:$0xf] %v4050
        %4055 = vst [vmem:[%s651 + $0x4] sm:$0xf] %v4052
        %s4056 = sand.u32 %s285, 1
        %s4057 = scalar_lea.sflag [#allocation6], %s4056
        %s4058 = sand.u32 %s285, 1
        %s4059 = smul.addr %s4058, 8
        %s4060 = scalar_lea.vmem [#allocation19], %s4059
        // Predicated region
        $region93: #{tpu_custom_call.1} parent=55 // pred_check
          %p4061 = pneg %p295
        $region94: #{tpu_custom_call.1} parent=55 // pred_check_branch
          %4063 = sbr.rel (%p4061) target = $region96
        $region95: #{tpu_custom_call.1} parent=55 // pred_region
          %s4065 = ssub.s32 128, 128
          %4066 = vsyncadd %s4057, %s4065
          %s4067 = smul.addr %s43, 2
          %s4068 = smul.addr %s4067, 64
          %s4069 = scalar_lea.hbm %s10, %s4068
          %s4070 = sshll.u32 %s4060, 4
          %s4071 = int_to_ptr.vmem [resolvable:$true] %s4070
          %4076 = dma.vmem_to_hbm [thread:$0]  %s4071, 128, %s4069, %s4057, 64, 64, 4
        $region96: #{tpu_custom_call.1} parent=55 // pred_fallthru
          _
      $region56: #{tpu_custom_call.1} parent=5 // pred_fallthru
        _
      %p4077 = scmp.le.s32.totalorder 2, %s38
      // Predicated region
      $region97: #{tpu_custom_call.1} parent=5 // pred_check
        %p4078 = pneg %p4077
      $region98: #{tpu_custom_call.1} parent=5 // pred_check_branch
        %4080 = sbr.rel (%p4078) target = $region100
      $region99: #{tpu_custom_call.1} parent=5 // pred_region
        %s4081 = ssub.s32 %s38, 2
        // Predicated region
        $region101: #{tpu_custom_call.1} parent=99 // pred_check
          %p4082 = pneg %p301
        $region102: #{tpu_custom_call.1} parent=99 // pred_check_branch
          %4084 = sbr.rel (%p4082) target = $region104
        $region103: #{tpu_custom_call.1} parent=99 // pred_region
          %s4085 = sand.u32 %s286, 1
          %s4086 = scalar_lea.sflag [#allocation6], %s4085
          %s4087 = sand.u32 %s286, 1
          %s4088 = smul.addr %s4087, 8
          %s4089 = scalar_lea.vmem [#allocation19], %s4088
          %4090 = dma.done %s4086, 128
        $region104: #{tpu_custom_call.1} parent=99 // pred_fallthru
          _
      $region100: #{tpu_custom_call.1} parent=5 // pred_fallthru
        _
    $region6: #{tpu_custom_call.1} parent=1 // loop_footer
      %s42 = sadd.s32 1, %s38
    $region7: #{tpu_custom_call.1} parent=1 // loop_footer_branch
      %37 = sbr.rel target = $region3
    $region8: #{tpu_custom_call.1} parent=1 // loop_exit
      _
    %4091 = vsyncpa [#allocation5], 1
    %s4092 = scalar_lea.sflag [#allocation5], 1
    %4093 = vsyncpa %s4092, 1
    %4094 = vsyncpa [#allocation8], 1
    %s4095 = scalar_lea.sflag [#allocation8], 1
    %4096 = vsyncpa %s4095, 1
    %4097 = vsyncpa [#allocation11], 1
    %s4098 = scalar_lea.sflag [#allocation11], 1
    %4099 = vsyncpa %s4098, 1
    %4100 = vsyncpa [#allocation14], 1
    %s4101 = scalar_lea.sflag [#allocation14], 1
    %4102 = vsyncpa %s4101, 1
    %4103 = vsyncpa [#allocation17], 1
    %s4104 = scalar_lea.sflag [#allocation17], 1
    %4105 = vsyncpa %s4104, 1
    %4106 = vsyncpa [#allocation6], 1
    %s4107 = scalar_lea.sflag [#allocation6], 1
    %4108 = vsyncpa %s4107, 1

</llo_original>
